<compile_context>
chip_gen: v7x
topology: tpu7x:2x2x1
jax: 0.10.0
libtpu: 0.0.40
codegen_flags: <defaults>
</compile_context>

<pallas_src>
import functools

import numpy as np

import jax
import jax.numpy as jnp
from jax import lax
from jax.experimental import pallas as pl
from jax.experimental.pallas import tpu as pltpu


def _conv_bn_relu_kernel(x_ref, w_ref, b_ref, m_ref, o_ref, *,
                         NB, C_in, C_out, KS, PAD, H, W, smax):
    """Fused 'same' conv (stride 1) + folded-BN bias + ReLU for NB batches.

    x_ref : (NB, C_in, WP)       row-flattened input; lane axis = H*W plus
                                 `smax` spare columns each side so every tap
                                 is a static, in-bounds lane slice.
    w_ref : (C_out, KS*KS*C_in)  BN-folded conv weights; column t*C_in + ci
                                 holds the weight of tap t = dh*KS + dw.
    b_ref : (C_out, 1)           BN-folded bias column.
    m_ref : (KS*KS, H*W)         0/1 border masks, one row per tap.
    o_ref : (NB, C_out, H*W)     lane-dense output block.
    """
    HW = H * W

    # Hoisted loads / broadcasts (once per grid step, reused across batches).
    w2 = w_ref[...]                                            # (C_out, KS*KS*C_in)
    masks = m_ref[...]                                         # (KS*KS, HW)
    bias_plane = jnp.broadcast_to(b_ref[...], (C_out, HW)).astype(jnp.float32)

    # TODO(synk): for C_in >= ~32 replace this VPU outer-product MAC with an
    # im2col (KS*KS*C_in, HW) + MXU jnp.dot (channels padded to the MXU
    # granule; on v7x accumulate in the MRB instead of popping partials).
    for b in range(NB):                          # NB is small; unrolled.
        xb = x_ref[b].astype(jnp.float32)        # (C_in, WP)
        acc = bias_plane                         # f32, fully dense (C_out, HW)
        for t in range(KS * KS):
            dh, dw = divmod(t, KS)
            s = (dh - PAD) * W + (dw - PAD)      # flat-coordinate tap offset
            # One shifted window per tap, shared by every (ci, co) pair.
            # Out-of-image positions are killed by the 0/1 mask.
            win = xb[:, smax + s: smax + s + HW] * masks[t:t + 1, :]
            for ci in range(C_in):
                w_col = w2[:, t * C_in + ci: t * C_in + ci + 1]   # (C_out, 1)
                acc = acc + w_col * win[ci:ci + 1, :]             # (C_out, HW)
        # Single wide, lane-dense store covering all output channels.
        o_ref[b] = jnp.maximum(acc, 0.0).astype(o_ref.dtype)


def conv_bn_relu_forward(x, params, *, stride=1, padding=1, dilation=1,
                         groups=1, eps=1e-5):
    """ConvBNReLU.forward with eval-mode BatchNorm (running statistics).

    Input/output are NCHW, matching the PyTorch module.
    """
    # TODO(synk): only the module's default conv config (stride=1, dilation=1,
    # groups=1, bias=False, 'same' padding) is implemented in the kernel.
    w = params["conv_w"]                        # (C_out, C_in, KS, KS)
    C_out, C_in, KS, KS2 = w.shape
    N, C_in_x, H, W = x.shape
    assert C_in_x == C_in and KS == KS2
    assert stride == 1 and dilation == 1 and groups == 1
    assert 2 * padding == KS - 1, "kernel implements 'same' convolution only"
    PAD = padding
    HW = H * W

    # Fold eval-mode BatchNorm into the conv (exact: BN is an affine
    # per-output-channel transform of a linear op).
    scale = params["bn_gamma"] * lax.rsqrt(params["bn_var"] + eps)
    w_fold = (w * scale[:, None, None, None]).astype(jnp.float32)
    b_fold = (params["bn_beta"] - params["bn_mean"] * scale).astype(jnp.float32)
    # (C_out, KS*KS*C_in): column t*C_in + ci <-> w[co, ci, dh, dw], t=dh*KS+dw
    w2 = jnp.transpose(w_fold, (0, 2, 3, 1)).reshape(C_out, KS * KS * C_in)
    b_col = b_fold.reshape(C_out, 1)

    # Per-tap 0/1 border masks over the flattened coordinate p = h*W + w.
    hh = np.arange(H)[:, None]
    ww = np.arange(W)[None, :]
    masks_np = np.empty((KS * KS, HW), np.float32)
    for t in range(KS * KS):
        dh, dw = divmod(t, KS)
        valid = ((hh + dh - PAD >= 0) & (hh + dh - PAD < H) &
                 (ww + dw - PAD >= 0) & (ww + dw - PAD < W))
        masks_np[t] = valid.reshape(-1).astype(np.float32)
    masks = jnp.asarray(masks_np)

    # Lane-dense layout plumbing (free): flatten H*W onto the lane axis and add
    # `smax` spare zero columns on each side so every tap slice is in bounds.
    smax = PAD * W + PAD
    WP = ((HW + 2 * smax + 127) // 128) * 128
    x_flat = jnp.pad(x.reshape(N, C_in, HW),
                     ((0, 0), (0, 0), (smax, WP - HW - smax)))

    # Block several batch elements per grid step to amortise the ~0.35us fixed
    # per-step overhead; at these toy sizes the whole batch is one step.
    # TODO(synk): for realistic H*W (e.g. 224x224) add an H-tile grid axis with
    # a 1-row halo so per-step blocks stay within v7x's 64 MiB VMEM.
    NB = 1
    for cand in range(min(N, 8), 0, -1):
        if N % cand == 0:
            NB = cand
            break

    kernel = functools.partial(
        _conv_bn_relu_kernel,
        NB=NB, C_in=C_in, C_out=C_out, KS=KS, PAD=PAD, H=H, W=W, smax=smax)

    out_flat = pl.pallas_call(
        kernel,
        out_shape=jax.ShapeDtypeStruct((N, C_out, HW), x.dtype),
        grid_spec=pltpu.PrefetchScalarGridSpec(
            num_scalar_prefetch=0,
            grid=(N // NB,),
            in_specs=[
                pl.BlockSpec((NB, C_in, WP), lambda n: (n, 0, 0)),
                pl.BlockSpec((C_out, KS * KS * C_in), lambda n: (0, 0)),
                pl.BlockSpec((C_out, 1), lambda n: (0, 0)),
                pl.BlockSpec((KS * KS, HW), lambda n: (0, 0)),
            ],
            out_specs=pl.BlockSpec((NB, C_out, HW), lambda n: (n, 0, 0)),
        ),
        compiler_params=pltpu.CompilerParams(
            dimension_semantics=("parallel",)),
    )(x_flat, w2, b_col, masks)

    return out_flat.reshape(N, C_out, H, W)


def init_params(key, in_chan, out_chan, ks=3):
    kw, kg, kb, km, kv = jax.random.split(key, 5)
    return {
        "conv_w": jax.random.normal(kw, (out_chan, in_chan, ks, ks),
                                    jnp.float32) * 0.1,
        "bn_gamma": 1.0 + 0.1 * jax.random.normal(kg, (out_chan,), jnp.float32),
        "bn_beta": 0.1 * jax.random.normal(kb, (out_chan,), jnp.float32),
        "bn_mean": 0.1 * jax.random.normal(km, (out_chan,), jnp.float32),
        "bn_var": jax.random.uniform(kv, (out_chan,), jnp.float32,
                                     minval=0.5, maxval=1.5),
    }


# ---------------- pure-JAX reference (correctness check) ----------------
def conv_bn_relu_reference(x, p, *, stride=1, padding=1, eps=1e-5):
    y = lax.conv_general_dilated(
        x, p["conv_w"], window_strides=(stride, stride),
        padding=((padding, padding), (padding, padding)),
        dimension_numbers=("NCHW", "OIHW", "NCHW"))
    scale = p["bn_gamma"] * lax.rsqrt(p["bn_var"] + eps)
    shift = p["bn_beta"] - p["bn_mean"] * scale
    y = y * scale[None, :, None, None] + shift[None, :, None, None]
    return jnp.maximum(y, 0.0)


if __name__ == "__main__":
    N, C_in, C_out, H, W = 2, 4, 8, 16, 16

    key = jax.random.PRNGKey(0)
    kx, kp = jax.random.split(key)
    x = jax.random.normal(kx, (N, C_in, H, W), jnp.float32)
    params = init_params(kp, C_in, C_out)

    out = jax.block_until_ready(conv_bn_relu_forward(x, params))
    ref = jax.block_until_ready(conv_bn_relu_reference(x, params))

    assert out.shape == (N, C_out, H, W), out.shape
    max_diff = float(jnp.max(jnp.abs(out - ref)))
    assert jnp.allclose(out, ref, atol=1e-4, rtol=1e-4), f"max diff {max_diff}"
    print("KERNEL_OK")
</pallas_src>

<mosaic_0001>
module attributes {stable_mosaic.version = 11 : i64} {
  func.func @_conv_bn_relu_kernel(%arg0: i32, %arg1: memref<2x4x384xf32, #tpu.memory_space<vmem>>, %arg2: memref<8x36xf32, #tpu.memory_space<vmem>>, %arg3: memref<8x1xf32, #tpu.memory_space<vmem>>, %arg4: memref<9x256xf32, #tpu.memory_space<vmem>>, %arg5: memref<2x8x256xf32, #tpu.memory_space<vmem>>) attributes {dimension_semantics = [#tpu.dimension_semantics<parallel>], iteration_bounds = array<i64: 1>, scalar_prefetch = 0 : i64, scratch_operands = 0 : i64, tpu.core_type = #tpu.core_type<tc>, window_params = [{transform_indices = @transform_0, window_bounds = array<i64: 2, 4, 384>}, {pipeline_mode = #tpu.pipeline_mode<synchronous>, transform_indices = @transform_1, window_bounds = array<i64: 8, 36>}, {pipeline_mode = #tpu.pipeline_mode<synchronous>, transform_indices = @transform_2, window_bounds = array<i64: 8, 1>}, {pipeline_mode = #tpu.pipeline_mode<synchronous>, transform_indices = @transform_3, window_bounds = array<i64: 9, 256>}, {transform_indices = @transform_4, window_bounds = array<i64: 2, 8, 256>}]} {
    %c0 = arith.constant 0 : index
    %c0_0 = arith.constant 0 : index
    %0 = vector.load %arg2[%c0, %c0_0] : memref<8x36xf32, #tpu.memory_space<vmem>>, vector<8x36xf32>
    %c0_1 = arith.constant 0 : index
    %c0_2 = arith.constant 0 : index
    %1 = vector.load %arg4[%c0_1, %c0_2] : memref<9x256xf32, #tpu.memory_space<vmem>>, vector<9x256xf32>
    %c0_3 = arith.constant 0 : index
    %c0_4 = arith.constant 0 : index
    %2 = vector.load %arg3[%c0_3, %c0_4] : memref<8x1xf32, #tpu.memory_space<vmem>>, vector<8x1xf32>
    %3 = vector.shape_cast %2 : vector<8x1xf32> to vector<8x1xf32>
    %4 = vector.broadcast %3 : vector<8x1xf32> to vector<8x256xf32>
    %c0_5 = arith.constant 0 : index
    %c0_6 = arith.constant 0 : index
    %c0_7 = arith.constant 0 : index
    %5 = vector.load %arg1[%c0_5, %c0_6, %c0_7] : memref<2x4x384xf32, #tpu.memory_space<vmem>>, vector<1x4x384xf32>
    %6 = vector.shape_cast %5 : vector<1x4x384xf32> to vector<4x384xf32>
    %7 = vector.extract_strided_slice %6 {offsets = [0, 0], sizes = [4, 256], strides = [1, 1]} : vector<4x384xf32> to vector<4x256xf32>
    %8 = vector.extract_strided_slice %1 {offsets = [0, 0], sizes = [1, 256], strides = [1, 1]} : vector<9x256xf32> to vector<1x256xf32>
    %9 = vector.broadcast %8 : vector<1x256xf32> to vector<4x256xf32>
    %10 = arith.mulf %7, %9 : vector<4x256xf32>
    %11 = vector.extract_strided_slice %0 {offsets = [0, 0], sizes = [8, 1], strides = [1, 1]} : vector<8x36xf32> to vector<8x1xf32>
    %12 = vector.extract_strided_slice %10 {offsets = [0, 0], sizes = [1, 256], strides = [1, 1]} : vector<4x256xf32> to vector<1x256xf32>
    %13 = vector.broadcast %11 : vector<8x1xf32> to vector<8x256xf32>
    %14 = vector.broadcast %12 : vector<1x256xf32> to vector<8x256xf32>
    %15 = arith.mulf %13, %14 : vector<8x256xf32>
    %16 = arith.addf %4, %15 : vector<8x256xf32>
    %17 = vector.extract_strided_slice %0 {offsets = [0, 1], sizes = [8, 1], strides = [1, 1]} : vector<8x36xf32> to vector<8x1xf32>
    %18 = vector.extract_strided_slice %10 {offsets = [1, 0], sizes = [1, 256], strides = [1, 1]} : vector<4x256xf32> to vector<1x256xf32>
    %19 = vector.broadcast %17 : vector<8x1xf32> to vector<8x256xf32>
    %20 = vector.broadcast %18 : vector<1x256xf32> to vector<8x256xf32>
    %21 = arith.mulf %19, %20 : vector<8x256xf32>
    %22 = arith.addf %16, %21 : vector<8x256xf32>
    %23 = vector.extract_strided_slice %0 {offsets = [0, 2], sizes = [8, 1], strides = [1, 1]} : vector<8x36xf32> to vector<8x1xf32>
    %24 = vector.extract_strided_slice %10 {offsets = [2, 0], sizes = [1, 256], strides = [1, 1]} : vector<4x256xf32> to vector<1x256xf32>
    %25 = vector.broadcast %23 : vector<8x1xf32> to vector<8x256xf32>
    %26 = vector.broadcast %24 : vector<1x256xf32> to vector<8x256xf32>
    %27 = arith.mulf %25, %26 : vector<8x256xf32>
    %28 = arith.addf %22, %27 : vector<8x256xf32>
    %29 = vector.extract_strided_slice %0 {offsets = [0, 3], sizes = [8, 1], strides = [1, 1]} : vector<8x36xf32> to vector<8x1xf32>
    %30 = vector.extract_strided_slice %10 {offsets = [3, 0], sizes = [1, 256], strides = [1, 1]} : vector<4x256xf32> to vector<1x256xf32>
    %31 = vector.broadcast %29 : vector<8x1xf32> to vector<8x256xf32>
    %32 = vector.broadcast %30 : vector<1x256xf32> to vector<8x256xf32>
    %33 = arith.mulf %31, %32 : vector<8x256xf32>
    %34 = arith.addf %28, %33 : vector<8x256xf32>
    %35 = vector.extract_strided_slice %6 {offsets = [0, 1], sizes = [4, 256], strides = [1, 1]} : vector<4x384xf32> to vector<4x256xf32>
    %36 = vector.extract_strided_slice %1 {offsets = [1, 0], sizes = [1, 256], strides = [1, 1]} : vector<9x256xf32> to vector<1x256xf32>
    %37 = vector.broadcast %36 : vector<1x256xf32> to vector<4x256xf32>
    %38 = arith.mulf %35, %37 : vector<4x256xf32>
    %39 = vector.extract_strided_slice %0 {offsets = [0, 4], sizes = [8, 1], strides = [1, 1]} : vector<8x36xf32> to vector<8x1xf32>
    %40 = vector.extract_strided_slice %38 {offsets = [0, 0], sizes = [1, 256], strides = [1, 1]} : vector<4x256xf32> to vector<1x256xf32>
    %41 = vector.broadcast %39 : vector<8x1xf32> to vector<8x256xf32>
    %42 = vector.broadcast %40 : vector<1x256xf32> to vector<8x256xf32>
    %43 = arith.mulf %41, %42 : vector<8x256xf32>
    %44 = arith.addf %34, %43 : vector<8x256xf32>
    %45 = vector.extract_strided_slice %0 {offsets = [0, 5], sizes = [8, 1], strides = [1, 1]} : vector<8x36xf32> to vector<8x1xf32>
    %46 = vector.extract_strided_slice %38 {offsets = [1, 0], sizes = [1, 256], strides = [1, 1]} : vector<4x256xf32> to vector<1x256xf32>
    %47 = vector.broadcast %45 : vector<8x1xf32> to vector<8x256xf32>
    %48 = vector.broadcast %46 : vector<1x256xf32> to vector<8x256xf32>
    %49 = arith.mulf %47, %48 : vector<8x256xf32>
    %50 = arith.addf %44, %49 : vector<8x256xf32>
    %51 = vector.extract_strided_slice %0 {offsets = [0, 6], sizes = [8, 1], strides = [1, 1]} : vector<8x36xf32> to vector<8x1xf32>
    %52 = vector.extract_strided_slice %38 {offsets = [2, 0], sizes = [1, 256], strides = [1, 1]} : vector<4x256xf32> to vector<1x256xf32>
    %53 = vector.broadcast %51 : vector<8x1xf32> to vector<8x256xf32>
    %54 = vector.broadcast %52 : vector<1x256xf32> to vector<8x256xf32>
    %55 = arith.mulf %53, %54 : vector<8x256xf32>
    %56 = arith.addf %50, %55 : vector<8x256xf32>
    %57 = vector.extract_strided_slice %0 {offsets = [0, 7], sizes = [8, 1], strides = [1, 1]} : vector<8x36xf32> to vector<8x1xf32>
    %58 = vector.extract_strided_slice %38 {offsets = [3, 0], sizes = [1, 256], strides = [1, 1]} : vector<4x256xf32> to vector<1x256xf32>
    %59 = vector.broadcast %57 : vector<8x1xf32> to vector<8x256xf32>
    %60 = vector.broadcast %58 : vector<1x256xf32> to vector<8x256xf32>
    %61 = arith.mulf %59, %60 : vector<8x256xf32>
    %62 = arith.addf %56, %61 : vector<8x256xf32>
    %63 = vector.extract_strided_slice %6 {offsets = [0, 2], sizes = [4, 256], strides = [1, 1]} : vector<4x384xf32> to vector<4x256xf32>
    %64 = vector.extract_strided_slice %1 {offsets = [2, 0], sizes = [1, 256], strides = [1, 1]} : vector<9x256xf32> to vector<1x256xf32>
    %65 = vector.broadcast %64 : vector<1x256xf32> to vector<4x256xf32>
    %66 = arith.mulf %63, %65 : vector<4x256xf32>
    %67 = vector.extract_strided_slice %0 {offsets = [0, 8], sizes = [8, 1], strides = [1, 1]} : vector<8x36xf32> to vector<8x1xf32>
    %68 = vector.extract_strided_slice %66 {offsets = [0, 0], sizes = [1, 256], strides = [1, 1]} : vector<4x256xf32> to vector<1x256xf32>
    %69 = vector.broadcast %67 : vector<8x1xf32> to vector<8x256xf32>
    %70 = vector.broadcast %68 : vector<1x256xf32> to vector<8x256xf32>
    %71 = arith.mulf %69, %70 : vector<8x256xf32>
    %72 = arith.addf %62, %71 : vector<8x256xf32>
    %73 = vector.extract_strided_slice %0 {offsets = [0, 9], sizes = [8, 1], strides = [1, 1]} : vector<8x36xf32> to vector<8x1xf32>
    %74 = vector.extract_strided_slice %66 {offsets = [1, 0], sizes = [1, 256], strides = [1, 1]} : vector<4x256xf32> to vector<1x256xf32>
    %75 = vector.broadcast %73 : vector<8x1xf32> to vector<8x256xf32>
    %76 = vector.broadcast %74 : vector<1x256xf32> to vector<8x256xf32>
    %77 = arith.mulf %75, %76 : vector<8x256xf32>
    %78 = arith.addf %72, %77 : vector<8x256xf32>
    %79 = vector.extract_strided_slice %0 {offsets = [0, 10], sizes = [8, 1], strides = [1, 1]} : vector<8x36xf32> to vector<8x1xf32>
    %80 = vector.extract_strided_slice %66 {offsets = [2, 0], sizes = [1, 256], strides = [1, 1]} : vector<4x256xf32> to vector<1x256xf32>
    %81 = vector.broadcast %79 : vector<8x1xf32> to vector<8x256xf32>
    %82 = vector.broadcast %80 : vector<1x256xf32> to vector<8x256xf32>
    %83 = arith.mulf %81, %82 : vector<8x256xf32>
    %84 = arith.addf %78, %83 : vector<8x256xf32>
    %85 = vector.extract_strided_slice %0 {offsets = [0, 11], sizes = [8, 1], strides = [1, 1]} : vector<8x36xf32> to vector<8x1xf32>
    %86 = vector.extract_strided_slice %66 {offsets = [3, 0], sizes = [1, 256], strides = [1, 1]} : vector<4x256xf32> to vector<1x256xf32>
    %87 = vector.broadcast %85 : vector<8x1xf32> to vector<8x256xf32>
    %88 = vector.broadcast %86 : vector<1x256xf32> to vector<8x256xf32>
    %89 = arith.mulf %87, %88 : vector<8x256xf32>
    %90 = arith.addf %84, %89 : vector<8x256xf32>
    %91 = vector.extract_strided_slice %6 {offsets = [0, 16], sizes = [4, 256], strides = [1, 1]} : vector<4x384xf32> to vector<4x256xf32>
    %92 = vector.extract_strided_slice %1 {offsets = [3, 0], sizes = [1, 256], strides = [1, 1]} : vector<9x256xf32> to vector<1x256xf32>
    %93 = vector.broadcast %92 : vector<1x256xf32> to vector<4x256xf32>
    %94 = arith.mulf %91, %93 : vector<4x256xf32>
    %95 = vector.extract_strided_slice %0 {offsets = [0, 12], sizes = [8, 1], strides = [1, 1]} : vector<8x36xf32> to vector<8x1xf32>
    %96 = vector.extract_strided_slice %94 {offsets = [0, 0], sizes = [1, 256], strides = [1, 1]} : vector<4x256xf32> to vector<1x256xf32>
    %97 = vector.broadcast %95 : vector<8x1xf32> to vector<8x256xf32>
    %98 = vector.broadcast %96 : vector<1x256xf32> to vector<8x256xf32>
    %99 = arith.mulf %97, %98 : vector<8x256xf32>
    %100 = arith.addf %90, %99 : vector<8x256xf32>
    %101 = vector.extract_strided_slice %0 {offsets = [0, 13], sizes = [8, 1], strides = [1, 1]} : vector<8x36xf32> to vector<8x1xf32>
    %102 = vector.extract_strided_slice %94 {offsets = [1, 0], sizes = [1, 256], strides = [1, 1]} : vector<4x256xf32> to vector<1x256xf32>
    %103 = vector.broadcast %101 : vector<8x1xf32> to vector<8x256xf32>
    %104 = vector.broadcast %102 : vector<1x256xf32> to vector<8x256xf32>
    %105 = arith.mulf %103, %104 : vector<8x256xf32>
    %106 = arith.addf %100, %105 : vector<8x256xf32>
    %107 = vector.extract_strided_slice %0 {offsets = [0, 14], sizes = [8, 1], strides = [1, 1]} : vector<8x36xf32> to vector<8x1xf32>
    %108 = vector.extract_strided_slice %94 {offsets = [2, 0], sizes = [1, 256], strides = [1, 1]} : vector<4x256xf32> to vector<1x256xf32>
    %109 = vector.broadcast %107 : vector<8x1xf32> to vector<8x256xf32>
    %110 = vector.broadcast %108 : vector<1x256xf32> to vector<8x256xf32>
    %111 = arith.mulf %109, %110 : vector<8x256xf32>
    %112 = arith.addf %106, %111 : vector<8x256xf32>
    %113 = vector.extract_strided_slice %0 {offsets = [0, 15], sizes = [8, 1], strides = [1, 1]} : vector<8x36xf32> to vector<8x1xf32>
    %114 = vector.extract_strided_slice %94 {offsets = [3, 0], sizes = [1, 256], strides = [1, 1]} : vector<4x256xf32> to vector<1x256xf32>
    %115 = vector.broadcast %113 : vector<8x1xf32> to vector<8x256xf32>
    %116 = vector.broadcast %114 : vector<1x256xf32> to vector<8x256xf32>
    %117 = arith.mulf %115, %116 : vector<8x256xf32>
    %118 = arith.addf %112, %117 : vector<8x256xf32>
    %119 = vector.extract_strided_slice %6 {offsets = [0, 17], sizes = [4, 256], strides = [1, 1]} : vector<4x384xf32> to vector<4x256xf32>
    %120 = vector.extract_strided_slice %1 {offsets = [4, 0], sizes = [1, 256], strides = [1, 1]} : vector<9x256xf32> to vector<1x256xf32>
    %121 = vector.broadcast %120 : vector<1x256xf32> to vector<4x256xf32>
    %122 = arith.mulf %119, %121 : vector<4x256xf32>
    %123 = vector.extract_strided_slice %0 {offsets = [0, 16], sizes = [8, 1], strides = [1, 1]} : vector<8x36xf32> to vector<8x1xf32>
    %124 = vector.extract_strided_slice %122 {offsets = [0, 0], sizes = [1, 256], strides = [1, 1]} : vector<4x256xf32> to vector<1x256xf32>
    %125 = vector.broadcast %123 : vector<8x1xf32> to vector<8x256xf32>
    %126 = vector.broadcast %124 : vector<1x256xf32> to vector<8x256xf32>
    %127 = arith.mulf %125, %126 : vector<8x256xf32>
    %128 = arith.addf %118, %127 : vector<8x256xf32>
    %129 = vector.extract_strided_slice %0 {offsets = [0, 17], sizes = [8, 1], strides = [1, 1]} : vector<8x36xf32> to vector<8x1xf32>
    %130 = vector.extract_strided_slice %122 {offsets = [1, 0], sizes = [1, 256], strides = [1, 1]} : vector<4x256xf32> to vector<1x256xf32>
    %131 = vector.broadcast %129 : vector<8x1xf32> to vector<8x256xf32>
    %132 = vector.broadcast %130 : vector<1x256xf32> to vector<8x256xf32>
    %133 = arith.mulf %131, %132 : vector<8x256xf32>
    %134 = arith.addf %128, %133 : vector<8x256xf32>
    %135 = vector.extract_strided_slice %0 {offsets = [0, 18], sizes = [8, 1], strides = [1, 1]} : vector<8x36xf32> to vector<8x1xf32>
    %136 = vector.extract_strided_slice %122 {offsets = [2, 0], sizes = [1, 256], strides = [1, 1]} : vector<4x256xf32> to vector<1x256xf32>
    %137 = vector.broadcast %135 : vector<8x1xf32> to vector<8x256xf32>
    %138 = vector.broadcast %136 : vector<1x256xf32> to vector<8x256xf32>
    %139 = arith.mulf %137, %138 : vector<8x256xf32>
    %140 = arith.addf %134, %139 : vector<8x256xf32>
    %141 = vector.extract_strided_slice %0 {offsets = [0, 19], sizes = [8, 1], strides = [1, 1]} : vector<8x36xf32> to vector<8x1xf32>
    %142 = vector.extract_strided_slice %122 {offsets = [3, 0], sizes = [1, 256], strides = [1, 1]} : vector<4x256xf32> to vector<1x256xf32>
    %143 = vector.broadcast %141 : vector<8x1xf32> to vector<8x256xf32>
    %144 = vector.broadcast %142 : vector<1x256xf32> to vector<8x256xf32>
    %145 = arith.mulf %143, %144 : vector<8x256xf32>
    %146 = arith.addf %140, %145 : vector<8x256xf32>
    %147 = vector.extract_strided_slice %6 {offsets = [0, 18], sizes = [4, 256], strides = [1, 1]} : vector<4x384xf32> to vector<4x256xf32>
    %148 = vector.extract_strided_slice %1 {offsets = [5, 0], sizes = [1, 256], strides = [1, 1]} : vector<9x256xf32> to vector<1x256xf32>
    %149 = vector.broadcast %148 : vector<1x256xf32> to vector<4x256xf32>
    %150 = arith.mulf %147, %149 : vector<4x256xf32>
    %151 = vector.extract_strided_slice %0 {offsets = [0, 20], sizes = [8, 1], strides = [1, 1]} : vector<8x36xf32> to vector<8x1xf32>
    %152 = vector.extract_strided_slice %150 {offsets = [0, 0], sizes = [1, 256], strides = [1, 1]} : vector<4x256xf32> to vector<1x256xf32>
    %153 = vector.broadcast %151 : vector<8x1xf32> to vector<8x256xf32>
    %154 = vector.broadcast %152 : vector<1x256xf32> to vector<8x256xf32>
    %155 = arith.mulf %153, %154 : vector<8x256xf32>
    %156 = arith.addf %146, %155 : vector<8x256xf32>
    %157 = vector.extract_strided_slice %0 {offsets = [0, 21], sizes = [8, 1], strides = [1, 1]} : vector<8x36xf32> to vector<8x1xf32>
    %158 = vector.extract_strided_slice %150 {offsets = [1, 0], sizes = [1, 256], strides = [1, 1]} : vector<4x256xf32> to vector<1x256xf32>
    %159 = vector.broadcast %157 : vector<8x1xf32> to vector<8x256xf32>
    %160 = vector.broadcast %158 : vector<1x256xf32> to vector<8x256xf32>
    %161 = arith.mulf %159, %160 : vector<8x256xf32>
    %162 = arith.addf %156, %161 : vector<8x256xf32>
    %163 = vector.extract_strided_slice %0 {offsets = [0, 22], sizes = [8, 1], strides = [1, 1]} : vector<8x36xf32> to vector<8x1xf32>
    %164 = vector.extract_strided_slice %150 {offsets = [2, 0], sizes = [1, 256], strides = [1, 1]} : vector<4x256xf32> to vector<1x256xf32>
    %165 = vector.broadcast %163 : vector<8x1xf32> to vector<8x256xf32>
    %166 = vector.broadcast %164 : vector<1x256xf32> to vector<8x256xf32>
    %167 = arith.mulf %165, %166 : vector<8x256xf32>
    %168 = arith.addf %162, %167 : vector<8x256xf32>
    %169 = vector.extract_strided_slice %0 {offsets = [0, 23], sizes = [8, 1], strides = [1, 1]} : vector<8x36xf32> to vector<8x1xf32>
    %170 = vector.extract_strided_slice %150 {offsets = [3, 0], sizes = [1, 256], strides = [1, 1]} : vector<4x256xf32> to vector<1x256xf32>
    %171 = vector.broadcast %169 : vector<8x1xf32> to vector<8x256xf32>
    %172 = vector.broadcast %170 : vector<1x256xf32> to vector<8x256xf32>
    %173 = arith.mulf %171, %172 : vector<8x256xf32>
    %174 = arith.addf %168, %173 : vector<8x256xf32>
    %175 = vector.extract_strided_slice %6 {offsets = [0, 32], sizes = [4, 256], strides = [1, 1]} : vector<4x384xf32> to vector<4x256xf32>
    %176 = vector.extract_strided_slice %1 {offsets = [6, 0], sizes = [1, 256], strides = [1, 1]} : vector<9x256xf32> to vector<1x256xf32>
    %177 = vector.broadcast %176 : vector<1x256xf32> to vector<4x256xf32>
    %178 = arith.mulf %175, %177 : vector<4x256xf32>
    %179 = vector.extract_strided_slice %0 {offsets = [0, 24], sizes = [8, 1], strides = [1, 1]} : vector<8x36xf32> to vector<8x1xf32>
    %180 = vector.extract_strided_slice %178 {offsets = [0, 0], sizes = [1, 256], strides = [1, 1]} : vector<4x256xf32> to vector<1x256xf32>
    %181 = vector.broadcast %179 : vector<8x1xf32> to vector<8x256xf32>
    %182 = vector.broadcast %180 : vector<1x256xf32> to vector<8x256xf32>
    %183 = arith.mulf %181, %182 : vector<8x256xf32>
    %184 = arith.addf %174, %183 : vector<8x256xf32>
    %185 = vector.extract_strided_slice %0 {offsets = [0, 25], sizes = [8, 1], strides = [1, 1]} : vector<8x36xf32> to vector<8x1xf32>
    %186 = vector.extract_strided_slice %178 {offsets = [1, 0], sizes = [1, 256], strides = [1, 1]} : vector<4x256xf32> to vector<1x256xf32>
    %187 = vector.broadcast %185 : vector<8x1xf32> to vector<8x256xf32>
    %188 = vector.broadcast %186 : vector<1x256xf32> to vector<8x256xf32>
    %189 = arith.mulf %187, %188 : vector<8x256xf32>
    %190 = arith.addf %184, %189 : vector<8x256xf32>
    %191 = vector.extract_strided_slice %0 {offsets = [0, 26], sizes = [8, 1], strides = [1, 1]} : vector<8x36xf32> to vector<8x1xf32>
    %192 = vector.extract_strided_slice %178 {offsets = [2, 0], sizes = [1, 256], strides = [1, 1]} : vector<4x256xf32> to vector<1x256xf32>
    %193 = vector.broadcast %191 : vector<8x1xf32> to vector<8x256xf32>
    %194 = vector.broadcast %192 : vector<1x256xf32> to vector<8x256xf32>
    %195 = arith.mulf %193, %194 : vector<8x256xf32>
    %196 = arith.addf %190, %195 : vector<8x256xf32>
    %197 = vector.extract_strided_slice %0 {offsets = [0, 27], sizes = [8, 1], strides = [1, 1]} : vector<8x36xf32> to vector<8x1xf32>
    %198 = vector.extract_strided_slice %178 {offsets = [3, 0], sizes = [1, 256], strides = [1, 1]} : vector<4x256xf32> to vector<1x256xf32>
    %199 = vector.broadcast %197 : vector<8x1xf32> to vector<8x256xf32>
    %200 = vector.broadcast %198 : vector<1x256xf32> to vector<8x256xf32>
    %201 = arith.mulf %199, %200 : vector<8x256xf32>
    %202 = arith.addf %196, %201 : vector<8x256xf32>
    %203 = vector.extract_strided_slice %6 {offsets = [0, 33], sizes = [4, 256], strides = [1, 1]} : vector<4x384xf32> to vector<4x256xf32>
    %204 = vector.extract_strided_slice %1 {offsets = [7, 0], sizes = [1, 256], strides = [1, 1]} : vector<9x256xf32> to vector<1x256xf32>
    %205 = vector.broadcast %204 : vector<1x256xf32> to vector<4x256xf32>
    %206 = arith.mulf %203, %205 : vector<4x256xf32>
    %207 = vector.extract_strided_slice %0 {offsets = [0, 28], sizes = [8, 1], strides = [1, 1]} : vector<8x36xf32> to vector<8x1xf32>
    %208 = vector.extract_strided_slice %206 {offsets = [0, 0], sizes = [1, 256], strides = [1, 1]} : vector<4x256xf32> to vector<1x256xf32>
    %209 = vector.broadcast %207 : vector<8x1xf32> to vector<8x256xf32>
    %210 = vector.broadcast %208 : vector<1x256xf32> to vector<8x256xf32>
    %211 = arith.mulf %209, %210 : vector<8x256xf32>
    %212 = arith.addf %202, %211 : vector<8x256xf32>
    %213 = vector.extract_strided_slice %0 {offsets = [0, 29], sizes = [8, 1], strides = [1, 1]} : vector<8x36xf32> to vector<8x1xf32>
    %214 = vector.extract_strided_slice %206 {offsets = [1, 0], sizes = [1, 256], strides = [1, 1]} : vector<4x256xf32> to vector<1x256xf32>
    %215 = vector.broadcast %213 : vector<8x1xf32> to vector<8x256xf32>
    %216 = vector.broadcast %214 : vector<1x256xf32> to vector<8x256xf32>
    %217 = arith.mulf %215, %216 : vector<8x256xf32>
    %218 = arith.addf %212, %217 : vector<8x256xf32>
    %219 = vector.extract_strided_slice %0 {offsets = [0, 30], sizes = [8, 1], strides = [1, 1]} : vector<8x36xf32> to vector<8x1xf32>
    %220 = vector.extract_strided_slice %206 {offsets = [2, 0], sizes = [1, 256], strides = [1, 1]} : vector<4x256xf32> to vector<1x256xf32>
    %221 = vector.broadcast %219 : vector<8x1xf32> to vector<8x256xf32>
    %222 = vector.broadcast %220 : vector<1x256xf32> to vector<8x256xf32>
    %223 = arith.mulf %221, %222 : vector<8x256xf32>
    %224 = arith.addf %218, %223 : vector<8x256xf32>
    %225 = vector.extract_strided_slice %0 {offsets = [0, 31], sizes = [8, 1], strides = [1, 1]} : vector<8x36xf32> to vector<8x1xf32>
    %226 = vector.extract_strided_slice %206 {offsets = [3, 0], sizes = [1, 256], strides = [1, 1]} : vector<4x256xf32> to vector<1x256xf32>
    %227 = vector.broadcast %225 : vector<8x1xf32> to vector<8x256xf32>
    %228 = vector.broadcast %226 : vector<1x256xf32> to vector<8x256xf32>
    %229 = arith.mulf %227, %228 : vector<8x256xf32>
    %230 = arith.addf %224, %229 : vector<8x256xf32>
    %231 = vector.extract_strided_slice %6 {offsets = [0, 34], sizes = [4, 256], strides = [1, 1]} : vector<4x384xf32> to vector<4x256xf32>
    %232 = vector.extract_strided_slice %1 {offsets = [8, 0], sizes = [1, 256], strides = [1, 1]} : vector<9x256xf32> to vector<1x256xf32>
    %233 = vector.broadcast %232 : vector<1x256xf32> to vector<4x256xf32>
    %234 = arith.mulf %231, %233 : vector<4x256xf32>
    %235 = vector.extract_strided_slice %0 {offsets = [0, 32], sizes = [8, 1], strides = [1, 1]} : vector<8x36xf32> to vector<8x1xf32>
    %236 = vector.extract_strided_slice %234 {offsets = [0, 0], sizes = [1, 256], strides = [1, 1]} : vector<4x256xf32> to vector<1x256xf32>
    %237 = vector.broadcast %235 : vector<8x1xf32> to vector<8x256xf32>
    %238 = vector.broadcast %236 : vector<1x256xf32> to vector<8x256xf32>
    %239 = arith.mulf %237, %238 : vector<8x256xf32>
    %240 = arith.addf %230, %239 : vector<8x256xf32>
    %241 = vector.extract_strided_slice %0 {offsets = [0, 33], sizes = [8, 1], strides = [1, 1]} : vector<8x36xf32> to vector<8x1xf32>
    %242 = vector.extract_strided_slice %234 {offsets = [1, 0], sizes = [1, 256], strides = [1, 1]} : vector<4x256xf32> to vector<1x256xf32>
    %243 = vector.broadcast %241 : vector<8x1xf32> to vector<8x256xf32>
    %244 = vector.broadcast %242 : vector<1x256xf32> to vector<8x256xf32>
    %245 = arith.mulf %243, %244 : vector<8x256xf32>
    %246 = arith.addf %240, %245 : vector<8x256xf32>
    %247 = vector.extract_strided_slice %0 {offsets = [0, 34], sizes = [8, 1], strides = [1, 1]} : vector<8x36xf32> to vector<8x1xf32>
    %248 = vector.extract_strided_slice %234 {offsets = [2, 0], sizes = [1, 256], strides = [1, 1]} : vector<4x256xf32> to vector<1x256xf32>
    %249 = vector.broadcast %247 : vector<8x1xf32> to vector<8x256xf32>
    %250 = vector.broadcast %248 : vector<1x256xf32> to vector<8x256xf32>
    %251 = arith.mulf %249, %250 : vector<8x256xf32>
    %252 = arith.addf %246, %251 : vector<8x256xf32>
    %253 = vector.extract_strided_slice %0 {offsets = [0, 35], sizes = [8, 1], strides = [1, 1]} : vector<8x36xf32> to vector<8x1xf32>
    %254 = vector.extract_strided_slice %234 {offsets = [3, 0], sizes = [1, 256], strides = [1, 1]} : vector<4x256xf32> to vector<1x256xf32>
    %255 = vector.broadcast %253 : vector<8x1xf32> to vector<8x256xf32>
    %256 = vector.broadcast %254 : vector<1x256xf32> to vector<8x256xf32>
    %257 = arith.mulf %255, %256 : vector<8x256xf32>
    %258 = arith.addf %252, %257 : vector<8x256xf32>
    %cst = arith.constant 0.000000e+00 : f32
    %259 = vector.broadcast %cst : f32 to vector<8x256xf32>
    %260 = arith.maximumf %258, %259 : vector<8x256xf32>
    %c0_8 = arith.constant 0 : index
    %c0_9 = arith.constant 0 : index
    %c0_10 = arith.constant 0 : index
    %261 = vector.load %arg5[%c0_8, %c0_9, %c0_10] : memref<2x8x256xf32, #tpu.memory_space<vmem>>, vector<1x8x256xf32>
    %262 = vector.shape_cast %261 : vector<1x8x256xf32> to vector<8x256xf32>
    %263 = vector.shape_cast %260 : vector<8x256xf32> to vector<1x8x256xf32>
    tpu.vector_store %arg5[%c0_8, %c0_9, %c0_10], %263 {strides = array<i32>} : memref<2x8x256xf32, #tpu.memory_space<vmem>>, vector<1x8x256xf32>,
    %c1 = arith.constant 1 : index
    %c0_11 = arith.constant 0 : index
    %c0_12 = arith.constant 0 : index
    %264 = vector.load %arg1[%c1, %c0_11, %c0_12] : memref<2x4x384xf32, #tpu.memory_space<vmem>>, vector<1x4x384xf32>
    %265 = vector.shape_cast %264 : vector<1x4x384xf32> to vector<4x384xf32>
    %266 = vector.extract_strided_slice %265 {offsets = [0, 0], sizes = [4, 256], strides = [1, 1]} : vector<4x384xf32> to vector<4x256xf32>
    %267 = vector.extract_strided_slice %1 {offsets = [0, 0], sizes = [1, 256], strides = [1, 1]} : vector<9x256xf32> to vector<1x256xf32>
    %268 = vector.broadcast %267 : vector<1x256xf32> to vector<4x256xf32>
    %269 = arith.mulf %266, %268 : vector<4x256xf32>
    %270 = vector.extract_strided_slice %0 {offsets = [0, 0], sizes = [8, 1], strides = [1, 1]} : vector<8x36xf32> to vector<8x1xf32>
    %271 = vector.extract_strided_slice %269 {offsets = [0, 0], sizes = [1, 256], strides = [1, 1]} : vector<4x256xf32> to vector<1x256xf32>
    %272 = vector.broadcast %270 : vector<8x1xf32> to vector<8x256xf32>
    %273 = vector.broadcast %271 : vector<1x256xf32> to vector<8x256xf32>
    %274 = arith.mulf %272, %273 : vector<8x256xf32>
    %275 = arith.addf %4, %274 : vector<8x256xf32>
    %276 = vector.extract_strided_slice %0 {offsets = [0, 1], sizes = [8, 1], strides = [1, 1]} : vector<8x36xf32> to vector<8x1xf32>
    %277 = vector.extract_strided_slice %269 {offsets = [1, 0], sizes = [1, 256], strides = [1, 1]} : vector<4x256xf32> to vector<1x256xf32>
    %278 = vector.broadcast %276 : vector<8x1xf32> to vector<8x256xf32>
    %279 = vector.broadcast %277 : vector<1x256xf32> to vector<8x256xf32>
    %280 = arith.mulf %278, %279 : vector<8x256xf32>
    %281 = arith.addf %275, %280 : vector<8x256xf32>
    %282 = vector.extract_strided_slice %0 {offsets = [0, 2], sizes = [8, 1], strides = [1, 1]} : vector<8x36xf32> to vector<8x1xf32>
    %283 = vector.extract_strided_slice %269 {offsets = [2, 0], sizes = [1, 256], strides = [1, 1]} : vector<4x256xf32> to vector<1x256xf32>
    %284 = vector.broadcast %282 : vector<8x1xf32> to vector<8x256xf32>
    %285 = vector.broadcast %283 : vector<1x256xf32> to vector<8x256xf32>
    %286 = arith.mulf %284, %285 : vector<8x256xf32>
    %287 = arith.addf %281, %286 : vector<8x256xf32>
    %288 = vector.extract_strided_slice %0 {offsets = [0, 3], sizes = [8, 1], strides = [1, 1]} : vector<8x36xf32> to vector<8x1xf32>
    %289 = vector.extract_strided_slice %269 {offsets = [3, 0], sizes = [1, 256], strides = [1, 1]} : vector<4x256xf32> to vector<1x256xf32>
    %290 = vector.broadcast %288 : vector<8x1xf32> to vector<8x256xf32>
    %291 = vector.broadcast %289 : vector<1x256xf32> to vector<8x256xf32>
    %292 = arith.mulf %290, %291 : vector<8x256xf32>
    %293 = arith.addf %287, %292 : vector<8x256xf32>
    %294 = vector.extract_strided_slice %265 {offsets = [0, 1], sizes = [4, 256], strides = [1, 1]} : vector<4x384xf32> to vector<4x256xf32>
    %295 = vector.extract_strided_slice %1 {offsets = [1, 0], sizes = [1, 256], strides = [1, 1]} : vector<9x256xf32> to vector<1x256xf32>
    %296 = vector.broadcast %295 : vector<1x256xf32> to vector<4x256xf32>
    %297 = arith.mulf %294, %296 : vector<4x256xf32>
    %298 = vector.extract_strided_slice %0 {offsets = [0, 4], sizes = [8, 1], strides = [1, 1]} : vector<8x36xf32> to vector<8x1xf32>
    %299 = vector.extract_strided_slice %297 {offsets = [0, 0], sizes = [1, 256], strides = [1, 1]} : vector<4x256xf32> to vector<1x256xf32>
    %300 = vector.broadcast %298 : vector<8x1xf32> to vector<8x256xf32>
    %301 = vector.broadcast %299 : vector<1x256xf32> to vector<8x256xf32>
    %302 = arith.mulf %300, %301 : vector<8x256xf32>
    %303 = arith.addf %293, %302 : vector<8x256xf32>
    %304 = vector.extract_strided_slice %0 {offsets = [0, 5], sizes = [8, 1], strides = [1, 1]} : vector<8x36xf32> to vector<8x1xf32>
    %305 = vector.extract_strided_slice %297 {offsets = [1, 0], sizes = [1, 256], strides = [1, 1]} : vector<4x256xf32> to vector<1x256xf32>
    %306 = vector.broadcast %304 : vector<8x1xf32> to vector<8x256xf32>
    %307 = vector.broadcast %305 : vector<1x256xf32> to vector<8x256xf32>
    %308 = arith.mulf %306, %307 : vector<8x256xf32>
    %309 = arith.addf %303, %308 : vector<8x256xf32>
    %310 = vector.extract_strided_slice %0 {offsets = [0, 6], sizes = [8, 1], strides = [1, 1]} : vector<8x36xf32> to vector<8x1xf32>
    %311 = vector.extract_strided_slice %297 {offsets = [2, 0], sizes = [1, 256], strides = [1, 1]} : vector<4x256xf32> to vector<1x256xf32>
    %312 = vector.broadcast %310 : vector<8x1xf32> to vector<8x256xf32>
    %313 = vector.broadcast %311 : vector<1x256xf32> to vector<8x256xf32>
    %314 = arith.mulf %312, %313 : vector<8x256xf32>
    %315 = arith.addf %309, %314 : vector<8x256xf32>
    %316 = vector.extract_strided_slice %0 {offsets = [0, 7], sizes = [8, 1], strides = [1, 1]} : vector<8x36xf32> to vector<8x1xf32>
    %317 = vector.extract_strided_slice %297 {offsets = [3, 0], sizes = [1, 256], strides = [1, 1]} : vector<4x256xf32> to vector<1x256xf32>
    %318 = vector.broadcast %316 : vector<8x1xf32> to vector<8x256xf32>
    %319 = vector.broadcast %317 : vector<1x256xf32> to vector<8x256xf32>
    %320 = arith.mulf %318, %319 : vector<8x256xf32>
    %321 = arith.addf %315, %320 : vector<8x256xf32>
    %322 = vector.extract_strided_slice %265 {offsets = [0, 2], sizes = [4, 256], strides = [1, 1]} : vector<4x384xf32> to vector<4x256xf32>
    %323 = vector.extract_strided_slice %1 {offsets = [2, 0], sizes = [1, 256], strides = [1, 1]} : vector<9x256xf32> to vector<1x256xf32>
    %324 = vector.broadcast %323 : vector<1x256xf32> to vector<4x256xf32>
    %325 = arith.mulf %322, %324 : vector<4x256xf32>
    %326 = vector.extract_strided_slice %0 {offsets = [0, 8], sizes = [8, 1], strides = [1, 1]} : vector<8x36xf32> to vector<8x1xf32>
    %327 = vector.extract_strided_slice %325 {offsets = [0, 0], sizes = [1, 256], strides = [1, 1]} : vector<4x256xf32> to vector<1x256xf32>
    %328 = vector.broadcast %326 : vector<8x1xf32> to vector<8x256xf32>
    %329 = vector.broadcast %327 : vector<1x256xf32> to vector<8x256xf32>
    %330 = arith.mulf %328, %329 : vector<8x256xf32>
    %331 = arith.addf %321, %330 : vector<8x256xf32>
    %332 = vector.extract_strided_slice %0 {offsets = [0, 9], sizes = [8, 1], strides = [1, 1]} : vector<8x36xf32> to vector<8x1xf32>
    %333 = vector.extract_strided_slice %325 {offsets = [1, 0], sizes = [1, 256], strides = [1, 1]} : vector<4x256xf32> to vector<1x256xf32>
    %334 = vector.broadcast %332 : vector<8x1xf32> to vector<8x256xf32>
    %335 = vector.broadcast %333 : vector<1x256xf32> to vector<8x256xf32>
    %336 = arith.mulf %334, %335 : vector<8x256xf32>
    %337 = arith.addf %331, %336 : vector<8x256xf32>
    %338 = vector.extract_strided_slice %0 {offsets = [0, 10], sizes = [8, 1], strides = [1, 1]} : vector<8x36xf32> to vector<8x1xf32>
    %339 = vector.extract_strided_slice %325 {offsets = [2, 0], sizes = [1, 256], strides = [1, 1]} : vector<4x256xf32> to vector<1x256xf32>
    %340 = vector.broadcast %338 : vector<8x1xf32> to vector<8x256xf32>
    %341 = vector.broadcast %339 : vector<1x256xf32> to vector<8x256xf32>
    %342 = arith.mulf %340, %341 : vector<8x256xf32>
    %343 = arith.addf %337, %342 : vector<8x256xf32>
    %344 = vector.extract_strided_slice %0 {offsets = [0, 11], sizes = [8, 1], strides = [1, 1]} : vector<8x36xf32> to vector<8x1xf32>
    %345 = vector.extract_strided_slice %325 {offsets = [3, 0], sizes = [1, 256], strides = [1, 1]} : vector<4x256xf32> to vector<1x256xf32>
    %346 = vector.broadcast %344 : vector<8x1xf32> to vector<8x256xf32>
    %347 = vector.broadcast %345 : vector<1x256xf32> to vector<8x256xf32>
    %348 = arith.mulf %346, %347 : vector<8x256xf32>
    %349 = arith.addf %343, %348 : vector<8x256xf32>
    %350 = vector.extract_strided_slice %265 {offsets = [0, 16], sizes = [4, 256], strides = [1, 1]} : vector<4x384xf32> to vector<4x256xf32>
    %351 = vector.extract_strided_slice %1 {offsets = [3, 0], sizes = [1, 256], strides = [1, 1]} : vector<9x256xf32> to vector<1x256xf32>
    %352 = vector.broadcast %351 : vector<1x256xf32> to vector<4x256xf32>
    %353 = arith.mulf %350, %352 : vector<4x256xf32>
    %354 = vector.extract_strided_slice %0 {offsets = [0, 12], sizes = [8, 1], strides = [1, 1]} : vector<8x36xf32> to vector<8x1xf32>
    %355 = vector.extract_strided_slice %353 {offsets = [0, 0], sizes = [1, 256], strides = [1, 1]} : vector<4x256xf32> to vector<1x256xf32>
    %356 = vector.broadcast %354 : vector<8x1xf32> to vector<8x256xf32>
    %357 = vector.broadcast %355 : vector<1x256xf32> to vector<8x256xf32>
    %358 = arith.mulf %356, %357 : vector<8x256xf32>
    %359 = arith.addf %349, %358 : vector<8x256xf32>
    %360 = vector.extract_strided_slice %0 {offsets = [0, 13], sizes = [8, 1], strides = [1, 1]} : vector<8x36xf32> to vector<8x1xf32>
    %361 = vector.extract_strided_slice %353 {offsets = [1, 0], sizes = [1, 256], strides = [1, 1]} : vector<4x256xf32> to vector<1x256xf32>
    %362 = vector.broadcast %360 : vector<8x1xf32> to vector<8x256xf32>
    %363 = vector.broadcast %361 : vector<1x256xf32> to vector<8x256xf32>
    %364 = arith.mulf %362, %363 : vector<8x256xf32>
    %365 = arith.addf %359, %364 : vector<8x256xf32>
    %366 = vector.extract_strided_slice %0 {offsets = [0, 14], sizes = [8, 1], strides = [1, 1]} : vector<8x36xf32> to vector<8x1xf32>
    %367 = vector.extract_strided_slice %353 {offsets = [2, 0], sizes = [1, 256], strides = [1, 1]} : vector<4x256xf32> to vector<1x256xf32>
    %368 = vector.broadcast %366 : vector<8x1xf32> to vector<8x256xf32>
    %369 = vector.broadcast %367 : vector<1x256xf32> to vector<8x256xf32>
    %370 = arith.mulf %368, %369 : vector<8x256xf32>
    %371 = arith.addf %365, %370 : vector<8x256xf32>
    %372 = vector.extract_strided_slice %0 {offsets = [0, 15], sizes = [8, 1], strides = [1, 1]} : vector<8x36xf32> to vector<8x1xf32>
    %373 = vector.extract_strided_slice %353 {offsets = [3, 0], sizes = [1, 256], strides = [1, 1]} : vector<4x256xf32> to vector<1x256xf32>
    %374 = vector.broadcast %372 : vector<8x1xf32> to vector<8x256xf32>
    %375 = vector.broadcast %373 : vector<1x256xf32> to vector<8x256xf32>
    %376 = arith.mulf %374, %375 : vector<8x256xf32>
    %377 = arith.addf %371, %376 : vector<8x256xf32>
    %378 = vector.extract_strided_slice %265 {offsets = [0, 17], sizes = [4, 256], strides = [1, 1]} : vector<4x384xf32> to vector<4x256xf32>
    %379 = vector.extract_strided_slice %1 {offsets = [4, 0], sizes = [1, 256], strides = [1, 1]} : vector<9x256xf32> to vector<1x256xf32>
    %380 = vector.broadcast %379 : vector<1x256xf32> to vector<4x256xf32>
    %381 = arith.mulf %378, %380 : vector<4x256xf32>
    %382 = vector.extract_strided_slice %0 {offsets = [0, 16], sizes = [8, 1], strides = [1, 1]} : vector<8x36xf32> to vector<8x1xf32>
    %383 = vector.extract_strided_slice %381 {offsets = [0, 0], sizes = [1, 256], strides = [1, 1]} : vector<4x256xf32> to vector<1x256xf32>
    %384 = vector.broadcast %382 : vector<8x1xf32> to vector<8x256xf32>
    %385 = vector.broadcast %383 : vector<1x256xf32> to vector<8x256xf32>
    %386 = arith.mulf %384, %385 : vector<8x256xf32>
    %387 = arith.addf %377, %386 : vector<8x256xf32>
    %388 = vector.extract_strided_slice %0 {offsets = [0, 17], sizes = [8, 1], strides = [1, 1]} : vector<8x36xf32> to vector<8x1xf32>
    %389 = vector.extract_strided_slice %381 {offsets = [1, 0], sizes = [1, 256], strides = [1, 1]} : vector<4x256xf32> to vector<1x256xf32>
    %390 = vector.broadcast %388 : vector<8x1xf32> to vector<8x256xf32>
    %391 = vector.broadcast %389 : vector<1x256xf32> to vector<8x256xf32>
    %392 = arith.mulf %390, %391 : vector<8x256xf32>
    %393 = arith.addf %387, %392 : vector<8x256xf32>
    %394 = vector.extract_strided_slice %0 {offsets = [0, 18], sizes = [8, 1], strides = [1, 1]} : vector<8x36xf32> to vector<8x1xf32>
    %395 = vector.extract_strided_slice %381 {offsets = [2, 0], sizes = [1, 256], strides = [1, 1]} : vector<4x256xf32> to vector<1x256xf32>
    %396 = vector.broadcast %394 : vector<8x1xf32> to vector<8x256xf32>
    %397 = vector.broadcast %395 : vector<1x256xf32> to vector<8x256xf32>
    %398 = arith.mulf %396, %397 : vector<8x256xf32>
    %399 = arith.addf %393, %398 : vector<8x256xf32>
    %400 = vector.extract_strided_slice %0 {offsets = [0, 19], sizes = [8, 1], strides = [1, 1]} : vector<8x36xf32> to vector<8x1xf32>
    %401 = vector.extract_strided_slice %381 {offsets = [3, 0], sizes = [1, 256], strides = [1, 1]} : vector<4x256xf32> to vector<1x256xf32>
    %402 = vector.broadcast %400 : vector<8x1xf32> to vector<8x256xf32>
    %403 = vector.broadcast %401 : vector<1x256xf32> to vector<8x256xf32>
    %404 = arith.mulf %402, %403 : vector<8x256xf32>
    %405 = arith.addf %399, %404 : vector<8x256xf32>
    %406 = vector.extract_strided_slice %265 {offsets = [0, 18], sizes = [4, 256], strides = [1, 1]} : vector<4x384xf32> to vector<4x256xf32>
    %407 = vector.extract_strided_slice %1 {offsets = [5, 0], sizes = [1, 256], strides = [1, 1]} : vector<9x256xf32> to vector<1x256xf32>
    %408 = vector.broadcast %407 : vector<1x256xf32> to vector<4x256xf32>
    %409 = arith.mulf %406, %408 : vector<4x256xf32>
    %410 = vector.extract_strided_slice %0 {offsets = [0, 20], sizes = [8, 1], strides = [1, 1]} : vector<8x36xf32> to vector<8x1xf32>
    %411 = vector.extract_strided_slice %409 {offsets = [0, 0], sizes = [1, 256], strides = [1, 1]} : vector<4x256xf32> to vector<1x256xf32>
    %412 = vector.broadcast %410 : vector<8x1xf32> to vector<8x256xf32>
    %413 = vector.broadcast %411 : vector<1x256xf32> to vector<8x256xf32>
    %414 = arith.mulf %412, %413 : vector<8x256xf32>
    %415 = arith.addf %405, %414 : vector<8x256xf32>
    %416 = vector.extract_strided_slice %0 {offsets = [0, 21], sizes = [8, 1], strides = [1, 1]} : vector<8x36xf32> to vector<8x1xf32>
    %417 = vector.extract_strided_slice %409 {offsets = [1, 0], sizes = [1, 256], strides = [1, 1]} : vector<4x256xf32> to vector<1x256xf32>
    %418 = vector.broadcast %416 : vector<8x1xf32> to vector<8x256xf32>
    %419 = vector.broadcast %417 : vector<1x256xf32> to vector<8x256xf32>
    %420 = arith.mulf %418, %419 : vector<8x256xf32>
    %421 = arith.addf %415, %420 : vector<8x256xf32>
    %422 = vector.extract_strided_slice %0 {offsets = [0, 22], sizes = [8, 1], strides = [1, 1]} : vector<8x36xf32> to vector<8x1xf32>
    %423 = vector.extract_strided_slice %409 {offsets = [2, 0], sizes = [1, 256], strides = [1, 1]} : vector<4x256xf32> to vector<1x256xf32>
    %424 = vector.broadcast %422 : vector<8x1xf32> to vector<8x256xf32>
    %425 = vector.broadcast %423 : vector<1x256xf32> to vector<8x256xf32>
    %426 = arith.mulf %424, %425 : vector<8x256xf32>
    %427 = arith.addf %421, %426 : vector<8x256xf32>
    %428 = vector.extract_strided_slice %0 {offsets = [0, 23], sizes = [8, 1], strides = [1, 1]} : vector<8x36xf32> to vector<8x1xf32>
    %429 = vector.extract_strided_slice %409 {offsets = [3, 0], sizes = [1, 256], strides = [1, 1]} : vector<4x256xf32> to vector<1x256xf32>
    %430 = vector.broadcast %428 : vector<8x1xf32> to vector<8x256xf32>
    %431 = vector.broadcast %429 : vector<1x256xf32> to vector<8x256xf32>
    %432 = arith.mulf %430, %431 : vector<8x256xf32>
    %433 = arith.addf %427, %432 : vector<8x256xf32>
    %434 = vector.extract_strided_slice %265 {offsets = [0, 32], sizes = [4, 256], strides = [1, 1]} : vector<4x384xf32> to vector<4x256xf32>
    %435 = vector.extract_strided_slice %1 {offsets = [6, 0], sizes = [1, 256], strides = [1, 1]} : vector<9x256xf32> to vector<1x256xf32>
    %436 = vector.broadcast %435 : vector<1x256xf32> to vector<4x256xf32>
    %437 = arith.mulf %434, %436 : vector<4x256xf32>
    %438 = vector.extract_strided_slice %0 {offsets = [0, 24], sizes = [8, 1], strides = [1, 1]} : vector<8x36xf32> to vector<8x1xf32>
    %439 = vector.extract_strided_slice %437 {offsets = [0, 0], sizes = [1, 256], strides = [1, 1]} : vector<4x256xf32> to vector<1x256xf32>
    %440 = vector.broadcast %438 : vector<8x1xf32> to vector<8x256xf32>
    %441 = vector.broadcast %439 : vector<1x256xf32> to vector<8x256xf32>
    %442 = arith.mulf %440, %441 : vector<8x256xf32>
    %443 = arith.addf %433, %442 : vector<8x256xf32>
    %444 = vector.extract_strided_slice %0 {offsets = [0, 25], sizes = [8, 1], strides = [1, 1]} : vector<8x36xf32> to vector<8x1xf32>
    %445 = vector.extract_strided_slice %437 {offsets = [1, 0], sizes = [1, 256], strides = [1, 1]} : vector<4x256xf32> to vector<1x256xf32>
    %446 = vector.broadcast %444 : vector<8x1xf32> to vector<8x256xf32>
    %447 = vector.broadcast %445 : vector<1x256xf32> to vector<8x256xf32>
    %448 = arith.mulf %446, %447 : vector<8x256xf32>
    %449 = arith.addf %443, %448 : vector<8x256xf32>
    %450 = vector.extract_strided_slice %0 {offsets = [0, 26], sizes = [8, 1], strides = [1, 1]} : vector<8x36xf32> to vector<8x1xf32>
    %451 = vector.extract_strided_slice %437 {offsets = [2, 0], sizes = [1, 256], strides = [1, 1]} : vector<4x256xf32> to vector<1x256xf32>
    %452 = vector.broadcast %450 : vector<8x1xf32> to vector<8x256xf32>
    %453 = vector.broadcast %451 : vector<1x256xf32> to vector<8x256xf32>
    %454 = arith.mulf %452, %453 : vector<8x256xf32>
    %455 = arith.addf %449, %454 : vector<8x256xf32>
    %456 = vector.extract_strided_slice %0 {offsets = [0, 27], sizes = [8, 1], strides = [1, 1]} : vector<8x36xf32> to vector<8x1xf32>
    %457 = vector.extract_strided_slice %437 {offsets = [3, 0], sizes = [1, 256], strides = [1, 1]} : vector<4x256xf32> to vector<1x256xf32>
    %458 = vector.broadcast %456 : vector<8x1xf32> to vector<8x256xf32>
    %459 = vector.broadcast %457 : vector<1x256xf32> to vector<8x256xf32>
    %460 = arith.mulf %458, %459 : vector<8x256xf32>
    %461 = arith.addf %455, %460 : vector<8x256xf32>
    %462 = vector.extract_strided_slice %265 {offsets = [0, 33], sizes = [4, 256], strides = [1, 1]} : vector<4x384xf32> to vector<4x256xf32>
    %463 = vector.extract_strided_slice %1 {offsets = [7, 0], sizes = [1, 256], strides = [1, 1]} : vector<9x256xf32> to vector<1x256xf32>
    %464 = vector.broadcast %463 : vector<1x256xf32> to vector<4x256xf32>
    %465 = arith.mulf %462, %464 : vector<4x256xf32>
    %466 = vector.extract_strided_slice %0 {offsets = [0, 28], sizes = [8, 1], strides = [1, 1]} : vector<8x36xf32> to vector<8x1xf32>
    %467 = vector.extract_strided_slice %465 {offsets = [0, 0], sizes = [1, 256], strides = [1, 1]} : vector<4x256xf32> to vector<1x256xf32>
    %468 = vector.broadcast %466 : vector<8x1xf32> to vector<8x256xf32>
    %469 = vector.broadcast %467 : vector<1x256xf32> to vector<8x256xf32>
    %470 = arith.mulf %468, %469 : vector<8x256xf32>
    %471 = arith.addf %461, %470 : vector<8x256xf32>
    %472 = vector.extract_strided_slice %0 {offsets = [0, 29], sizes = [8, 1], strides = [1, 1]} : vector<8x36xf32> to vector<8x1xf32>
    %473 = vector.extract_strided_slice %465 {offsets = [1, 0], sizes = [1, 256], strides = [1, 1]} : vector<4x256xf32> to vector<1x256xf32>
    %474 = vector.broadcast %472 : vector<8x1xf32> to vector<8x256xf32>
    %475 = vector.broadcast %473 : vector<1x256xf32> to vector<8x256xf32>
    %476 = arith.mulf %474, %475 : vector<8x256xf32>
    %477 = arith.addf %471, %476 : vector<8x256xf32>
    %478 = vector.extract_strided_slice %0 {offsets = [0, 30], sizes = [8, 1], strides = [1, 1]} : vector<8x36xf32> to vector<8x1xf32>
    %479 = vector.extract_strided_slice %465 {offsets = [2, 0], sizes = [1, 256], strides = [1, 1]} : vector<4x256xf32> to vector<1x256xf32>
    %480 = vector.broadcast %478 : vector<8x1xf32> to vector<8x256xf32>
    %481 = vector.broadcast %479 : vector<1x256xf32> to vector<8x256xf32>
    %482 = arith.mulf %480, %481 : vector<8x256xf32>
    %483 = arith.addf %477, %482 : vector<8x256xf32>
    %484 = vector.extract_strided_slice %0 {offsets = [0, 31], sizes = [8, 1], strides = [1, 1]} : vector<8x36xf32> to vector<8x1xf32>
    %485 = vector.extract_strided_slice %465 {offsets = [3, 0], sizes = [1, 256], strides = [1, 1]} : vector<4x256xf32> to vector<1x256xf32>
    %486 = vector.broadcast %484 : vector<8x1xf32> to vector<8x256xf32>
    %487 = vector.broadcast %485 : vector<1x256xf32> to vector<8x256xf32>
    %488 = arith.mulf %486, %487 : vector<8x256xf32>
    %489 = arith.addf %483, %488 : vector<8x256xf32>
    %490 = vector.extract_strided_slice %265 {offsets = [0, 34], sizes = [4, 256], strides = [1, 1]} : vector<4x384xf32> to vector<4x256xf32>
    %491 = vector.extract_strided_slice %1 {offsets = [8, 0], sizes = [1, 256], strides = [1, 1]} : vector<9x256xf32> to vector<1x256xf32>
    %492 = vector.broadcast %491 : vector<1x256xf32> to vector<4x256xf32>
    %493 = arith.mulf %490, %492 : vector<4x256xf32>
    %494 = vector.extract_strided_slice %0 {offsets = [0, 32], sizes = [8, 1], strides = [1, 1]} : vector<8x36xf32> to vector<8x1xf32>
    %495 = vector.extract_strided_slice %493 {offsets = [0, 0], sizes = [1, 256], strides = [1, 1]} : vector<4x256xf32> to vector<1x256xf32>
    %496 = vector.broadcast %494 : vector<8x1xf32> to vector<8x256xf32>
    %497 = vector.broadcast %495 : vector<1x256xf32> to vector<8x256xf32>
    %498 = arith.mulf %496, %497 : vector<8x256xf32>
    %499 = arith.addf %489, %498 : vector<8x256xf32>
    %500 = vector.extract_strided_slice %0 {offsets = [0, 33], sizes = [8, 1], strides = [1, 1]} : vector<8x36xf32> to vector<8x1xf32>
    %501 = vector.extract_strided_slice %493 {offsets = [1, 0], sizes = [1, 256], strides = [1, 1]} : vector<4x256xf32> to vector<1x256xf32>
    %502 = vector.broadcast %500 : vector<8x1xf32> to vector<8x256xf32>
    %503 = vector.broadcast %501 : vector<1x256xf32> to vector<8x256xf32>
    %504 = arith.mulf %502, %503 : vector<8x256xf32>
    %505 = arith.addf %499, %504 : vector<8x256xf32>
    %506 = vector.extract_strided_slice %0 {offsets = [0, 34], sizes = [8, 1], strides = [1, 1]} : vector<8x36xf32> to vector<8x1xf32>
    %507 = vector.extract_strided_slice %493 {offsets = [2, 0], sizes = [1, 256], strides = [1, 1]} : vector<4x256xf32> to vector<1x256xf32>
    %508 = vector.broadcast %506 : vector<8x1xf32> to vector<8x256xf32>
    %509 = vector.broadcast %507 : vector<1x256xf32> to vector<8x256xf32>
    %510 = arith.mulf %508, %509 : vector<8x256xf32>
    %511 = arith.addf %505, %510 : vector<8x256xf32>
    %512 = vector.extract_strided_slice %0 {offsets = [0, 35], sizes = [8, 1], strides = [1, 1]} : vector<8x36xf32> to vector<8x1xf32>
    %513 = vector.extract_strided_slice %493 {offsets = [3, 0], sizes = [1, 256], strides = [1, 1]} : vector<4x256xf32> to vector<1x256xf32>
    %514 = vector.broadcast %512 : vector<8x1xf32> to vector<8x256xf32>
    %515 = vector.broadcast %513 : vector<1x256xf32> to vector<8x256xf32>
    %516 = arith.mulf %514, %515 : vector<8x256xf32>
    %517 = arith.addf %511, %516 : vector<8x256xf32>
    %cst_13 = arith.constant 0.000000e+00 : f32
    %518 = vector.broadcast %cst_13 : f32 to vector<8x256xf32>
    %519 = arith.maximumf %517, %518 : vector<8x256xf32>
    %c1_14 = arith.constant 1 : index
    %c0_15 = arith.constant 0 : index
    %c0_16 = arith.constant 0 : index
    %520 = vector.load %arg5[%c1_14, %c0_15, %c0_16] : memref<2x8x256xf32, #tpu.memory_space<vmem>>, vector<1x8x256xf32>
    %521 = vector.shape_cast %520 : vector<1x8x256xf32> to vector<8x256xf32>
    %522 = vector.shape_cast %519 : vector<8x256xf32> to vector<1x8x256xf32>
    tpu.vector_store %arg5[%c1_14, %c0_15, %c0_16], %522 {strides = array<i32>} : memref<2x8x256xf32, #tpu.memory_space<vmem>>, vector<1x8x256xf32>,
    return
  }
  func.func @transform_0(%arg0: i32) -> (i32, i32, i32) {
    %c0_i32 = arith.constant 0 : i32
    %c0_i32_0 = arith.constant 0 : i32
    %c0_i32_1 = arith.constant 0 : i32
    return %arg0, %c0_i32, %c0_i32_0 : i32, i32, i32
  }
  func.func @transform_1(%arg0: i32) -> (i32, i32) {
    %c0_i32 = arith.constant 0 : i32
    %c0_i32_0 = arith.constant 0 : i32
    %c0_i32_1 = arith.constant 0 : i32
    return %c0_i32, %c0_i32_0 : i32, i32
  }
  func.func @transform_2(%arg0: i32) -> (i32, i32) {
    %c0_i32 = arith.constant 0 : i32
    %c0_i32_0 = arith.constant 0 : i32
    %c0_i32_1 = arith.constant 0 : i32
    return %c0_i32, %c0_i32_0 : i32, i32
  }
  func.func @transform_3(%arg0: i32) -> (i32, i32) {
    %c0_i32 = arith.constant 0 : i32
    %c0_i32_0 = arith.constant 0 : i32
    %c0_i32_1 = arith.constant 0 : i32
    return %c0_i32, %c0_i32_0 : i32, i32
  }
  func.func @transform_4(%arg0: i32) -> (i32, i32, i32) {
    %c0_i32 = arith.constant 0 : i32
    %c0_i32_0 = arith.constant 0 : i32
    %c0_i32_1 = arith.constant 0 : i32
    return %arg0, %c0_i32, %c0_i32_0 : i32, i32, i32
  }
}

</mosaic_0001>

<llo_original>
// kernel: tpu_custom_call.1
$region0: #{tpu_custom_call.1}
  #allocation0 [shape = 'u32[]', space=smem, size = 0x4, offset = 0x4, fixed_abs, tag = 'smem constant byte address 0x4 - core index']
  #allocation1 [shape = 'u32[144,128]{1,0:T(1,128)}', space=vmem, size = 0x12000, scoped, tag = 'internal scratch']
  %s0 = inlined_call_operand.hbm [shape: f32[2,4,384], index: 0, kind: input, shape index: {}]
  %s1 = inlined_call_operand.vmem [shape: f32[8,36], index: 1, kind: input, shape index: {}]
  %s2 = inlined_call_operand.vmem [shape: f32[8,1], index: 2, kind: input, shape index: {}]
  %s3 = inlined_call_operand.hbm [shape: f32[9,256], index: 3, kind: input, shape index: {}]
  %s4 = inlined_call_operand.hbm [shape: f32[2,8,256], index: 4, kind: output, shape index: {}]
  %s5 = sld [smem:[#allocation0]]
  $region34: #{tpu_custom_call.1} parent=0
    _
  %s7 = ssub.s32 1, %s5
  %s8 = scalar_select 0, %s7, %s5
  $region1: #{tpu_custom_call.1} parent=0
    #allocation2 [shape = 'u8[12288]{0}', space=vmem, size = 0x3000, scoped, tag = 'input window, operand 0, single buffered']
    #allocation3 [shape = 's32[1]{0}', space=sflag, size = 0x4, scoped, tag = 'scoped memory for tpu_custom_call.1']
    #allocation4 [shape = 's32[1]{0}', space=sflag, size = 0x4, scoped, tag = 'scoped memory for tpu_custom_call.1']
    #allocation5 [shape = 'u8[16384]{0}', space=vmem, size = 0x4000, scoped, tag = 'input window, operand 3, single buffered']
    #allocation6 [shape = 's32[1]{0}', space=sflag, size = 0x4, scoped, tag = 'scoped memory for tpu_custom_call.1']
    #allocation7 [shape = 'u8[16384]{0}', space=vmem, size = 0x4000, scoped, tag = 'output window, operand 0, single buffered']
    %9 = vsyncpa [#allocation3], 0
    %10 = vsyncpa [#allocation6], 0
    %11 = vsyncpa [#allocation4], 0
    // Predicated region
    $region2: #{tpu_custom_call.1} parent=1 // pred_check
      _
    $region3: #{tpu_custom_call.1} parent=1 // pred_check_branch
      %13 = sbr.rel (0) target = $region5
    $region4: #{tpu_custom_call.1} parent=1 // pred_region
      %s15 = ssub.s32 384, 384
      %16 = vsyncadd [#allocation3], %s15
      %s17 = sshll.u32 [#allocation2], 4
      %s18 = int_to_ptr.vmem [resolvable:$true] %s17
      %23 = dma.hbm_to_vmem [thread:$0]  %s0, 384, %s18, [#allocation3], 192, 192, 12
    $region5: #{tpu_custom_call.1} parent=1 // pred_fallthru
      _
    // Predicated region
    $region6: #{tpu_custom_call.1} parent=1 // pred_check
      _
    $region7: #{tpu_custom_call.1} parent=1 // pred_check_branch
      %25 = sbr.rel (0) target = $region9
    $region8: #{tpu_custom_call.1} parent=1 // pred_region
      _
    $region9: #{tpu_custom_call.1} parent=1 // pred_fallthru
      _
    // Predicated region
    $region10: #{tpu_custom_call.1} parent=1 // pred_check
      _
    $region11: #{tpu_custom_call.1} parent=1 // pred_check_branch
      %27 = sbr.rel (0) target = $region13
    $region12: #{tpu_custom_call.1} parent=1 // pred_region
      _
    $region13: #{tpu_custom_call.1} parent=1 // pred_fallthru
      _
    // Predicated region
    $region14: #{tpu_custom_call.1} parent=1 // pred_check
      _
    $region15: #{tpu_custom_call.1} parent=1 // pred_check_branch
      %29 = sbr.rel (0) target = $region17
    $region16: #{tpu_custom_call.1} parent=1 // pred_region
      %s31 = ssub.s32 512, 512
      %32 = vsyncadd [#allocation6], %s31
      %s33 = sshll.u32 [#allocation5], 4
      %s34 = int_to_ptr.vmem [resolvable:$true] %s33
      %39 = dma.hbm_to_vmem [thread:$0]  %s3, 512, %s34, [#allocation6], 256, 256, 16
    $region17: #{tpu_custom_call.1} parent=1 // pred_fallthru
      _
    // Predicated region
    $region18: #{tpu_custom_call.1} parent=1 // pred_check
      _
    $region19: #{tpu_custom_call.1} parent=1 // pred_check_branch
      %41 = sbr.rel (0) target = $region21
    $region20: #{tpu_custom_call.1} parent=1 // pred_region
      %42 = dma.done [#allocation3], 384
    $region21: #{tpu_custom_call.1} parent=1 // pred_fallthru
      _
    // Predicated region
    $region22: #{tpu_custom_call.1} parent=1 // pred_check
      _
    $region23: #{tpu_custom_call.1} parent=1 // pred_check_branch
      %44 = sbr.rel (0) target = $region25
    $region24: #{tpu_custom_call.1} parent=1 // pred_region
      %45 = dma.done [#allocation6], 512
    $region25: #{tpu_custom_call.1} parent=1 // pred_fallthru
      _
    %v46 = vld [vmem:[%s1] sm:$0xff]
    %v47 = vld [vmem:[#allocation5] sm:$0xff]
    %v48 = vld [vmem:[#allocation5 + $0x8] sm:$0xff]
    %v49 = vld [vmem:[#allocation5 + $0x10] sm:$0x1]
    %v50 = vld [vmem:[#allocation5 + $0x18] sm:$0x1]
    %v51 = vld [vmem:[%s2] sm:$0xff]
    %53 = vset.pattern.permute.xlu0 0
    %54 = vperm.xlu0 %53, %v51
    %v55 = vpop.permute.xlu0 %54
    %v57 = vld [vmem:[#allocation2] sm:$0xff]
    %v58 = vld [vmem:[#allocation2 + $0x8] sm:$0xf]
    %v59 = vlaneseq
    %v60 = vshrl.u32 %v59, 7
    %v61 = vsub.s32 0, %v60
    %v62 = vrot.slane %v47, %v61
    %v63 = vlaneseq
    %v64 = vshrl.u32 %v63, 7
    %v65 = vsub.s32 0, %v64
    %v66 = vrot.slane %v48, %v65
    %v69 = vcombine.low %v62, %v66
    %v71 = vmul.f32 %v57, %v69
    %73 = vset.pattern.permute.xlu0 0
    %74 = vperm.xlu0 %73, %v46
    %v75 = vpop.permute.xlu0 %74
    %v78 = vlaneseq
    %v79 = vshrl.u32 %v78, 7
    %v80 = vsub.s32 0, %v79
    %v81 = vrot.slane %v71, %v80
    %v82 = vlaneseq
    %v83 = vshrl.u32 %v82, 7
    %v84 = vsub.s32 4, %v83
    %v85 = vrot.slane %v71, %v84
    %v88 = vlaneseq
    %v89 = vshrl.u32 %v88, 7
    %v90 = vsub.s32 0, %v89
    %v91 = vrot.slane %v81, %v90
    %v92 = vlaneseq
    %v93 = vshrl.u32 %v92, 7
    %v94 = vsub.s32 0, %v93
    %v95 = vrot.slane %v85, %v94
    %v96 = vmul.f32 %v75, %v91
    %v97 = vmul.f32 %v75, %v95
    %v98 = vadd.f32 %v55, %v96
    %v99 = vadd.f32 %v55, %v97
    %100 = vset.pattern.permute.xlu0 1
    %101 = vperm.xlu0 %100, %v46
    %v102 = vpop.permute.xlu0 %101
    %v104 = vlaneseq
    %v105 = vshrl.u32 %v104, 7
    %v106 = vsub.s32 1, %v105
    %v107 = vrot.slane %v71, %v106
    %v108 = vlaneseq
    %v109 = vshrl.u32 %v108, 7
    %v110 = vsub.s32 5, %v109
    %v111 = vrot.slane %v71, %v110
    %v114 = vlaneseq
    %v115 = vshrl.u32 %v114, 7
    %v116 = vsub.s32 1, %v115
    %v117 = vrot.slane %v107, %v116
    %v118 = vlaneseq
    %v119 = vshrl.u32 %v118, 7
    %v120 = vsub.s32 1, %v119
    %v121 = vrot.slane %v111, %v120
    %v122 = vmul.f32 %v102, %v117
    %v123 = vmul.f32 %v102, %v121
    %v124 = vadd.f32 %v98, %v122
    %v125 = vadd.f32 %v99, %v123
    %126 = vset.pattern.permute.xlu0 2
    %127 = vperm.xlu0 %126, %v46
    %v128 = vpop.permute.xlu0 %127
    %v130 = vlaneseq
    %v131 = vshrl.u32 %v130, 7
    %v132 = vsub.s32 2, %v131
    %v133 = vrot.slane %v71, %v132
    %v134 = vlaneseq
    %v135 = vshrl.u32 %v134, 7
    %v136 = vsub.s32 6, %v135
    %v137 = vrot.slane %v71, %v136
    %v140 = vlaneseq
    %v141 = vshrl.u32 %v140, 7
    %v142 = vsub.s32 2, %v141
    %v143 = vrot.slane %v133, %v142
    %v144 = vlaneseq
    %v145 = vshrl.u32 %v144, 7
    %v146 = vsub.s32 2, %v145
    %v147 = vrot.slane %v137, %v146
    %v148 = vmul.f32 %v128, %v143
    %v149 = vmul.f32 %v128, %v147
    %v150 = vadd.f32 %v124, %v148
    %v151 = vadd.f32 %v125, %v149
    %152 = vset.pattern.permute.xlu0 3
    %153 = vperm.xlu0 %152, %v46
    %v154 = vpop.permute.xlu0 %153
    %v156 = vlaneseq
    %v157 = vshrl.u32 %v156, 7
    %v158 = vsub.s32 3, %v157
    %v159 = vrot.slane %v71, %v158
    %v160 = vlaneseq
    %v161 = vshrl.u32 %v160, 7
    %v162 = vsub.s32 7, %v161
    %v163 = vrot.slane %v71, %v162
    %v166 = vlaneseq
    %v167 = vshrl.u32 %v166, 7
    %v168 = vsub.s32 3, %v167
    %v169 = vrot.slane %v159, %v168
    %v170 = vlaneseq
    %v171 = vshrl.u32 %v170, 7
    %v172 = vsub.s32 3, %v171
    %v173 = vrot.slane %v163, %v172
    %v174 = vmul.f32 %v154, %v169
    %v175 = vmul.f32 %v154, %v173
    %v176 = vadd.f32 %v150, %v174
    %v177 = vadd.f32 %v151, %v175
    %v178 = vlaneseq
    %v179 = vshrl.u32 %v178, 7
    %v180 = vsub.s32 1, %v179
    %v181 = vrot.slane %v47, %v180
    %v182 = vlaneseq
    %v183 = vshrl.u32 %v182, 7
    %v184 = vsub.s32 1, %v183
    %v185 = vrot.slane %v48, %v184
    %v188 = vcombine.low %v181, %v185
    %189 = vrot.lane.b32.xlu0 %v188, 1
    %v190 = vpop.permute.xlu0 %189
    %v191 = vrot.slane %v190, 4
    %vm192 = vcmask 7168
    %v193 = vsel %vm192, %v191, %v190
    %v196 = vmul.f32 %v57, %v193
    %v197 = vmul.f32 %v58, %v191
    %198 = vset.pattern.permute.xlu0 4
    %199 = vperm.xlu0 %198, %v46
    %v200 = vpop.permute.xlu0 %199
    %v204 = vlaneseq
    %v205 = vshrl.u32 %v204, 7
    %v206 = vsub.s32 0, %v205
    %v207 = vrot.slane %v196, %v206
    %v208 = vlaneseq
    %v209 = vshrl.u32 %v208, 7
    %v210 = vsub.s32 4, %v209
    %v211 = vrot.slane %v196, %v210
    %v212 = vlaneseq
    %v213 = vshrl.u32 %v212, 7
    %v214 = vsub.s32 0, %v213
    %v215 = vrot.slane %v197, %v214
    %v219 = vlaneseq
    %v220 = vshrl.u32 %v219, 7
    %v221 = vsub.s32 0, %v220
    %v222 = vrot.slane %v207, %v221
    %v223 = vlaneseq
    %v224 = vshrl.u32 %v223, 7
    %v225 = vsub.s32 0, %v224
    %v226 = vrot.slane %v211, %v225
    %v227 = vlaneseq
    %v228 = vshrl.u32 %v227, 7
    %v229 = vsub.s32 0, %v228
    %v230 = vrot.slane %v215, %v229
    %v231 = vmul.f32 %v200, %v222
    %v232 = vmul.f32 %v200, %v226
    %v233 = vmul.f32 %v200, %v230
    %237 = vrot.lane.b32.xlu0 %v231, 127
    %v238 = vpop.permute.xlu0 %237
    %239 = vrot.lane.b32.xlu0 %v232, 127
    %v240 = vpop.permute.xlu0 %239
    %241 = vrot.lane.b32.xlu0 %v233, 127
    %v242 = vpop.permute.xlu0 %241
    %vm243 = vcmask 1039360
    %v244 = vsel %vm243, %v238, %v240
    %v245 = vsel %vm243, %v240, %v242
    %v248 = vadd.f32 %v176, %v244
    %v249 = vadd.f32 %v177, %v245
    %250 = vset.pattern.permute.xlu0 5
    %251 = vperm.xlu0 %250, %v46
    %v252 = vpop.permute.xlu0 %251
    %v254 = vlaneseq
    %v255 = vshrl.u32 %v254, 7
    %v256 = vsub.s32 1, %v255
    %v257 = vrot.slane %v196, %v256
    %v258 = vlaneseq
    %v259 = vshrl.u32 %v258, 7
    %v260 = vsub.s32 5, %v259
    %v261 = vrot.slane %v196, %v260
    %v262 = vlaneseq
    %v263 = vshrl.u32 %v262, 7
    %v264 = vsub.s32 1, %v263
    %v265 = vrot.slane %v197, %v264
    %v269 = vlaneseq
    %v270 = vshrl.u32 %v269, 7
    %v271 = vsub.s32 1, %v270
    %v272 = vrot.slane %v257, %v271
    %v273 = vlaneseq
    %v274 = vshrl.u32 %v273, 7
    %v275 = vsub.s32 1, %v274
    %v276 = vrot.slane %v261, %v275
    %v277 = vlaneseq
    %v278 = vshrl.u32 %v277, 7
    %v279 = vsub.s32 1, %v278
    %v280 = vrot.slane %v265, %v279
    %v281 = vmul.f32 %v252, %v272
    %v282 = vmul.f32 %v252, %v276
    %v283 = vmul.f32 %v252, %v280
    %287 = vrot.lane.b32.xlu0 %v281, 127
    %v288 = vpop.permute.xlu0 %287
    %289 = vrot.lane.b32.xlu0 %v282, 127
    %v290 = vpop.permute.xlu0 %289
    %291 = vrot.lane.b32.xlu0 %v283, 127
    %v292 = vpop.permute.xlu0 %291
    %v293 = vsel %vm243, %v288, %v290
    %v294 = vsel %vm243, %v290, %v292
    %v297 = vadd.f32 %v248, %v293
    %v298 = vadd.f32 %v249, %v294
    %299 = vset.pattern.permute.xlu0 6
    %300 = vperm.xlu0 %299, %v46
    %v301 = vpop.permute.xlu0 %300
    %v303 = vlaneseq
    %v304 = vshrl.u32 %v303, 7
    %v305 = vsub.s32 2, %v304
    %v306 = vrot.slane %v196, %v305
    %v307 = vlaneseq
    %v308 = vshrl.u32 %v307, 7
    %v309 = vsub.s32 6, %v308
    %v310 = vrot.slane %v196, %v309
    %v311 = vlaneseq
    %v312 = vshrl.u32 %v311, 7
    %v313 = vsub.s32 2, %v312
    %v314 = vrot.slane %v197, %v313
    %v318 = vlaneseq
    %v319 = vshrl.u32 %v318, 7
    %v320 = vsub.s32 2, %v319
    %v321 = vrot.slane %v306, %v320
    %v322 = vlaneseq
    %v323 = vshrl.u32 %v322, 7
    %v324 = vsub.s32 2, %v323
    %v325 = vrot.slane %v310, %v324
    %v326 = vlaneseq
    %v327 = vshrl.u32 %v326, 7
    %v328 = vsub.s32 2, %v327
    %v329 = vrot.slane %v314, %v328
    %v330 = vmul.f32 %v301, %v321
    %v331 = vmul.f32 %v301, %v325
    %v332 = vmul.f32 %v301, %v329
    %336 = vrot.lane.b32.xlu0 %v330, 127
    %v337 = vpop.permute.xlu0 %336
    %338 = vrot.lane.b32.xlu0 %v331, 127
    %v339 = vpop.permute.xlu0 %338
    %340 = vrot.lane.b32.xlu0 %v332, 127
    %v341 = vpop.permute.xlu0 %340
    %v342 = vsel %vm243, %v337, %v339
    %v343 = vsel %vm243, %v339, %v341
    %v346 = vadd.f32 %v297, %v342
    %v347 = vadd.f32 %v298, %v343
    %348 = vset.pattern.permute.xlu0 7
    %349 = vperm.xlu0 %348, %v46
    %v350 = vpop.permute.xlu0 %349
    %v352 = vlaneseq
    %v353 = vshrl.u32 %v352, 7
    %v354 = vsub.s32 3, %v353
    %v355 = vrot.slane %v196, %v354
    %v356 = vlaneseq
    %v357 = vshrl.u32 %v356, 7
    %v358 = vsub.s32 7, %v357
    %v359 = vrot.slane %v196, %v358
    %v360 = vlaneseq
    %v361 = vshrl.u32 %v360, 7
    %v362 = vsub.s32 3, %v361
    %v363 = vrot.slane %v197, %v362
    %v367 = vlaneseq
    %v368 = vshrl.u32 %v367, 7
    %v369 = vsub.s32 3, %v368
    %v370 = vrot.slane %v355, %v369
    %v371 = vlaneseq
    %v372 = vshrl.u32 %v371, 7
    %v373 = vsub.s32 3, %v372
    %v374 = vrot.slane %v359, %v373
    %v375 = vlaneseq
    %v376 = vshrl.u32 %v375, 7
    %v377 = vsub.s32 3, %v376
    %v378 = vrot.slane %v363, %v377
    %v379 = vmul.f32 %v350, %v370
    %v380 = vmul.f32 %v350, %v374
    %v381 = vmul.f32 %v350, %v378
    %385 = vrot.lane.b32.xlu0 %v379, 127
    %v386 = vpop.permute.xlu0 %385
    %387 = vrot.lane.b32.xlu0 %v380, 127
    %v388 = vpop.permute.xlu0 %387
    %389 = vrot.lane.b32.xlu0 %v381, 127
    %v390 = vpop.permute.xlu0 %389
    %v391 = vsel %vm243, %v386, %v388
    %v392 = vsel %vm243, %v388, %v390
    %v395 = vadd.f32 %v346, %v391
    %v396 = vadd.f32 %v347, %v392
    %v397 = vlaneseq
    %v398 = vshrl.u32 %v397, 7
    %v399 = vsub.s32 2, %v398
    %v400 = vrot.slane %v47, %v399
    %v401 = vlaneseq
    %v402 = vshrl.u32 %v401, 7
    %v403 = vsub.s32 2, %v402
    %v404 = vrot.slane %v48, %v403
    %v407 = vcombine.low %v400, %v404
    %408 = vrot.lane.b32.xlu0 %v407, 2
    %v409 = vpop.permute.xlu0 %408
    %v410 = vrot.slane %v409, 4
    %vm411 = vcmask 15360
    %v412 = vsel %vm411, %v410, %v409
    %v415 = vmul.f32 %v57, %v412
    %v416 = vmul.f32 %v58, %v410
    %417 = vset.pattern.permute.xlu0 8
    %418 = vperm.xlu0 %417, %v46
    %v419 = vpop.permute.xlu0 %418
    %v423 = vlaneseq
    %v424 = vshrl.u32 %v423, 7
    %v425 = vsub.s32 0, %v424
    %v426 = vrot.slane %v415, %v425
    %v427 = vlaneseq
    %v428 = vshrl.u32 %v427, 7
    %v429 = vsub.s32 4, %v428
    %v430 = vrot.slane %v415, %v429
    %v431 = vlaneseq
    %v432 = vshrl.u32 %v431, 7
    %v433 = vsub.s32 0, %v432
    %v434 = vrot.slane %v416, %v433
    %v438 = vlaneseq
    %v439 = vshrl.u32 %v438, 7
    %v440 = vsub.s32 0, %v439
    %v441 = vrot.slane %v426, %v440
    %v442 = vlaneseq
    %v443 = vshrl.u32 %v442, 7
    %v444 = vsub.s32 0, %v443
    %v445 = vrot.slane %v430, %v444
    %v446 = vlaneseq
    %v447 = vshrl.u32 %v446, 7
    %v448 = vsub.s32 0, %v447
    %v449 = vrot.slane %v434, %v448
    %v450 = vmul.f32 %v419, %v441
    %v451 = vmul.f32 %v419, %v445
    %v452 = vmul.f32 %v419, %v449
    %456 = vrot.lane.b32.xlu0 %v450, 126
    %v457 = vpop.permute.xlu0 %456
    %458 = vrot.lane.b32.xlu0 %v451, 126
    %v459 = vpop.permute.xlu0 %458
    %460 = vrot.lane.b32.xlu0 %v452, 126
    %v461 = vpop.permute.xlu0 %460
    %vm462 = vcmask 1031168
    %v463 = vsel %vm462, %v457, %v459
    %v464 = vsel %vm462, %v459, %v461
    %v467 = vadd.f32 %v395, %v463
    %v468 = vadd.f32 %v396, %v464
    %469 = vset.pattern.permute.xlu0 9
    %470 = vperm.xlu0 %469, %v46
    %v471 = vpop.permute.xlu0 %470
    %v473 = vlaneseq
    %v474 = vshrl.u32 %v473, 7
    %v475 = vsub.s32 1, %v474
    %v476 = vrot.slane %v415, %v475
    %v477 = vlaneseq
    %v478 = vshrl.u32 %v477, 7
    %v479 = vsub.s32 5, %v478
    %v480 = vrot.slane %v415, %v479
    %v481 = vlaneseq
    %v482 = vshrl.u32 %v481, 7
    %v483 = vsub.s32 1, %v482
    %v484 = vrot.slane %v416, %v483
    %v488 = vlaneseq
    %v489 = vshrl.u32 %v488, 7
    %v490 = vsub.s32 1, %v489
    %v491 = vrot.slane %v476, %v490
    %v492 = vlaneseq
    %v493 = vshrl.u32 %v492, 7
    %v494 = vsub.s32 1, %v493
    %v495 = vrot.slane %v480, %v494
    %v496 = vlaneseq
    %v497 = vshrl.u32 %v496, 7
    %v498 = vsub.s32 1, %v497
    %v499 = vrot.slane %v484, %v498
    %v500 = vmul.f32 %v471, %v491
    %v501 = vmul.f32 %v471, %v495
    %v502 = vmul.f32 %v471, %v499
    %506 = vrot.lane.b32.xlu0 %v500, 126
    %v507 = vpop.permute.xlu0 %506
    %508 = vrot.lane.b32.xlu0 %v501, 126
    %v509 = vpop.permute.xlu0 %508
    %510 = vrot.lane.b32.xlu0 %v502, 126
    %v511 = vpop.permute.xlu0 %510
    %v512 = vsel %vm462, %v507, %v509
    %v513 = vsel %vm462, %v509, %v511
    %v516 = vadd.f32 %v467, %v512
    %v517 = vadd.f32 %v468, %v513
    %518 = vset.pattern.permute.xlu0 10
    %519 = vperm.xlu0 %518, %v46
    %v520 = vpop.permute.xlu0 %519
    %v522 = vlaneseq
    %v523 = vshrl.u32 %v522, 7
    %v524 = vsub.s32 2, %v523
    %v525 = vrot.slane %v415, %v524
    %v526 = vlaneseq
    %v527 = vshrl.u32 %v526, 7
    %v528 = vsub.s32 6, %v527
    %v529 = vrot.slane %v415, %v528
    %v530 = vlaneseq
    %v531 = vshrl.u32 %v530, 7
    %v532 = vsub.s32 2, %v531
    %v533 = vrot.slane %v416, %v532
    %v537 = vlaneseq
    %v538 = vshrl.u32 %v537, 7
    %v539 = vsub.s32 2, %v538
    %v540 = vrot.slane %v525, %v539
    %v541 = vlaneseq
    %v542 = vshrl.u32 %v541, 7
    %v543 = vsub.s32 2, %v542
    %v544 = vrot.slane %v529, %v543
    %v545 = vlaneseq
    %v546 = vshrl.u32 %v545, 7
    %v547 = vsub.s32 2, %v546
    %v548 = vrot.slane %v533, %v547
    %v549 = vmul.f32 %v520, %v540
    %v550 = vmul.f32 %v520, %v544
    %v551 = vmul.f32 %v520, %v548
    %555 = vrot.lane.b32.xlu0 %v549, 126
    %v556 = vpop.permute.xlu0 %555
    %557 = vrot.lane.b32.xlu0 %v550, 126
    %v558 = vpop.permute.xlu0 %557
    %559 = vrot.lane.b32.xlu0 %v551, 126
    %v560 = vpop.permute.xlu0 %559
    %v561 = vsel %vm462, %v556, %v558
    %v562 = vsel %vm462, %v558, %v560
    %v565 = vadd.f32 %v516, %v561
    %v566 = vadd.f32 %v517, %v562
    %567 = vset.pattern.permute.xlu0 11
    %568 = vperm.xlu0 %567, %v46
    %v569 = vpop.permute.xlu0 %568
    %v571 = vlaneseq
    %v572 = vshrl.u32 %v571, 7
    %v573 = vsub.s32 3, %v572
    %v574 = vrot.slane %v415, %v573
    %v575 = vlaneseq
    %v576 = vshrl.u32 %v575, 7
    %v577 = vsub.s32 7, %v576
    %v578 = vrot.slane %v415, %v577
    %v579 = vlaneseq
    %v580 = vshrl.u32 %v579, 7
    %v581 = vsub.s32 3, %v580
    %v582 = vrot.slane %v416, %v581
    %v586 = vlaneseq
    %v587 = vshrl.u32 %v586, 7
    %v588 = vsub.s32 3, %v587
    %v589 = vrot.slane %v574, %v588
    %v590 = vlaneseq
    %v591 = vshrl.u32 %v590, 7
    %v592 = vsub.s32 3, %v591
    %v593 = vrot.slane %v578, %v592
    %v594 = vlaneseq
    %v595 = vshrl.u32 %v594, 7
    %v596 = vsub.s32 3, %v595
    %v597 = vrot.slane %v582, %v596
    %v598 = vmul.f32 %v569, %v589
    %v599 = vmul.f32 %v569, %v593
    %v600 = vmul.f32 %v569, %v597
    %604 = vrot.lane.b32.xlu0 %v598, 126
    %v605 = vpop.permute.xlu0 %604
    %606 = vrot.lane.b32.xlu0 %v599, 126
    %v607 = vpop.permute.xlu0 %606
    %608 = vrot.lane.b32.xlu0 %v600, 126
    %v609 = vpop.permute.xlu0 %608
    %v610 = vsel %vm462, %v605, %v607
    %v611 = vsel %vm462, %v607, %v609
    %v614 = vadd.f32 %v565, %v610
    %v615 = vadd.f32 %v566, %v611
    %v616 = vlaneseq
    %v617 = vshrl.u32 %v616, 7
    %v618 = vsub.s32 3, %v617
    %v619 = vrot.slane %v47, %v618
    %v620 = vlaneseq
    %v621 = vshrl.u32 %v620, 7
    %v622 = vsub.s32 3, %v621
    %v623 = vrot.slane %v48, %v622
    %v626 = vcombine.low %v619, %v623
    %627 = vrot.lane.b32.xlu0 %v626, 16
    %v628 = vpop.permute.xlu0 %627
    %v629 = vrot.slane %v628, 4
    %vm630 = vcmask 130048
    %v631 = vsel %vm630, %v629, %v628
    %v634 = vmul.f32 %v57, %v631
    %v635 = vmul.f32 %v58, %v629
    %636 = vset.pattern.permute.xlu0 12
    %637 = vperm.xlu0 %636, %v46
    %v638 = vpop.permute.xlu0 %637
    %v642 = vlaneseq
    %v643 = vshrl.u32 %v642, 7
    %v644 = vsub.s32 0, %v643
    %v645 = vrot.slane %v634, %v644
    %v646 = vlaneseq
    %v647 = vshrl.u32 %v646, 7
    %v648 = vsub.s32 4, %v647
    %v649 = vrot.slane %v634, %v648
    %v650 = vlaneseq
    %v651 = vshrl.u32 %v650, 7
    %v652 = vsub.s32 0, %v651
    %v653 = vrot.slane %v635, %v652
    %v657 = vlaneseq
    %v658 = vshrl.u32 %v657, 7
    %v659 = vsub.s32 0, %v658
    %v660 = vrot.slane %v645, %v659
    %v661 = vlaneseq
    %v662 = vshrl.u32 %v661, 7
    %v663 = vsub.s32 0, %v662
    %v664 = vrot.slane %v649, %v663
    %v665 = vlaneseq
    %v666 = vshrl.u32 %v665, 7
    %v667 = vsub.s32 0, %v666
    %v668 = vrot.slane %v653, %v667
    %v669 = vmul.f32 %v638, %v660
    %v670 = vmul.f32 %v638, %v664
    %v671 = vmul.f32 %v638, %v668
    %675 = vrot.lane.b32.xlu0 %v669, 112
    %v676 = vpop.permute.xlu0 %675
    %677 = vrot.lane.b32.xlu0 %v670, 112
    %v678 = vpop.permute.xlu0 %677
    %679 = vrot.lane.b32.xlu0 %v671, 112
    %v680 = vpop.permute.xlu0 %679
    %vm681 = vcmask 916480
    %v682 = vsel %vm681, %v676, %v678
    %v683 = vsel %vm681, %v678, %v680
    %v686 = vadd.f32 %v614, %v682
    %v687 = vadd.f32 %v615, %v683
    %688 = vset.pattern.permute.xlu0 13
    %689 = vperm.xlu0 %688, %v46
    %v690 = vpop.permute.xlu0 %689
    %v692 = vlaneseq
    %v693 = vshrl.u32 %v692, 7
    %v694 = vsub.s32 1, %v693
    %v695 = vrot.slane %v634, %v694
    %v696 = vlaneseq
    %v697 = vshrl.u32 %v696, 7
    %v698 = vsub.s32 5, %v697
    %v699 = vrot.slane %v634, %v698
    %v700 = vlaneseq
    %v701 = vshrl.u32 %v700, 7
    %v702 = vsub.s32 1, %v701
    %v703 = vrot.slane %v635, %v702
    %v707 = vlaneseq
    %v708 = vshrl.u32 %v707, 7
    %v709 = vsub.s32 1, %v708
    %v710 = vrot.slane %v695, %v709
    %v711 = vlaneseq
    %v712 = vshrl.u32 %v711, 7
    %v713 = vsub.s32 1, %v712
    %v714 = vrot.slane %v699, %v713
    %v715 = vlaneseq
    %v716 = vshrl.u32 %v715, 7
    %v717 = vsub.s32 1, %v716
    %v718 = vrot.slane %v703, %v717
    %v719 = vmul.f32 %v690, %v710
    %v720 = vmul.f32 %v690, %v714
    %v721 = vmul.f32 %v690, %v718
    %725 = vrot.lane.b32.xlu0 %v719, 112
    %v726 = vpop.permute.xlu0 %725
    %727 = vrot.lane.b32.xlu0 %v720, 112
    %v728 = vpop.permute.xlu0 %727
    %729 = vrot.lane.b32.xlu0 %v721, 112
    %v730 = vpop.permute.xlu0 %729
    %v731 = vsel %vm681, %v726, %v728
    %v732 = vsel %vm681, %v728, %v730
    %v735 = vadd.f32 %v686, %v731
    %v736 = vadd.f32 %v687, %v732
    %737 = vset.pattern.permute.xlu0 14
    %738 = vperm.xlu0 %737, %v46
    %v739 = vpop.permute.xlu0 %738
    %v741 = vlaneseq
    %v742 = vshrl.u32 %v741, 7
    %v743 = vsub.s32 2, %v742
    %v744 = vrot.slane %v634, %v743
    %v745 = vlaneseq
    %v746 = vshrl.u32 %v745, 7
    %v747 = vsub.s32 6, %v746
    %v748 = vrot.slane %v634, %v747
    %v749 = vlaneseq
    %v750 = vshrl.u32 %v749, 7
    %v751 = vsub.s32 2, %v750
    %v752 = vrot.slane %v635, %v751
    %v756 = vlaneseq
    %v757 = vshrl.u32 %v756, 7
    %v758 = vsub.s32 2, %v757
    %v759 = vrot.slane %v744, %v758
    %v760 = vlaneseq
    %v761 = vshrl.u32 %v760, 7
    %v762 = vsub.s32 2, %v761
    %v763 = vrot.slane %v748, %v762
    %v764 = vlaneseq
    %v765 = vshrl.u32 %v764, 7
    %v766 = vsub.s32 2, %v765
    %v767 = vrot.slane %v752, %v766
    %v768 = vmul.f32 %v739, %v759
    %v769 = vmul.f32 %v739, %v763
    %v770 = vmul.f32 %v739, %v767
    %774 = vrot.lane.b32.xlu0 %v768, 112
    %v775 = vpop.permute.xlu0 %774
    %776 = vrot.lane.b32.xlu0 %v769, 112
    %v777 = vpop.permute.xlu0 %776
    %778 = vrot.lane.b32.xlu0 %v770, 112
    %v779 = vpop.permute.xlu0 %778
    %v780 = vsel %vm681, %v775, %v777
    %v781 = vsel %vm681, %v777, %v779
    %v784 = vadd.f32 %v735, %v780
    %v785 = vadd.f32 %v736, %v781
    %786 = vset.pattern.permute.xlu0 15
    %787 = vperm.xlu0 %786, %v46
    %v788 = vpop.permute.xlu0 %787
    %v790 = vlaneseq
    %v791 = vshrl.u32 %v790, 7
    %v792 = vsub.s32 3, %v791
    %v793 = vrot.slane %v634, %v792
    %v794 = vlaneseq
    %v795 = vshrl.u32 %v794, 7
    %v796 = vsub.s32 7, %v795
    %v797 = vrot.slane %v634, %v796
    %v798 = vlaneseq
    %v799 = vshrl.u32 %v798, 7
    %v800 = vsub.s32 3, %v799
    %v801 = vrot.slane %v635, %v800
    %v805 = vlaneseq
    %v806 = vshrl.u32 %v805, 7
    %v807 = vsub.s32 3, %v806
    %v808 = vrot.slane %v793, %v807
    %v809 = vlaneseq
    %v810 = vshrl.u32 %v809, 7
    %v811 = vsub.s32 3, %v810
    %v812 = vrot.slane %v797, %v811
    %v813 = vlaneseq
    %v814 = vshrl.u32 %v813, 7
    %v815 = vsub.s32 3, %v814
    %v816 = vrot.slane %v801, %v815
    %v817 = vmul.f32 %v788, %v808
    %v818 = vmul.f32 %v788, %v812
    %v819 = vmul.f32 %v788, %v816
    %823 = vrot.lane.b32.xlu0 %v817, 112
    %v824 = vpop.permute.xlu0 %823
    %825 = vrot.lane.b32.xlu0 %v818, 112
    %v826 = vpop.permute.xlu0 %825
    %827 = vrot.lane.b32.xlu0 %v819, 112
    %v828 = vpop.permute.xlu0 %827
    %v829 = vsel %vm681, %v824, %v826
    %v830 = vsel %vm681, %v826, %v828
    %v833 = vadd.f32 %v784, %v829
    %v834 = vadd.f32 %v785, %v830
    %v835 = vlaneseq
    %v836 = vshrl.u32 %v835, 7
    %v837 = vsub.s32 4, %v836
    %v838 = vrot.slane %v47, %v837
    %v839 = vlaneseq
    %v840 = vshrl.u32 %v839, 7
    %v841 = vsub.s32 4, %v840
    %v842 = vrot.slane %v48, %v841
    %v845 = vcombine.low %v838, %v842
    %846 = vrot.lane.b32.xlu0 %v845, 17
    %v847 = vpop.permute.xlu0 %846
    %v848 = vrot.slane %v847, 4
    %vm849 = vcmask 138240
    %v850 = vsel %vm849, %v848, %v847
    %v853 = vmul.f32 %v57, %v850
    %v854 = vmul.f32 %v58, %v848
    %855 = vset.pattern.permute.xlu0 16
    %856 = vperm.xlu0 %855, %v46
    %v857 = vpop.permute.xlu0 %856
    %v861 = vlaneseq
    %v862 = vshrl.u32 %v861, 7
    %v863 = vsub.s32 0, %v862
    %v864 = vrot.slane %v853, %v863
    %v865 = vlaneseq
    %v866 = vshrl.u32 %v865, 7
    %v867 = vsub.s32 4, %v866
    %v868 = vrot.slane %v853, %v867
    %v869 = vlaneseq
    %v870 = vshrl.u32 %v869, 7
    %v871 = vsub.s32 0, %v870
    %v872 = vrot.slane %v854, %v871
    %v876 = vlaneseq
    %v877 = vshrl.u32 %v876, 7
    %v878 = vsub.s32 0, %v877
    %v879 = vrot.slane %v864, %v878
    %v880 = vlaneseq
    %v881 = vshrl.u32 %v880, 7
    %v882 = vsub.s32 0, %v881
    %v883 = vrot.slane %v868, %v882
    %v884 = vlaneseq
    %v885 = vshrl.u32 %v884, 7
    %v886 = vsub.s32 0, %v885
    %v887 = vrot.slane %v872, %v886
    %v888 = vmul.f32 %v857, %v879
    %v889 = vmul.f32 %v857, %v883
    %v890 = vmul.f32 %v857, %v887
    %894 = vrot.lane.b32.xlu0 %v888, 111
    %v895 = vpop.permute.xlu0 %894
    %896 = vrot.lane.b32.xlu0 %v889, 111
    %v897 = vpop.permute.xlu0 %896
    %898 = vrot.lane.b32.xlu0 %v890, 111
    %v899 = vpop.permute.xlu0 %898
    %vm900 = vcmask 908288
    %v901 = vsel %vm900, %v895, %v897
    %v902 = vsel %vm900, %v897, %v899
    %v905 = vadd.f32 %v833, %v901
    %v906 = vadd.f32 %v834, %v902
    %907 = vset.pattern.permute.xlu0 17
    %908 = vperm.xlu0 %907, %v46
    %v909 = vpop.permute.xlu0 %908
    %v911 = vlaneseq
    %v912 = vshrl.u32 %v911, 7
    %v913 = vsub.s32 1, %v912
    %v914 = vrot.slane %v853, %v913
    %v915 = vlaneseq
    %v916 = vshrl.u32 %v915, 7
    %v917 = vsub.s32 5, %v916
    %v918 = vrot.slane %v853, %v917
    %v919 = vlaneseq
    %v920 = vshrl.u32 %v919, 7
    %v921 = vsub.s32 1, %v920
    %v922 = vrot.slane %v854, %v921
    %v926 = vlaneseq
    %v927 = vshrl.u32 %v926, 7
    %v928 = vsub.s32 1, %v927
    %v929 = vrot.slane %v914, %v928
    %v930 = vlaneseq
    %v931 = vshrl.u32 %v930, 7
    %v932 = vsub.s32 1, %v931
    %v933 = vrot.slane %v918, %v932
    %v934 = vlaneseq
    %v935 = vshrl.u32 %v934, 7
    %v936 = vsub.s32 1, %v935
    %v937 = vrot.slane %v922, %v936
    %v938 = vmul.f32 %v909, %v929
    %v939 = vmul.f32 %v909, %v933
    %v940 = vmul.f32 %v909, %v937
    %944 = vrot.lane.b32.xlu0 %v938, 111
    %v945 = vpop.permute.xlu0 %944
    %946 = vrot.lane.b32.xlu0 %v939, 111
    %v947 = vpop.permute.xlu0 %946
    %948 = vrot.lane.b32.xlu0 %v940, 111
    %v949 = vpop.permute.xlu0 %948
    %v950 = vsel %vm900, %v945, %v947
    %v951 = vsel %vm900, %v947, %v949
    %v954 = vadd.f32 %v905, %v950
    %v955 = vadd.f32 %v906, %v951
    %956 = vset.pattern.permute.xlu0 18
    %957 = vperm.xlu0 %956, %v46
    %v958 = vpop.permute.xlu0 %957
    %v960 = vlaneseq
    %v961 = vshrl.u32 %v960, 7
    %v962 = vsub.s32 2, %v961
    %v963 = vrot.slane %v853, %v962
    %v964 = vlaneseq
    %v965 = vshrl.u32 %v964, 7
    %v966 = vsub.s32 6, %v965
    %v967 = vrot.slane %v853, %v966
    %v968 = vlaneseq
    %v969 = vshrl.u32 %v968, 7
    %v970 = vsub.s32 2, %v969
    %v971 = vrot.slane %v854, %v970
    %v975 = vlaneseq
    %v976 = vshrl.u32 %v975, 7
    %v977 = vsub.s32 2, %v976
    %v978 = vrot.slane %v963, %v977
    %v979 = vlaneseq
    %v980 = vshrl.u32 %v979, 7
    %v981 = vsub.s32 2, %v980
    %v982 = vrot.slane %v967, %v981
    %v983 = vlaneseq
    %v984 = vshrl.u32 %v983, 7
    %v985 = vsub.s32 2, %v984
    %v986 = vrot.slane %v971, %v985
    %v987 = vmul.f32 %v958, %v978
    %v988 = vmul.f32 %v958, %v982
    %v989 = vmul.f32 %v958, %v986
    %993 = vrot.lane.b32.xlu0 %v987, 111
    %v994 = vpop.permute.xlu0 %993
    %995 = vrot.lane.b32.xlu0 %v988, 111
    %v996 = vpop.permute.xlu0 %995
    %997 = vrot.lane.b32.xlu0 %v989, 111
    %v998 = vpop.permute.xlu0 %997
    %v999 = vsel %vm900, %v994, %v996
    %v1000 = vsel %vm900, %v996, %v998
    %v1003 = vadd.f32 %v954, %v999
    %v1004 = vadd.f32 %v955, %v1000
    %1005 = vset.pattern.permute.xlu0 19
    %1006 = vperm.xlu0 %1005, %v46
    %v1007 = vpop.permute.xlu0 %1006
    %v1009 = vlaneseq
    %v1010 = vshrl.u32 %v1009, 7
    %v1011 = vsub.s32 3, %v1010
    %v1012 = vrot.slane %v853, %v1011
    %v1013 = vlaneseq
    %v1014 = vshrl.u32 %v1013, 7
    %v1015 = vsub.s32 7, %v1014
    %v1016 = vrot.slane %v853, %v1015
    %v1017 = vlaneseq
    %v1018 = vshrl.u32 %v1017, 7
    %v1019 = vsub.s32 3, %v1018
    %v1020 = vrot.slane %v854, %v1019
    %v1024 = vlaneseq
    %v1025 = vshrl.u32 %v1024, 7
    %v1026 = vsub.s32 3, %v1025
    %v1027 = vrot.slane %v1012, %v1026
    %v1028 = vlaneseq
    %v1029 = vshrl.u32 %v1028, 7
    %v1030 = vsub.s32 3, %v1029
    %v1031 = vrot.slane %v1016, %v1030
    %v1032 = vlaneseq
    %v1033 = vshrl.u32 %v1032, 7
    %v1034 = vsub.s32 3, %v1033
    %v1035 = vrot.slane %v1020, %v1034
    %v1036 = vmul.f32 %v1007, %v1027
    %v1037 = vmul.f32 %v1007, %v1031
    %v1038 = vmul.f32 %v1007, %v1035
    %1042 = vrot.lane.b32.xlu0 %v1036, 111
    %v1043 = vpop.permute.xlu0 %1042
    %1044 = vrot.lane.b32.xlu0 %v1037, 111
    %v1045 = vpop.permute.xlu0 %1044
    %1046 = vrot.lane.b32.xlu0 %v1038, 111
    %v1047 = vpop.permute.xlu0 %1046
    %v1048 = vsel %vm900, %v1043, %v1045
    %v1049 = vsel %vm900, %v1045, %v1047
    %v1052 = vadd.f32 %v1003, %v1048
    %v1053 = vadd.f32 %v1004, %v1049
    %v1054 = vlaneseq
    %v1055 = vshrl.u32 %v1054, 7
    %v1056 = vsub.s32 5, %v1055
    %v1057 = vrot.slane %v47, %v1056
    %v1058 = vlaneseq
    %v1059 = vshrl.u32 %v1058, 7
    %v1060 = vsub.s32 5, %v1059
    %v1061 = vrot.slane %v48, %v1060
    %v1064 = vcombine.low %v1057, %v1061
    %1065 = vrot.lane.b32.xlu0 %v1064, 18
    %v1066 = vpop.permute.xlu0 %1065
    %v1067 = vrot.slane %v1066, 4
    %vm1068 = vcmask 146432
    %v1069 = vsel %vm1068, %v1067, %v1066
    %v1072 = vmul.f32 %v57, %v1069
    %v1073 = vmul.f32 %v58, %v1067
    %1074 = vset.pattern.permute.xlu0 20
    %1075 = vperm.xlu0 %1074, %v46
    %v1076 = vpop.permute.xlu0 %1075
    %v1080 = vlaneseq
    %v1081 = vshrl.u32 %v1080, 7
    %v1082 = vsub.s32 0, %v1081
    %v1083 = vrot.slane %v1072, %v1082
    %v1084 = vlaneseq
    %v1085 = vshrl.u32 %v1084, 7
    %v1086 = vsub.s32 4, %v1085
    %v1087 = vrot.slane %v1072, %v1086
    %v1088 = vlaneseq
    %v1089 = vshrl.u32 %v1088, 7
    %v1090 = vsub.s32 0, %v1089
    %v1091 = vrot.slane %v1073, %v1090
    %v1095 = vlaneseq
    %v1096 = vshrl.u32 %v1095, 7
    %v1097 = vsub.s32 0, %v1096
    %v1098 = vrot.slane %v1083, %v1097
    %v1099 = vlaneseq
    %v1100 = vshrl.u32 %v1099, 7
    %v1101 = vsub.s32 0, %v1100
    %v1102 = vrot.slane %v1087, %v1101
    %v1103 = vlaneseq
    %v1104 = vshrl.u32 %v1103, 7
    %v1105 = vsub.s32 0, %v1104
    %v1106 = vrot.slane %v1091, %v1105
    %v1107 = vmul.f32 %v1076, %v1098
    %v1108 = vmul.f32 %v1076, %v1102
    %v1109 = vmul.f32 %v1076, %v1106
    %1113 = vrot.lane.b32.xlu0 %v1107, 110
    %v1114 = vpop.permute.xlu0 %1113
    %1115 = vrot.lane.b32.xlu0 %v1108, 110
    %v1116 = vpop.permute.xlu0 %1115
    %1117 = vrot.lane.b32.xlu0 %v1109, 110
    %v1118 = vpop.permute.xlu0 %1117
    %vm1119 = vcmask 900096
    %v1120 = vsel %vm1119, %v1114, %v1116
    %v1121 = vsel %vm1119, %v1116, %v1118
    %v1124 = vadd.f32 %v1052, %v1120
    %v1125 = vadd.f32 %v1053, %v1121
    %1126 = vset.pattern.permute.xlu0 21
    %1127 = vperm.xlu0 %1126, %v46
    %v1128 = vpop.permute.xlu0 %1127
    %v1130 = vlaneseq
    %v1131 = vshrl.u32 %v1130, 7
    %v1132 = vsub.s32 1, %v1131
    %v1133 = vrot.slane %v1072, %v1132
    %v1134 = vlaneseq
    %v1135 = vshrl.u32 %v1134, 7
    %v1136 = vsub.s32 5, %v1135
    %v1137 = vrot.slane %v1072, %v1136
    %v1138 = vlaneseq
    %v1139 = vshrl.u32 %v1138, 7
    %v1140 = vsub.s32 1, %v1139
    %v1141 = vrot.slane %v1073, %v1140
    %v1145 = vlaneseq
    %v1146 = vshrl.u32 %v1145, 7
    %v1147 = vsub.s32 1, %v1146
    %v1148 = vrot.slane %v1133, %v1147
    %v1149 = vlaneseq
    %v1150 = vshrl.u32 %v1149, 7
    %v1151 = vsub.s32 1, %v1150
    %v1152 = vrot.slane %v1137, %v1151
    %v1153 = vlaneseq
    %v1154 = vshrl.u32 %v1153, 7
    %v1155 = vsub.s32 1, %v1154
    %v1156 = vrot.slane %v1141, %v1155
    %v1157 = vmul.f32 %v1128, %v1148
    %v1158 = vmul.f32 %v1128, %v1152
    %v1159 = vmul.f32 %v1128, %v1156
    %1163 = vrot.lane.b32.xlu0 %v1157, 110
    %v1164 = vpop.permute.xlu0 %1163
    %1165 = vrot.lane.b32.xlu0 %v1158, 110
    %v1166 = vpop.permute.xlu0 %1165
    %1167 = vrot.lane.b32.xlu0 %v1159, 110
    %v1168 = vpop.permute.xlu0 %1167
    %v1169 = vsel %vm1119, %v1164, %v1166
    %v1170 = vsel %vm1119, %v1166, %v1168
    %v1173 = vadd.f32 %v1124, %v1169
    %v1174 = vadd.f32 %v1125, %v1170
    %1175 = vset.pattern.permute.xlu0 22
    %1176 = vperm.xlu0 %1175, %v46
    %v1177 = vpop.permute.xlu0 %1176
    %v1179 = vlaneseq
    %v1180 = vshrl.u32 %v1179, 7
    %v1181 = vsub.s32 2, %v1180
    %v1182 = vrot.slane %v1072, %v1181
    %v1183 = vlaneseq
    %v1184 = vshrl.u32 %v1183, 7
    %v1185 = vsub.s32 6, %v1184
    %v1186 = vrot.slane %v1072, %v1185
    %v1187 = vlaneseq
    %v1188 = vshrl.u32 %v1187, 7
    %v1189 = vsub.s32 2, %v1188
    %v1190 = vrot.slane %v1073, %v1189
    %v1194 = vlaneseq
    %v1195 = vshrl.u32 %v1194, 7
    %v1196 = vsub.s32 2, %v1195
    %v1197 = vrot.slane %v1182, %v1196
    %v1198 = vlaneseq
    %v1199 = vshrl.u32 %v1198, 7
    %v1200 = vsub.s32 2, %v1199
    %v1201 = vrot.slane %v1186, %v1200
    %v1202 = vlaneseq
    %v1203 = vshrl.u32 %v1202, 7
    %v1204 = vsub.s32 2, %v1203
    %v1205 = vrot.slane %v1190, %v1204
    %v1206 = vmul.f32 %v1177, %v1197
    %v1207 = vmul.f32 %v1177, %v1201
    %v1208 = vmul.f32 %v1177, %v1205
    %1212 = vrot.lane.b32.xlu0 %v1206, 110
    %v1213 = vpop.permute.xlu0 %1212
    %1214 = vrot.lane.b32.xlu0 %v1207, 110
    %v1215 = vpop.permute.xlu0 %1214
    %1216 = vrot.lane.b32.xlu0 %v1208, 110
    %v1217 = vpop.permute.xlu0 %1216
    %v1218 = vsel %vm1119, %v1213, %v1215
    %v1219 = vsel %vm1119, %v1215, %v1217
    %v1222 = vadd.f32 %v1173, %v1218
    %v1223 = vadd.f32 %v1174, %v1219
    %1224 = vset.pattern.permute.xlu0 23
    %1225 = vperm.xlu0 %1224, %v46
    %v1226 = vpop.permute.xlu0 %1225
    %v1228 = vlaneseq
    %v1229 = vshrl.u32 %v1228, 7
    %v1230 = vsub.s32 3, %v1229
    %v1231 = vrot.slane %v1072, %v1230
    %v1232 = vlaneseq
    %v1233 = vshrl.u32 %v1232, 7
    %v1234 = vsub.s32 7, %v1233
    %v1235 = vrot.slane %v1072, %v1234
    %v1236 = vlaneseq
    %v1237 = vshrl.u32 %v1236, 7
    %v1238 = vsub.s32 3, %v1237
    %v1239 = vrot.slane %v1073, %v1238
    %v1243 = vlaneseq
    %v1244 = vshrl.u32 %v1243, 7
    %v1245 = vsub.s32 3, %v1244
    %v1246 = vrot.slane %v1231, %v1245
    %v1247 = vlaneseq
    %v1248 = vshrl.u32 %v1247, 7
    %v1249 = vsub.s32 3, %v1248
    %v1250 = vrot.slane %v1235, %v1249
    %v1251 = vlaneseq
    %v1252 = vshrl.u32 %v1251, 7
    %v1253 = vsub.s32 3, %v1252
    %v1254 = vrot.slane %v1239, %v1253
    %v1255 = vmul.f32 %v1226, %v1246
    %v1256 = vmul.f32 %v1226, %v1250
    %v1257 = vmul.f32 %v1226, %v1254
    %1261 = vrot.lane.b32.xlu0 %v1255, 110
    %v1262 = vpop.permute.xlu0 %1261
    %1263 = vrot.lane.b32.xlu0 %v1256, 110
    %v1264 = vpop.permute.xlu0 %1263
    %1265 = vrot.lane.b32.xlu0 %v1257, 110
    %v1266 = vpop.permute.xlu0 %1265
    %v1267 = vsel %vm1119, %v1262, %v1264
    %v1268 = vsel %vm1119, %v1264, %v1266
    %v1271 = vadd.f32 %v1222, %v1267
    %v1272 = vadd.f32 %v1223, %v1268
    %v1273 = vlaneseq
    %v1274 = vshrl.u32 %v1273, 7
    %v1275 = vsub.s32 6, %v1274
    %v1276 = vrot.slane %v47, %v1275
    %v1277 = vlaneseq
    %v1278 = vshrl.u32 %v1277, 7
    %v1279 = vsub.s32 6, %v1278
    %v1280 = vrot.slane %v48, %v1279
    %v1283 = vcombine.low %v1276, %v1280
    %1284 = vrot.lane.b32.xlu0 %v1283, 32
    %v1285 = vpop.permute.xlu0 %1284
    %v1286 = vrot.slane %v1285, 4
    %vm1287 = vcmask 261120
    %v1288 = vsel %vm1287, %v1286, %v1285
    %v1291 = vmul.f32 %v57, %v1288
    %v1292 = vmul.f32 %v58, %v1286
    %1293 = vset.pattern.permute.xlu0 24
    %1294 = vperm.xlu0 %1293, %v46
    %v1295 = vpop.permute.xlu0 %1294
    %v1299 = vlaneseq
    %v1300 = vshrl.u32 %v1299, 7
    %v1301 = vsub.s32 0, %v1300
    %v1302 = vrot.slane %v1291, %v1301
    %v1303 = vlaneseq
    %v1304 = vshrl.u32 %v1303, 7
    %v1305 = vsub.s32 4, %v1304
    %v1306 = vrot.slane %v1291, %v1305
    %v1307 = vlaneseq
    %v1308 = vshrl.u32 %v1307, 7
    %v1309 = vsub.s32 0, %v1308
    %v1310 = vrot.slane %v1292, %v1309
    %v1314 = vlaneseq
    %v1315 = vshrl.u32 %v1314, 7
    %v1316 = vsub.s32 0, %v1315
    %v1317 = vrot.slane %v1302, %v1316
    %v1318 = vlaneseq
    %v1319 = vshrl.u32 %v1318, 7
    %v1320 = vsub.s32 0, %v1319
    %v1321 = vrot.slane %v1306, %v1320
    %v1322 = vlaneseq
    %v1323 = vshrl.u32 %v1322, 7
    %v1324 = vsub.s32 0, %v1323
    %v1325 = vrot.slane %v1310, %v1324
    %v1326 = vmul.f32 %v1295, %v1317
    %v1327 = vmul.f32 %v1295, %v1321
    %v1328 = vmul.f32 %v1295, %v1325
    %1332 = vrot.lane.b32.xlu0 %v1326, 96
    %v1333 = vpop.permute.xlu0 %1332
    %1334 = vrot.lane.b32.xlu0 %v1327, 96
    %v1335 = vpop.permute.xlu0 %1334
    %1336 = vrot.lane.b32.xlu0 %v1328, 96
    %v1337 = vpop.permute.xlu0 %1336
    %vm1338 = vcmask 785408
    %v1339 = vsel %vm1338, %v1333, %v1335
    %v1340 = vsel %vm1338, %v1335, %v1337
    %v1343 = vadd.f32 %v1271, %v1339
    %v1344 = vadd.f32 %v1272, %v1340
    %1345 = vset.pattern.permute.xlu0 25
    %1346 = vperm.xlu0 %1345, %v46
    %v1347 = vpop.permute.xlu0 %1346
    %v1349 = vlaneseq
    %v1350 = vshrl.u32 %v1349, 7
    %v1351 = vsub.s32 1, %v1350
    %v1352 = vrot.slane %v1291, %v1351
    %v1353 = vlaneseq
    %v1354 = vshrl.u32 %v1353, 7
    %v1355 = vsub.s32 5, %v1354
    %v1356 = vrot.slane %v1291, %v1355
    %v1357 = vlaneseq
    %v1358 = vshrl.u32 %v1357, 7
    %v1359 = vsub.s32 1, %v1358
    %v1360 = vrot.slane %v1292, %v1359
    %v1364 = vlaneseq
    %v1365 = vshrl.u32 %v1364, 7
    %v1366 = vsub.s32 1, %v1365
    %v1367 = vrot.slane %v1352, %v1366
    %v1368 = vlaneseq
    %v1369 = vshrl.u32 %v1368, 7
    %v1370 = vsub.s32 1, %v1369
    %v1371 = vrot.slane %v1356, %v1370
    %v1372 = vlaneseq
    %v1373 = vshrl.u32 %v1372, 7
    %v1374 = vsub.s32 1, %v1373
    %v1375 = vrot.slane %v1360, %v1374
    %v1376 = vmul.f32 %v1347, %v1367
    %v1377 = vmul.f32 %v1347, %v1371
    %v1378 = vmul.f32 %v1347, %v1375
    %1382 = vrot.lane.b32.xlu0 %v1376, 96
    %v1383 = vpop.permute.xlu0 %1382
    %1384 = vrot.lane.b32.xlu0 %v1377, 96
    %v1385 = vpop.permute.xlu0 %1384
    %1386 = vrot.lane.b32.xlu0 %v1378, 96
    %v1387 = vpop.permute.xlu0 %1386
    %v1388 = vsel %vm1338, %v1383, %v1385
    %v1389 = vsel %vm1338, %v1385, %v1387
    %v1392 = vadd.f32 %v1343, %v1388
    %v1393 = vadd.f32 %v1344, %v1389
    %1394 = vset.pattern.permute.xlu0 26
    %1395 = vperm.xlu0 %1394, %v46
    %v1396 = vpop.permute.xlu0 %1395
    %v1398 = vlaneseq
    %v1399 = vshrl.u32 %v1398, 7
    %v1400 = vsub.s32 2, %v1399
    %v1401 = vrot.slane %v1291, %v1400
    %v1402 = vlaneseq
    %v1403 = vshrl.u32 %v1402, 7
    %v1404 = vsub.s32 6, %v1403
    %v1405 = vrot.slane %v1291, %v1404
    %v1406 = vlaneseq
    %v1407 = vshrl.u32 %v1406, 7
    %v1408 = vsub.s32 2, %v1407
    %v1409 = vrot.slane %v1292, %v1408
    %v1413 = vlaneseq
    %v1414 = vshrl.u32 %v1413, 7
    %v1415 = vsub.s32 2, %v1414
    %v1416 = vrot.slane %v1401, %v1415
    %v1417 = vlaneseq
    %v1418 = vshrl.u32 %v1417, 7
    %v1419 = vsub.s32 2, %v1418
    %v1420 = vrot.slane %v1405, %v1419
    %v1421 = vlaneseq
    %v1422 = vshrl.u32 %v1421, 7
    %v1423 = vsub.s32 2, %v1422
    %v1424 = vrot.slane %v1409, %v1423
    %v1425 = vmul.f32 %v1396, %v1416
    %v1426 = vmul.f32 %v1396, %v1420
    %v1427 = vmul.f32 %v1396, %v1424
    %1431 = vrot.lane.b32.xlu0 %v1425, 96
    %v1432 = vpop.permute.xlu0 %1431
    %1433 = vrot.lane.b32.xlu0 %v1426, 96
    %v1434 = vpop.permute.xlu0 %1433
    %1435 = vrot.lane.b32.xlu0 %v1427, 96
    %v1436 = vpop.permute.xlu0 %1435
    %v1437 = vsel %vm1338, %v1432, %v1434
    %v1438 = vsel %vm1338, %v1434, %v1436
    %v1441 = vadd.f32 %v1392, %v1437
    %v1442 = vadd.f32 %v1393, %v1438
    %1443 = vset.pattern.permute.xlu0 27
    %1444 = vperm.xlu0 %1443, %v46
    %v1445 = vpop.permute.xlu0 %1444
    %v1447 = vlaneseq
    %v1448 = vshrl.u32 %v1447, 7
    %v1449 = vsub.s32 3, %v1448
    %v1450 = vrot.slane %v1291, %v1449
    %v1451 = vlaneseq
    %v1452 = vshrl.u32 %v1451, 7
    %v1453 = vsub.s32 7, %v1452
    %v1454 = vrot.slane %v1291, %v1453
    %v1455 = vlaneseq
    %v1456 = vshrl.u32 %v1455, 7
    %v1457 = vsub.s32 3, %v1456
    %v1458 = vrot.slane %v1292, %v1457
    %v1462 = vlaneseq
    %v1463 = vshrl.u32 %v1462, 7
    %v1464 = vsub.s32 3, %v1463
    %v1465 = vrot.slane %v1450, %v1464
    %v1466 = vlaneseq
    %v1467 = vshrl.u32 %v1466, 7
    %v1468 = vsub.s32 3, %v1467
    %v1469 = vrot.slane %v1454, %v1468
    %v1470 = vlaneseq
    %v1471 = vshrl.u32 %v1470, 7
    %v1472 = vsub.s32 3, %v1471
    %v1473 = vrot.slane %v1458, %v1472
    %v1474 = vmul.f32 %v1445, %v1465
    %v1475 = vmul.f32 %v1445, %v1469
    %v1476 = vmul.f32 %v1445, %v1473
    %1480 = vrot.lane.b32.xlu0 %v1474, 96
    %v1481 = vpop.permute.xlu0 %1480
    %1482 = vrot.lane.b32.xlu0 %v1475, 96
    %v1483 = vpop.permute.xlu0 %1482
    %1484 = vrot.lane.b32.xlu0 %v1476, 96
    %v1485 = vpop.permute.xlu0 %1484
    %v1486 = vsel %vm1338, %v1481, %v1483
    %v1487 = vsel %vm1338, %v1483, %v1485
    %v1490 = vadd.f32 %v1441, %v1486
    %v1491 = vadd.f32 %v1442, %v1487
    %v1492 = vlaneseq
    %v1493 = vshrl.u32 %v1492, 7
    %v1494 = vsub.s32 7, %v1493
    %v1495 = vrot.slane %v47, %v1494
    %v1496 = vlaneseq
    %v1497 = vshrl.u32 %v1496, 7
    %v1498 = vsub.s32 7, %v1497
    %v1499 = vrot.slane %v48, %v1498
    %v1502 = vcombine.low %v1495, %v1499
    %1503 = vrot.lane.b32.xlu0 %v1502, 33
    %v1504 = vpop.permute.xlu0 %1503
    %v1505 = vrot.slane %v1504, 4
    %vm1506 = vcmask 269312
    %v1507 = vsel %vm1506, %v1505, %v1504
    %v1510 = vmul.f32 %v57, %v1507
    %v1511 = vmul.f32 %v58, %v1505
    %1512 = vset.pattern.permute.xlu0 28
    %1513 = vperm.xlu0 %1512, %v46
    %v1514 = vpop.permute.xlu0 %1513
    %v1518 = vlaneseq
    %v1519 = vshrl.u32 %v1518, 7
    %v1520 = vsub.s32 0, %v1519
    %v1521 = vrot.slane %v1510, %v1520
    %v1522 = vlaneseq
    %v1523 = vshrl.u32 %v1522, 7
    %v1524 = vsub.s32 4, %v1523
    %v1525 = vrot.slane %v1510, %v1524
    %v1526 = vlaneseq
    %v1527 = vshrl.u32 %v1526, 7
    %v1528 = vsub.s32 0, %v1527
    %v1529 = vrot.slane %v1511, %v1528
    %v1533 = vlaneseq
    %v1534 = vshrl.u32 %v1533, 7
    %v1535 = vsub.s32 0, %v1534
    %v1536 = vrot.slane %v1521, %v1535
    %v1537 = vlaneseq
    %v1538 = vshrl.u32 %v1537, 7
    %v1539 = vsub.s32 0, %v1538
    %v1540 = vrot.slane %v1525, %v1539
    %v1541 = vlaneseq
    %v1542 = vshrl.u32 %v1541, 7
    %v1543 = vsub.s32 0, %v1542
    %v1544 = vrot.slane %v1529, %v1543
    %v1545 = vmul.f32 %v1514, %v1536
    %v1546 = vmul.f32 %v1514, %v1540
    %v1547 = vmul.f32 %v1514, %v1544
    %1551 = vrot.lane.b32.xlu0 %v1545, 95
    %v1552 = vpop.permute.xlu0 %1551
    %1553 = vrot.lane.b32.xlu0 %v1546, 95
    %v1554 = vpop.permute.xlu0 %1553
    %1555 = vrot.lane.b32.xlu0 %v1547, 95
    %v1556 = vpop.permute.xlu0 %1555
    %vm1557 = vcmask 777216
    %v1558 = vsel %vm1557, %v1552, %v1554
    %v1559 = vsel %vm1557, %v1554, %v1556
    %v1562 = vadd.f32 %v1490, %v1558
    %v1563 = vadd.f32 %v1491, %v1559
    %1564 = vset.pattern.permute.xlu0 29
    %1565 = vperm.xlu0 %1564, %v46
    %v1566 = vpop.permute.xlu0 %1565
    %v1568 = vlaneseq
    %v1569 = vshrl.u32 %v1568, 7
    %v1570 = vsub.s32 1, %v1569
    %v1571 = vrot.slane %v1510, %v1570
    %v1572 = vlaneseq
    %v1573 = vshrl.u32 %v1572, 7
    %v1574 = vsub.s32 5, %v1573
    %v1575 = vrot.slane %v1510, %v1574
    %v1576 = vlaneseq
    %v1577 = vshrl.u32 %v1576, 7
    %v1578 = vsub.s32 1, %v1577
    %v1579 = vrot.slane %v1511, %v1578
    %v1583 = vlaneseq
    %v1584 = vshrl.u32 %v1583, 7
    %v1585 = vsub.s32 1, %v1584
    %v1586 = vrot.slane %v1571, %v1585
    %v1587 = vlaneseq
    %v1588 = vshrl.u32 %v1587, 7
    %v1589 = vsub.s32 1, %v1588
    %v1590 = vrot.slane %v1575, %v1589
    %v1591 = vlaneseq
    %v1592 = vshrl.u32 %v1591, 7
    %v1593 = vsub.s32 1, %v1592
    %v1594 = vrot.slane %v1579, %v1593
    %v1595 = vmul.f32 %v1566, %v1586
    %v1596 = vmul.f32 %v1566, %v1590
    %v1597 = vmul.f32 %v1566, %v1594
    %1601 = vrot.lane.b32.xlu0 %v1595, 95
    %v1602 = vpop.permute.xlu0 %1601
    %1603 = vrot.lane.b32.xlu0 %v1596, 95
    %v1604 = vpop.permute.xlu0 %1603
    %1605 = vrot.lane.b32.xlu0 %v1597, 95
    %v1606 = vpop.permute.xlu0 %1605
    %v1607 = vsel %vm1557, %v1602, %v1604
    %v1608 = vsel %vm1557, %v1604, %v1606
    %v1611 = vadd.f32 %v1562, %v1607
    %v1612 = vadd.f32 %v1563, %v1608
    %1613 = vset.pattern.permute.xlu0 30
    %1614 = vperm.xlu0 %1613, %v46
    %v1615 = vpop.permute.xlu0 %1614
    %v1617 = vlaneseq
    %v1618 = vshrl.u32 %v1617, 7
    %v1619 = vsub.s32 2, %v1618
    %v1620 = vrot.slane %v1510, %v1619
    %v1621 = vlaneseq
    %v1622 = vshrl.u32 %v1621, 7
    %v1623 = vsub.s32 6, %v1622
    %v1624 = vrot.slane %v1510, %v1623
    %v1625 = vlaneseq
    %v1626 = vshrl.u32 %v1625, 7
    %v1627 = vsub.s32 2, %v1626
    %v1628 = vrot.slane %v1511, %v1627
    %v1632 = vlaneseq
    %v1633 = vshrl.u32 %v1632, 7
    %v1634 = vsub.s32 2, %v1633
    %v1635 = vrot.slane %v1620, %v1634
    %v1636 = vlaneseq
    %v1637 = vshrl.u32 %v1636, 7
    %v1638 = vsub.s32 2, %v1637
    %v1639 = vrot.slane %v1624, %v1638
    %v1640 = vlaneseq
    %v1641 = vshrl.u32 %v1640, 7
    %v1642 = vsub.s32 2, %v1641
    %v1643 = vrot.slane %v1628, %v1642
    %v1644 = vmul.f32 %v1615, %v1635
    %v1645 = vmul.f32 %v1615, %v1639
    %v1646 = vmul.f32 %v1615, %v1643
    %1650 = vrot.lane.b32.xlu0 %v1644, 95
    %v1651 = vpop.permute.xlu0 %1650
    %1652 = vrot.lane.b32.xlu0 %v1645, 95
    %v1653 = vpop.permute.xlu0 %1652
    %1654 = vrot.lane.b32.xlu0 %v1646, 95
    %v1655 = vpop.permute.xlu0 %1654
    %v1656 = vsel %vm1557, %v1651, %v1653
    %v1657 = vsel %vm1557, %v1653, %v1655
    %v1660 = vadd.f32 %v1611, %v1656
    %v1661 = vadd.f32 %v1612, %v1657
    %1662 = vset.pattern.permute.xlu0 31
    %1663 = vperm.xlu0 %1662, %v46
    %v1664 = vpop.permute.xlu0 %1663
    %v1666 = vlaneseq
    %v1667 = vshrl.u32 %v1666, 7
    %v1668 = vsub.s32 3, %v1667
    %v1669 = vrot.slane %v1510, %v1668
    %v1670 = vlaneseq
    %v1671 = vshrl.u32 %v1670, 7
    %v1672 = vsub.s32 7, %v1671
    %v1673 = vrot.slane %v1510, %v1672
    %v1674 = vlaneseq
    %v1675 = vshrl.u32 %v1674, 7
    %v1676 = vsub.s32 3, %v1675
    %v1677 = vrot.slane %v1511, %v1676
    %v1681 = vlaneseq
    %v1682 = vshrl.u32 %v1681, 7
    %v1683 = vsub.s32 3, %v1682
    %v1684 = vrot.slane %v1669, %v1683
    %v1685 = vlaneseq
    %v1686 = vshrl.u32 %v1685, 7
    %v1687 = vsub.s32 3, %v1686
    %v1688 = vrot.slane %v1673, %v1687
    %v1689 = vlaneseq
    %v1690 = vshrl.u32 %v1689, 7
    %v1691 = vsub.s32 3, %v1690
    %v1692 = vrot.slane %v1677, %v1691
    %v1693 = vmul.f32 %v1664, %v1684
    %v1694 = vmul.f32 %v1664, %v1688
    %v1695 = vmul.f32 %v1664, %v1692
    %1699 = vrot.lane.b32.xlu0 %v1693, 95
    %v1700 = vpop.permute.xlu0 %1699
    %1701 = vrot.lane.b32.xlu0 %v1694, 95
    %v1702 = vpop.permute.xlu0 %1701
    %1703 = vrot.lane.b32.xlu0 %v1695, 95
    %v1704 = vpop.permute.xlu0 %1703
    %v1705 = vsel %vm1557, %v1700, %v1702
    %v1706 = vsel %vm1557, %v1702, %v1704
    %v1709 = vadd.f32 %v1660, %v1705
    %v1710 = vadd.f32 %v1661, %v1706
    %v1711 = vlaneseq
    %v1712 = vshrl.u32 %v1711, 7
    %v1713 = vsub.s32 0, %v1712
    %v1714 = vrot.slane %v49, %v1713
    %v1715 = vlaneseq
    %v1716 = vshrl.u32 %v1715, 7
    %v1717 = vsub.s32 0, %v1716
    %v1718 = vrot.slane %v50, %v1717
    %v1721 = vcombine.low %v1714, %v1718
    %1722 = vrot.lane.b32.xlu0 %v1721, 34
    %v1723 = vpop.permute.xlu0 %1722
    %v1724 = vrot.slane %v1723, 4
    %vm1725 = vcmask 277504
    %v1726 = vsel %vm1725, %v1724, %v1723
    %v1729 = vmul.f32 %v57, %v1726
    %v1730 = vmul.f32 %v58, %v1724
    %1731 = vset.pattern.permute.xlu0 32
    %1732 = vperm.xlu0 %1731, %v46
    %v1733 = vpop.permute.xlu0 %1732
    %v1737 = vlaneseq
    %v1738 = vshrl.u32 %v1737, 7
    %v1739 = vsub.s32 0, %v1738
    %v1740 = vrot.slane %v1729, %v1739
    %v1741 = vlaneseq
    %v1742 = vshrl.u32 %v1741, 7
    %v1743 = vsub.s32 4, %v1742
    %v1744 = vrot.slane %v1729, %v1743
    %v1745 = vlaneseq
    %v1746 = vshrl.u32 %v1745, 7
    %v1747 = vsub.s32 0, %v1746
    %v1748 = vrot.slane %v1730, %v1747
    %v1752 = vlaneseq
    %v1753 = vshrl.u32 %v1752, 7
    %v1754 = vsub.s32 0, %v1753
    %v1755 = vrot.slane %v1740, %v1754
    %v1756 = vlaneseq
    %v1757 = vshrl.u32 %v1756, 7
    %v1758 = vsub.s32 0, %v1757
    %v1759 = vrot.slane %v1744, %v1758
    %v1760 = vlaneseq
    %v1761 = vshrl.u32 %v1760, 7
    %v1762 = vsub.s32 0, %v1761
    %v1763 = vrot.slane %v1748, %v1762
    %v1764 = vmul.f32 %v1733, %v1755
    %v1765 = vmul.f32 %v1733, %v1759
    %v1766 = vmul.f32 %v1733, %v1763
    %1770 = vrot.lane.b32.xlu0 %v1764, 94
    %v1771 = vpop.permute.xlu0 %1770
    %1772 = vrot.lane.b32.xlu0 %v1765, 94
    %v1773 = vpop.permute.xlu0 %1772
    %1774 = vrot.lane.b32.xlu0 %v1766, 94
    %v1775 = vpop.permute.xlu0 %1774
    %vm1776 = vcmask 769024
    %v1777 = vsel %vm1776, %v1771, %v1773
    %v1778 = vsel %vm1776, %v1773, %v1775
    %v1781 = vadd.f32 %v1709, %v1777
    %v1782 = vadd.f32 %v1710, %v1778
    %1783 = vset.pattern.permute.xlu0 33
    %1784 = vperm.xlu0 %1783, %v46
    %v1785 = vpop.permute.xlu0 %1784
    %v1787 = vlaneseq
    %v1788 = vshrl.u32 %v1787, 7
    %v1789 = vsub.s32 1, %v1788
    %v1790 = vrot.slane %v1729, %v1789
    %v1791 = vlaneseq
    %v1792 = vshrl.u32 %v1791, 7
    %v1793 = vsub.s32 5, %v1792
    %v1794 = vrot.slane %v1729, %v1793
    %v1795 = vlaneseq
    %v1796 = vshrl.u32 %v1795, 7
    %v1797 = vsub.s32 1, %v1796
    %v1798 = vrot.slane %v1730, %v1797
    %v1802 = vlaneseq
    %v1803 = vshrl.u32 %v1802, 7
    %v1804 = vsub.s32 1, %v1803
    %v1805 = vrot.slane %v1790, %v1804
    %v1806 = vlaneseq
    %v1807 = vshrl.u32 %v1806, 7
    %v1808 = vsub.s32 1, %v1807
    %v1809 = vrot.slane %v1794, %v1808
    %v1810 = vlaneseq
    %v1811 = vshrl.u32 %v1810, 7
    %v1812 = vsub.s32 1, %v1811
    %v1813 = vrot.slane %v1798, %v1812
    %v1814 = vmul.f32 %v1785, %v1805
    %v1815 = vmul.f32 %v1785, %v1809
    %v1816 = vmul.f32 %v1785, %v1813
    %1820 = vrot.lane.b32.xlu0 %v1814, 94
    %v1821 = vpop.permute.xlu0 %1820
    %1822 = vrot.lane.b32.xlu0 %v1815, 94
    %v1823 = vpop.permute.xlu0 %1822
    %1824 = vrot.lane.b32.xlu0 %v1816, 94
    %v1825 = vpop.permute.xlu0 %1824
    %v1826 = vsel %vm1776, %v1821, %v1823
    %v1827 = vsel %vm1776, %v1823, %v1825
    %v1830 = vadd.f32 %v1781, %v1826
    %v1831 = vadd.f32 %v1782, %v1827
    %1832 = vset.pattern.permute.xlu0 34
    %1833 = vperm.xlu0 %1832, %v46
    %v1834 = vpop.permute.xlu0 %1833
    %v1836 = vlaneseq
    %v1837 = vshrl.u32 %v1836, 7
    %v1838 = vsub.s32 2, %v1837
    %v1839 = vrot.slane %v1729, %v1838
    %v1840 = vlaneseq
    %v1841 = vshrl.u32 %v1840, 7
    %v1842 = vsub.s32 6, %v1841
    %v1843 = vrot.slane %v1729, %v1842
    %v1844 = vlaneseq
    %v1845 = vshrl.u32 %v1844, 7
    %v1846 = vsub.s32 2, %v1845
    %v1847 = vrot.slane %v1730, %v1846
    %v1851 = vlaneseq
    %v1852 = vshrl.u32 %v1851, 7
    %v1853 = vsub.s32 2, %v1852
    %v1854 = vrot.slane %v1839, %v1853
    %v1855 = vlaneseq
    %v1856 = vshrl.u32 %v1855, 7
    %v1857 = vsub.s32 2, %v1856
    %v1858 = vrot.slane %v1843, %v1857
    %v1859 = vlaneseq
    %v1860 = vshrl.u32 %v1859, 7
    %v1861 = vsub.s32 2, %v1860
    %v1862 = vrot.slane %v1847, %v1861
    %v1863 = vmul.f32 %v1834, %v1854
    %v1864 = vmul.f32 %v1834, %v1858
    %v1865 = vmul.f32 %v1834, %v1862
    %1869 = vrot.lane.b32.xlu0 %v1863, 94
    %v1870 = vpop.permute.xlu0 %1869
    %1871 = vrot.lane.b32.xlu0 %v1864, 94
    %v1872 = vpop.permute.xlu0 %1871
    %1873 = vrot.lane.b32.xlu0 %v1865, 94
    %v1874 = vpop.permute.xlu0 %1873
    %v1875 = vsel %vm1776, %v1870, %v1872
    %v1876 = vsel %vm1776, %v1872, %v1874
    %v1879 = vadd.f32 %v1830, %v1875
    %v1880 = vadd.f32 %v1831, %v1876
    %1881 = vset.pattern.permute.xlu0 35
    %1882 = vperm.xlu0 %1881, %v46
    %v1883 = vpop.permute.xlu0 %1882
    %v1885 = vlaneseq
    %v1886 = vshrl.u32 %v1885, 7
    %v1887 = vsub.s32 3, %v1886
    %v1888 = vrot.slane %v1729, %v1887
    %v1889 = vlaneseq
    %v1890 = vshrl.u32 %v1889, 7
    %v1891 = vsub.s32 7, %v1890
    %v1892 = vrot.slane %v1729, %v1891
    %v1893 = vlaneseq
    %v1894 = vshrl.u32 %v1893, 7
    %v1895 = vsub.s32 3, %v1894
    %v1896 = vrot.slane %v1730, %v1895
    %v1900 = vlaneseq
    %v1901 = vshrl.u32 %v1900, 7
    %v1902 = vsub.s32 3, %v1901
    %v1903 = vrot.slane %v1888, %v1902
    %v1904 = vlaneseq
    %v1905 = vshrl.u32 %v1904, 7
    %v1906 = vsub.s32 3, %v1905
    %v1907 = vrot.slane %v1892, %v1906
    %v1908 = vlaneseq
    %v1909 = vshrl.u32 %v1908, 7
    %v1910 = vsub.s32 3, %v1909
    %v1911 = vrot.slane %v1896, %v1910
    %v1912 = vmul.f32 %v1883, %v1903
    %v1913 = vmul.f32 %v1883, %v1907
    %v1914 = vmul.f32 %v1883, %v1911
    %1918 = vrot.lane.b32.xlu0 %v1912, 94
    %v1919 = vpop.permute.xlu0 %1918
    %1920 = vrot.lane.b32.xlu0 %v1913, 94
    %v1921 = vpop.permute.xlu0 %1920
    %1922 = vrot.lane.b32.xlu0 %v1914, 94
    %v1923 = vpop.permute.xlu0 %1922
    %v1924 = vsel %vm1776, %v1919, %v1921
    %v1925 = vsel %vm1776, %v1921, %v1923
    %v1928 = vadd.f32 %v1879, %v1924
    %v1929 = vadd.f32 %v1880, %v1925
    %v1930 = vmax.f32 %v1928, 0.0
    %v1931 = vmax.f32 %v1929, 0.0
    %1932 = vst [vmem:[#allocation7] sm:$0xff] %v1930
    %1933 = vst [vmem:[#allocation7 + $0x8] sm:$0xff] %v1931
    %s1934 = scalar_lea.vmem [#allocation2], 12
    %v1935 = vld [vmem:[%s1934] sm:$0xff]
    %v1936 = vld [vmem:[%s1934 + $0x8] sm:$0xf]
    %v1937 = vmul.f32 %v1935, %v69
    %v1939 = vlaneseq
    %v1940 = vshrl.u32 %v1939, 7
    %v1941 = vsub.s32 0, %v1940
    %v1942 = vrot.slane %v1937, %v1941
    %v1943 = vlaneseq
    %v1944 = vshrl.u32 %v1943, 7
    %v1945 = vsub.s32 4, %v1944
    %v1946 = vrot.slane %v1937, %v1945
    %v1949 = vlaneseq
    %v1950 = vshrl.u32 %v1949, 7
    %v1951 = vsub.s32 0, %v1950
    %v1952 = vrot.slane %v1942, %v1951
    %v1953 = vlaneseq
    %v1954 = vshrl.u32 %v1953, 7
    %v1955 = vsub.s32 0, %v1954
    %v1956 = vrot.slane %v1946, %v1955
    %v1957 = vmul.f32 %v75, %v1952
    %v1958 = vmul.f32 %v75, %v1956
    %v1959 = vadd.f32 %v55, %v1957
    %v1960 = vadd.f32 %v55, %v1958
    %v1961 = vlaneseq
    %v1962 = vshrl.u32 %v1961, 7
    %v1963 = vsub.s32 1, %v1962
    %v1964 = vrot.slane %v1937, %v1963
    %v1965 = vlaneseq
    %v1966 = vshrl.u32 %v1965, 7
    %v1967 = vsub.s32 5, %v1966
    %v1968 = vrot.slane %v1937, %v1967
    %v1971 = vlaneseq
    %v1972 = vshrl.u32 %v1971, 7
    %v1973 = vsub.s32 1, %v1972
    %v1974 = vrot.slane %v1964, %v1973
    %v1975 = vlaneseq
    %v1976 = vshrl.u32 %v1975, 7
    %v1977 = vsub.s32 1, %v1976
    %v1978 = vrot.slane %v1968, %v1977
    %v1979 = vmul.f32 %v102, %v1974
    %v1980 = vmul.f32 %v102, %v1978
    %v1981 = vadd.f32 %v1959, %v1979
    %v1982 = vadd.f32 %v1960, %v1980
    %v1983 = vlaneseq
    %v1984 = vshrl.u32 %v1983, 7
    %v1985 = vsub.s32 2, %v1984
    %v1986 = vrot.slane %v1937, %v1985
    %v1987 = vlaneseq
    %v1988 = vshrl.u32 %v1987, 7
    %v1989 = vsub.s32 6, %v1988
    %v1990 = vrot.slane %v1937, %v1989
    %v1993 = vlaneseq
    %v1994 = vshrl.u32 %v1993, 7
    %v1995 = vsub.s32 2, %v1994
    %v1996 = vrot.slane %v1986, %v1995
    %v1997 = vlaneseq
    %v1998 = vshrl.u32 %v1997, 7
    %v1999 = vsub.s32 2, %v1998
    %v2000 = vrot.slane %v1990, %v1999
    %v2001 = vmul.f32 %v128, %v1996
    %v2002 = vmul.f32 %v128, %v2000
    %v2003 = vadd.f32 %v1981, %v2001
    %v2004 = vadd.f32 %v1982, %v2002
    %v2005 = vlaneseq
    %v2006 = vshrl.u32 %v2005, 7
    %v2007 = vsub.s32 3, %v2006
    %v2008 = vrot.slane %v1937, %v2007
    %v2009 = vlaneseq
    %v2010 = vshrl.u32 %v2009, 7
    %v2011 = vsub.s32 7, %v2010
    %v2012 = vrot.slane %v1937, %v2011
    %v2015 = vlaneseq
    %v2016 = vshrl.u32 %v2015, 7
    %v2017 = vsub.s32 3, %v2016
    %v2018 = vrot.slane %v2008, %v2017
    %v2019 = vlaneseq
    %v2020 = vshrl.u32 %v2019, 7
    %v2021 = vsub.s32 3, %v2020
    %v2022 = vrot.slane %v2012, %v2021
    %v2023 = vmul.f32 %v154, %v2018
    %v2024 = vmul.f32 %v154, %v2022
    %v2025 = vadd.f32 %v2003, %v2023
    %v2026 = vadd.f32 %v2004, %v2024
    %v2027 = vmul.f32 %v1935, %v193
    %v2028 = vmul.f32 %v1936, %v191
    %v2031 = vlaneseq
    %v2032 = vshrl.u32 %v2031, 7
    %v2033 = vsub.s32 0, %v2032
    %v2034 = vrot.slane %v2027, %v2033
    %v2035 = vlaneseq
    %v2036 = vshrl.u32 %v2035, 7
    %v2037 = vsub.s32 4, %v2036
    %v2038 = vrot.slane %v2027, %v2037
    %v2039 = vlaneseq
    %v2040 = vshrl.u32 %v2039, 7
    %v2041 = vsub.s32 0, %v2040
    %v2042 = vrot.slane %v2028, %v2041
    %v2046 = vlaneseq
    %v2047 = vshrl.u32 %v2046, 7
    %v2048 = vsub.s32 0, %v2047
    %v2049 = vrot.slane %v2034, %v2048
    %v2050 = vlaneseq
    %v2051 = vshrl.u32 %v2050, 7
    %v2052 = vsub.s32 0, %v2051
    %v2053 = vrot.slane %v2038, %v2052
    %v2054 = vlaneseq
    %v2055 = vshrl.u32 %v2054, 7
    %v2056 = vsub.s32 0, %v2055
    %v2057 = vrot.slane %v2042, %v2056
    %v2058 = vmul.f32 %v200, %v2049
    %v2059 = vmul.f32 %v200, %v2053
    %v2060 = vmul.f32 %v200, %v2057
    %2064 = vrot.lane.b32.xlu0 %v2058, 127
    %v2065 = vpop.permute.xlu0 %2064
    %2066 = vrot.lane.b32.xlu0 %v2059, 127
    %v2067 = vpop.permute.xlu0 %2066
    %2068 = vrot.lane.b32.xlu0 %v2060, 127
    %v2069 = vpop.permute.xlu0 %2068
    %v2070 = vsel %vm243, %v2065, %v2067
    %v2071 = vsel %vm243, %v2067, %v2069
    %v2074 = vadd.f32 %v2025, %v2070
    %v2075 = vadd.f32 %v2026, %v2071
    %v2076 = vlaneseq
    %v2077 = vshrl.u32 %v2076, 7
    %v2078 = vsub.s32 1, %v2077
    %v2079 = vrot.slane %v2027, %v2078
    %v2080 = vlaneseq
    %v2081 = vshrl.u32 %v2080, 7
    %v2082 = vsub.s32 5, %v2081
    %v2083 = vrot.slane %v2027, %v2082
    %v2084 = vlaneseq
    %v2085 = vshrl.u32 %v2084, 7
    %v2086 = vsub.s32 1, %v2085
    %v2087 = vrot.slane %v2028, %v2086
    %v2091 = vlaneseq
    %v2092 = vshrl.u32 %v2091, 7
    %v2093 = vsub.s32 1, %v2092
    %v2094 = vrot.slane %v2079, %v2093
    %v2095 = vlaneseq
    %v2096 = vshrl.u32 %v2095, 7
    %v2097 = vsub.s32 1, %v2096
    %v2098 = vrot.slane %v2083, %v2097
    %v2099 = vlaneseq
    %v2100 = vshrl.u32 %v2099, 7
    %v2101 = vsub.s32 1, %v2100
    %v2102 = vrot.slane %v2087, %v2101
    %v2103 = vmul.f32 %v252, %v2094
    %v2104 = vmul.f32 %v252, %v2098
    %v2105 = vmul.f32 %v252, %v2102
    %2109 = vrot.lane.b32.xlu0 %v2103, 127
    %v2110 = vpop.permute.xlu0 %2109
    %2111 = vrot.lane.b32.xlu0 %v2104, 127
    %v2112 = vpop.permute.xlu0 %2111
    %2113 = vrot.lane.b32.xlu0 %v2105, 127
    %v2114 = vpop.permute.xlu0 %2113
    %v2115 = vsel %vm243, %v2110, %v2112
    %v2116 = vsel %vm243, %v2112, %v2114
    %v2119 = vadd.f32 %v2074, %v2115
    %v2120 = vadd.f32 %v2075, %v2116
    %v2121 = vlaneseq
    %v2122 = vshrl.u32 %v2121, 7
    %v2123 = vsub.s32 2, %v2122
    %v2124 = vrot.slane %v2027, %v2123
    %v2125 = vlaneseq
    %v2126 = vshrl.u32 %v2125, 7
    %v2127 = vsub.s32 6, %v2126
    %v2128 = vrot.slane %v2027, %v2127
    %v2129 = vlaneseq
    %v2130 = vshrl.u32 %v2129, 7
    %v2131 = vsub.s32 2, %v2130
    %v2132 = vrot.slane %v2028, %v2131
    %v2136 = vlaneseq
    %v2137 = vshrl.u32 %v2136, 7
    %v2138 = vsub.s32 2, %v2137
    %v2139 = vrot.slane %v2124, %v2138
    %v2140 = vlaneseq
    %v2141 = vshrl.u32 %v2140, 7
    %v2142 = vsub.s32 2, %v2141
    %v2143 = vrot.slane %v2128, %v2142
    %v2144 = vlaneseq
    %v2145 = vshrl.u32 %v2144, 7
    %v2146 = vsub.s32 2, %v2145
    %v2147 = vrot.slane %v2132, %v2146
    %v2148 = vmul.f32 %v301, %v2139
    %v2149 = vmul.f32 %v301, %v2143
    %v2150 = vmul.f32 %v301, %v2147
    %2154 = vrot.lane.b32.xlu0 %v2148, 127
    %v2155 = vpop.permute.xlu0 %2154
    %2156 = vrot.lane.b32.xlu0 %v2149, 127
    %v2157 = vpop.permute.xlu0 %2156
    %2158 = vrot.lane.b32.xlu0 %v2150, 127
    %v2159 = vpop.permute.xlu0 %2158
    %v2160 = vsel %vm243, %v2155, %v2157
    %v2161 = vsel %vm243, %v2157, %v2159
    %v2164 = vadd.f32 %v2119, %v2160
    %v2165 = vadd.f32 %v2120, %v2161
    %v2166 = vlaneseq
    %v2167 = vshrl.u32 %v2166, 7
    %v2168 = vsub.s32 3, %v2167
    %v2169 = vrot.slane %v2027, %v2168
    %v2170 = vlaneseq
    %v2171 = vshrl.u32 %v2170, 7
    %v2172 = vsub.s32 7, %v2171
    %v2173 = vrot.slane %v2027, %v2172
    %v2174 = vlaneseq
    %v2175 = vshrl.u32 %v2174, 7
    %v2176 = vsub.s32 3, %v2175
    %v2177 = vrot.slane %v2028, %v2176
    %v2181 = vlaneseq
    %v2182 = vshrl.u32 %v2181, 7
    %v2183 = vsub.s32 3, %v2182
    %v2184 = vrot.slane %v2169, %v2183
    %v2185 = vlaneseq
    %v2186 = vshrl.u32 %v2185, 7
    %v2187 = vsub.s32 3, %v2186
    %v2188 = vrot.slane %v2173, %v2187
    %v2189 = vlaneseq
    %v2190 = vshrl.u32 %v2189, 7
    %v2191 = vsub.s32 3, %v2190
    %v2192 = vrot.slane %v2177, %v2191
    %v2193 = vmul.f32 %v350, %v2184
    %v2194 = vmul.f32 %v350, %v2188
    %v2195 = vmul.f32 %v350, %v2192
    %2199 = vrot.lane.b32.xlu0 %v2193, 127
    %v2200 = vpop.permute.xlu0 %2199
    %2201 = vrot.lane.b32.xlu0 %v2194, 127
    %v2202 = vpop.permute.xlu0 %2201
    %2203 = vrot.lane.b32.xlu0 %v2195, 127
    %v2204 = vpop.permute.xlu0 %2203
    %v2205 = vsel %vm243, %v2200, %v2202
    %v2206 = vsel %vm243, %v2202, %v2204
    %v2209 = vadd.f32 %v2164, %v2205
    %v2210 = vadd.f32 %v2165, %v2206
    %v2211 = vmul.f32 %v1935, %v412
    %v2212 = vmul.f32 %v1936, %v410
    %v2215 = vlaneseq
    %v2216 = vshrl.u32 %v2215, 7
    %v2217 = vsub.s32 0, %v2216
    %v2218 = vrot.slane %v2211, %v2217
    %v2219 = vlaneseq
    %v2220 = vshrl.u32 %v2219, 7
    %v2221 = vsub.s32 4, %v2220
    %v2222 = vrot.slane %v2211, %v2221
    %v2223 = vlaneseq
    %v2224 = vshrl.u32 %v2223, 7
    %v2225 = vsub.s32 0, %v2224
    %v2226 = vrot.slane %v2212, %v2225
    %v2230 = vlaneseq
    %v2231 = vshrl.u32 %v2230, 7
    %v2232 = vsub.s32 0, %v2231
    %v2233 = vrot.slane %v2218, %v2232
    %v2234 = vlaneseq
    %v2235 = vshrl.u32 %v2234, 7
    %v2236 = vsub.s32 0, %v2235
    %v2237 = vrot.slane %v2222, %v2236
    %v2238 = vlaneseq
    %v2239 = vshrl.u32 %v2238, 7
    %v2240 = vsub.s32 0, %v2239
    %v2241 = vrot.slane %v2226, %v2240
    %v2242 = vmul.f32 %v419, %v2233
    %v2243 = vmul.f32 %v419, %v2237
    %v2244 = vmul.f32 %v419, %v2241
    %2248 = vrot.lane.b32.xlu0 %v2242, 126
    %v2249 = vpop.permute.xlu0 %2248
    %2250 = vrot.lane.b32.xlu0 %v2243, 126
    %v2251 = vpop.permute.xlu0 %2250
    %2252 = vrot.lane.b32.xlu0 %v2244, 126
    %v2253 = vpop.permute.xlu0 %2252
    %v2254 = vsel %vm462, %v2249, %v2251
    %v2255 = vsel %vm462, %v2251, %v2253
    %v2258 = vadd.f32 %v2209, %v2254
    %v2259 = vadd.f32 %v2210, %v2255
    %v2260 = vlaneseq
    %v2261 = vshrl.u32 %v2260, 7
    %v2262 = vsub.s32 1, %v2261
    %v2263 = vrot.slane %v2211, %v2262
    %v2264 = vlaneseq
    %v2265 = vshrl.u32 %v2264, 7
    %v2266 = vsub.s32 5, %v2265
    %v2267 = vrot.slane %v2211, %v2266
    %v2268 = vlaneseq
    %v2269 = vshrl.u32 %v2268, 7
    %v2270 = vsub.s32 1, %v2269
    %v2271 = vrot.slane %v2212, %v2270
    %v2275 = vlaneseq
    %v2276 = vshrl.u32 %v2275, 7
    %v2277 = vsub.s32 1, %v2276
    %v2278 = vrot.slane %v2263, %v2277
    %v2279 = vlaneseq
    %v2280 = vshrl.u32 %v2279, 7
    %v2281 = vsub.s32 1, %v2280
    %v2282 = vrot.slane %v2267, %v2281
    %v2283 = vlaneseq
    %v2284 = vshrl.u32 %v2283, 7
    %v2285 = vsub.s32 1, %v2284
    %v2286 = vrot.slane %v2271, %v2285
    %v2287 = vmul.f32 %v471, %v2278
    %v2288 = vmul.f32 %v471, %v2282
    %v2289 = vmul.f32 %v471, %v2286
    %2293 = vrot.lane.b32.xlu0 %v2287, 126
    %v2294 = vpop.permute.xlu0 %2293
    %2295 = vrot.lane.b32.xlu0 %v2288, 126
    %v2296 = vpop.permute.xlu0 %2295
    %2297 = vrot.lane.b32.xlu0 %v2289, 126
    %v2298 = vpop.permute.xlu0 %2297
    %v2299 = vsel %vm462, %v2294, %v2296
    %v2300 = vsel %vm462, %v2296, %v2298
    %v2303 = vadd.f32 %v2258, %v2299
    %v2304 = vadd.f32 %v2259, %v2300
    %v2305 = vlaneseq
    %v2306 = vshrl.u32 %v2305, 7
    %v2307 = vsub.s32 2, %v2306
    %v2308 = vrot.slane %v2211, %v2307
    %v2309 = vlaneseq
    %v2310 = vshrl.u32 %v2309, 7
    %v2311 = vsub.s32 6, %v2310
    %v2312 = vrot.slane %v2211, %v2311
    %v2313 = vlaneseq
    %v2314 = vshrl.u32 %v2313, 7
    %v2315 = vsub.s32 2, %v2314
    %v2316 = vrot.slane %v2212, %v2315
    %v2320 = vlaneseq
    %v2321 = vshrl.u32 %v2320, 7
    %v2322 = vsub.s32 2, %v2321
    %v2323 = vrot.slane %v2308, %v2322
    %v2324 = vlaneseq
    %v2325 = vshrl.u32 %v2324, 7
    %v2326 = vsub.s32 2, %v2325
    %v2327 = vrot.slane %v2312, %v2326
    %v2328 = vlaneseq
    %v2329 = vshrl.u32 %v2328, 7
    %v2330 = vsub.s32 2, %v2329
    %v2331 = vrot.slane %v2316, %v2330
    %v2332 = vmul.f32 %v520, %v2323
    %v2333 = vmul.f32 %v520, %v2327
    %v2334 = vmul.f32 %v520, %v2331
    %2338 = vrot.lane.b32.xlu0 %v2332, 126
    %v2339 = vpop.permute.xlu0 %2338
    %2340 = vrot.lane.b32.xlu0 %v2333, 126
    %v2341 = vpop.permute.xlu0 %2340
    %2342 = vrot.lane.b32.xlu0 %v2334, 126
    %v2343 = vpop.permute.xlu0 %2342
    %v2344 = vsel %vm462, %v2339, %v2341
    %v2345 = vsel %vm462, %v2341, %v2343
    %v2348 = vadd.f32 %v2303, %v2344
    %v2349 = vadd.f32 %v2304, %v2345
    %v2350 = vlaneseq
    %v2351 = vshrl.u32 %v2350, 7
    %v2352 = vsub.s32 3, %v2351
    %v2353 = vrot.slane %v2211, %v2352
    %v2354 = vlaneseq
    %v2355 = vshrl.u32 %v2354, 7
    %v2356 = vsub.s32 7, %v2355
    %v2357 = vrot.slane %v2211, %v2356
    %v2358 = vlaneseq
    %v2359 = vshrl.u32 %v2358, 7
    %v2360 = vsub.s32 3, %v2359
    %v2361 = vrot.slane %v2212, %v2360
    %v2365 = vlaneseq
    %v2366 = vshrl.u32 %v2365, 7
    %v2367 = vsub.s32 3, %v2366
    %v2368 = vrot.slane %v2353, %v2367
    %v2369 = vlaneseq
    %v2370 = vshrl.u32 %v2369, 7
    %v2371 = vsub.s32 3, %v2370
    %v2372 = vrot.slane %v2357, %v2371
    %v2373 = vlaneseq
    %v2374 = vshrl.u32 %v2373, 7
    %v2375 = vsub.s32 3, %v2374
    %v2376 = vrot.slane %v2361, %v2375
    %v2377 = vmul.f32 %v569, %v2368
    %v2378 = vmul.f32 %v569, %v2372
    %v2379 = vmul.f32 %v569, %v2376
    %2383 = vrot.lane.b32.xlu0 %v2377, 126
    %v2384 = vpop.permute.xlu0 %2383
    %2385 = vrot.lane.b32.xlu0 %v2378, 126
    %v2386 = vpop.permute.xlu0 %2385
    %2387 = vrot.lane.b32.xlu0 %v2379, 126
    %v2388 = vpop.permute.xlu0 %2387
    %v2389 = vsel %vm462, %v2384, %v2386
    %v2390 = vsel %vm462, %v2386, %v2388
    %v2393 = vadd.f32 %v2348, %v2389
    %v2394 = vadd.f32 %v2349, %v2390
    %v2395 = vmul.f32 %v1935, %v631
    %v2396 = vmul.f32 %v1936, %v629
    %v2399 = vlaneseq
    %v2400 = vshrl.u32 %v2399, 7
    %v2401 = vsub.s32 0, %v2400
    %v2402 = vrot.slane %v2395, %v2401
    %v2403 = vlaneseq
    %v2404 = vshrl.u32 %v2403, 7
    %v2405 = vsub.s32 4, %v2404
    %v2406 = vrot.slane %v2395, %v2405
    %v2407 = vlaneseq
    %v2408 = vshrl.u32 %v2407, 7
    %v2409 = vsub.s32 0, %v2408
    %v2410 = vrot.slane %v2396, %v2409
    %v2414 = vlaneseq
    %v2415 = vshrl.u32 %v2414, 7
    %v2416 = vsub.s32 0, %v2415
    %v2417 = vrot.slane %v2402, %v2416
    %v2418 = vlaneseq
    %v2419 = vshrl.u32 %v2418, 7
    %v2420 = vsub.s32 0, %v2419
    %v2421 = vrot.slane %v2406, %v2420
    %v2422 = vlaneseq
    %v2423 = vshrl.u32 %v2422, 7
    %v2424 = vsub.s32 0, %v2423
    %v2425 = vrot.slane %v2410, %v2424
    %v2426 = vmul.f32 %v638, %v2417
    %v2427 = vmul.f32 %v638, %v2421
    %v2428 = vmul.f32 %v638, %v2425
    %2432 = vrot.lane.b32.xlu0 %v2426, 112
    %v2433 = vpop.permute.xlu0 %2432
    %2434 = vrot.lane.b32.xlu0 %v2427, 112
    %v2435 = vpop.permute.xlu0 %2434
    %2436 = vrot.lane.b32.xlu0 %v2428, 112
    %v2437 = vpop.permute.xlu0 %2436
    %v2438 = vsel %vm681, %v2433, %v2435
    %v2439 = vsel %vm681, %v2435, %v2437
    %v2442 = vadd.f32 %v2393, %v2438
    %v2443 = vadd.f32 %v2394, %v2439
    %v2444 = vlaneseq
    %v2445 = vshrl.u32 %v2444, 7
    %v2446 = vsub.s32 1, %v2445
    %v2447 = vrot.slane %v2395, %v2446
    %v2448 = vlaneseq
    %v2449 = vshrl.u32 %v2448, 7
    %v2450 = vsub.s32 5, %v2449
    %v2451 = vrot.slane %v2395, %v2450
    %v2452 = vlaneseq
    %v2453 = vshrl.u32 %v2452, 7
    %v2454 = vsub.s32 1, %v2453
    %v2455 = vrot.slane %v2396, %v2454
    %v2459 = vlaneseq
    %v2460 = vshrl.u32 %v2459, 7
    %v2461 = vsub.s32 1, %v2460
    %v2462 = vrot.slane %v2447, %v2461
    %v2463 = vlaneseq
    %v2464 = vshrl.u32 %v2463, 7
    %v2465 = vsub.s32 1, %v2464
    %v2466 = vrot.slane %v2451, %v2465
    %v2467 = vlaneseq
    %v2468 = vshrl.u32 %v2467, 7
    %v2469 = vsub.s32 1, %v2468
    %v2470 = vrot.slane %v2455, %v2469
    %v2471 = vmul.f32 %v690, %v2462
    %v2472 = vmul.f32 %v690, %v2466
    %v2473 = vmul.f32 %v690, %v2470
    %2477 = vrot.lane.b32.xlu0 %v2471, 112
    %v2478 = vpop.permute.xlu0 %2477
    %2479 = vrot.lane.b32.xlu0 %v2472, 112
    %v2480 = vpop.permute.xlu0 %2479
    %2481 = vrot.lane.b32.xlu0 %v2473, 112
    %v2482 = vpop.permute.xlu0 %2481
    %v2483 = vsel %vm681, %v2478, %v2480
    %v2484 = vsel %vm681, %v2480, %v2482
    %v2487 = vadd.f32 %v2442, %v2483
    %v2488 = vadd.f32 %v2443, %v2484
    %v2489 = vlaneseq
    %v2490 = vshrl.u32 %v2489, 7
    %v2491 = vsub.s32 2, %v2490
    %v2492 = vrot.slane %v2395, %v2491
    %v2493 = vlaneseq
    %v2494 = vshrl.u32 %v2493, 7
    %v2495 = vsub.s32 6, %v2494
    %v2496 = vrot.slane %v2395, %v2495
    %v2497 = vlaneseq
    %v2498 = vshrl.u32 %v2497, 7
    %v2499 = vsub.s32 2, %v2498
    %v2500 = vrot.slane %v2396, %v2499
    %v2504 = vlaneseq
    %v2505 = vshrl.u32 %v2504, 7
    %v2506 = vsub.s32 2, %v2505
    %v2507 = vrot.slane %v2492, %v2506
    %v2508 = vlaneseq
    %v2509 = vshrl.u32 %v2508, 7
    %v2510 = vsub.s32 2, %v2509
    %v2511 = vrot.slane %v2496, %v2510
    %v2512 = vlaneseq
    %v2513 = vshrl.u32 %v2512, 7
    %v2514 = vsub.s32 2, %v2513
    %v2515 = vrot.slane %v2500, %v2514
    %v2516 = vmul.f32 %v739, %v2507
    %v2517 = vmul.f32 %v739, %v2511
    %v2518 = vmul.f32 %v739, %v2515
    %2522 = vrot.lane.b32.xlu0 %v2516, 112
    %v2523 = vpop.permute.xlu0 %2522
    %2524 = vrot.lane.b32.xlu0 %v2517, 112
    %v2525 = vpop.permute.xlu0 %2524
    %2526 = vrot.lane.b32.xlu0 %v2518, 112
    %v2527 = vpop.permute.xlu0 %2526
    %v2528 = vsel %vm681, %v2523, %v2525
    %v2529 = vsel %vm681, %v2525, %v2527
    %v2532 = vadd.f32 %v2487, %v2528
    %v2533 = vadd.f32 %v2488, %v2529
    %v2534 = vlaneseq
    %v2535 = vshrl.u32 %v2534, 7
    %v2536 = vsub.s32 3, %v2535
    %v2537 = vrot.slane %v2395, %v2536
    %v2538 = vlaneseq
    %v2539 = vshrl.u32 %v2538, 7
    %v2540 = vsub.s32 7, %v2539
    %v2541 = vrot.slane %v2395, %v2540
    %v2542 = vlaneseq
    %v2543 = vshrl.u32 %v2542, 7
    %v2544 = vsub.s32 3, %v2543
    %v2545 = vrot.slane %v2396, %v2544
    %v2549 = vlaneseq
    %v2550 = vshrl.u32 %v2549, 7
    %v2551 = vsub.s32 3, %v2550
    %v2552 = vrot.slane %v2537, %v2551
    %v2553 = vlaneseq
    %v2554 = vshrl.u32 %v2553, 7
    %v2555 = vsub.s32 3, %v2554
    %v2556 = vrot.slane %v2541, %v2555
    %v2557 = vlaneseq
    %v2558 = vshrl.u32 %v2557, 7
    %v2559 = vsub.s32 3, %v2558
    %v2560 = vrot.slane %v2545, %v2559
    %v2561 = vmul.f32 %v788, %v2552
    %v2562 = vmul.f32 %v788, %v2556
    %v2563 = vmul.f32 %v788, %v2560
    %2567 = vrot.lane.b32.xlu0 %v2561, 112
    %v2568 = vpop.permute.xlu0 %2567
    %2569 = vrot.lane.b32.xlu0 %v2562, 112
    %v2570 = vpop.permute.xlu0 %2569
    %2571 = vrot.lane.b32.xlu0 %v2563, 112
    %v2572 = vpop.permute.xlu0 %2571
    %v2573 = vsel %vm681, %v2568, %v2570
    %v2574 = vsel %vm681, %v2570, %v2572
    %v2577 = vadd.f32 %v2532, %v2573
    %v2578 = vadd.f32 %v2533, %v2574
    %v2579 = vmul.f32 %v1935, %v850
    %v2580 = vmul.f32 %v1936, %v848
    %v2583 = vlaneseq
    %v2584 = vshrl.u32 %v2583, 7
    %v2585 = vsub.s32 0, %v2584
    %v2586 = vrot.slane %v2579, %v2585
    %v2587 = vlaneseq
    %v2588 = vshrl.u32 %v2587, 7
    %v2589 = vsub.s32 4, %v2588
    %v2590 = vrot.slane %v2579, %v2589
    %v2591 = vlaneseq
    %v2592 = vshrl.u32 %v2591, 7
    %v2593 = vsub.s32 0, %v2592
    %v2594 = vrot.slane %v2580, %v2593
    %v2598 = vlaneseq
    %v2599 = vshrl.u32 %v2598, 7
    %v2600 = vsub.s32 0, %v2599
    %v2601 = vrot.slane %v2586, %v2600
    %v2602 = vlaneseq
    %v2603 = vshrl.u32 %v2602, 7
    %v2604 = vsub.s32 0, %v2603
    %v2605 = vrot.slane %v2590, %v2604
    %v2606 = vlaneseq
    %v2607 = vshrl.u32 %v2606, 7
    %v2608 = vsub.s32 0, %v2607
    %v2609 = vrot.slane %v2594, %v2608
    %v2610 = vmul.f32 %v857, %v2601
    %v2611 = vmul.f32 %v857, %v2605
    %v2612 = vmul.f32 %v857, %v2609
    %2616 = vrot.lane.b32.xlu0 %v2610, 111
    %v2617 = vpop.permute.xlu0 %2616
    %2618 = vrot.lane.b32.xlu0 %v2611, 111
    %v2619 = vpop.permute.xlu0 %2618
    %2620 = vrot.lane.b32.xlu0 %v2612, 111
    %v2621 = vpop.permute.xlu0 %2620
    %v2622 = vsel %vm900, %v2617, %v2619
    %v2623 = vsel %vm900, %v2619, %v2621
    %v2626 = vadd.f32 %v2577, %v2622
    %v2627 = vadd.f32 %v2578, %v2623
    %v2628 = vlaneseq
    %v2629 = vshrl.u32 %v2628, 7
    %v2630 = vsub.s32 1, %v2629
    %v2631 = vrot.slane %v2579, %v2630
    %v2632 = vlaneseq
    %v2633 = vshrl.u32 %v2632, 7
    %v2634 = vsub.s32 5, %v2633
    %v2635 = vrot.slane %v2579, %v2634
    %v2636 = vlaneseq
    %v2637 = vshrl.u32 %v2636, 7
    %v2638 = vsub.s32 1, %v2637
    %v2639 = vrot.slane %v2580, %v2638
    %v2643 = vlaneseq
    %v2644 = vshrl.u32 %v2643, 7
    %v2645 = vsub.s32 1, %v2644
    %v2646 = vrot.slane %v2631, %v2645
    %v2647 = vlaneseq
    %v2648 = vshrl.u32 %v2647, 7
    %v2649 = vsub.s32 1, %v2648
    %v2650 = vrot.slane %v2635, %v2649
    %v2651 = vlaneseq
    %v2652 = vshrl.u32 %v2651, 7
    %v2653 = vsub.s32 1, %v2652
    %v2654 = vrot.slane %v2639, %v2653
    %v2655 = vmul.f32 %v909, %v2646
    %v2656 = vmul.f32 %v909, %v2650
    %v2657 = vmul.f32 %v909, %v2654
    %2661 = vrot.lane.b32.xlu0 %v2655, 111
    %v2662 = vpop.permute.xlu0 %2661
    %2663 = vrot.lane.b32.xlu0 %v2656, 111
    %v2664 = vpop.permute.xlu0 %2663
    %2665 = vrot.lane.b32.xlu0 %v2657, 111
    %v2666 = vpop.permute.xlu0 %2665
    %v2667 = vsel %vm900, %v2662, %v2664
    %v2668 = vsel %vm900, %v2664, %v2666
    %v2671 = vadd.f32 %v2626, %v2667
    %v2672 = vadd.f32 %v2627, %v2668
    %v2673 = vlaneseq
    %v2674 = vshrl.u32 %v2673, 7
    %v2675 = vsub.s32 2, %v2674
    %v2676 = vrot.slane %v2579, %v2675
    %v2677 = vlaneseq
    %v2678 = vshrl.u32 %v2677, 7
    %v2679 = vsub.s32 6, %v2678
    %v2680 = vrot.slane %v2579, %v2679
    %v2681 = vlaneseq
    %v2682 = vshrl.u32 %v2681, 7
    %v2683 = vsub.s32 2, %v2682
    %v2684 = vrot.slane %v2580, %v2683
    %v2688 = vlaneseq
    %v2689 = vshrl.u32 %v2688, 7
    %v2690 = vsub.s32 2, %v2689
    %v2691 = vrot.slane %v2676, %v2690
    %v2692 = vlaneseq
    %v2693 = vshrl.u32 %v2692, 7
    %v2694 = vsub.s32 2, %v2693
    %v2695 = vrot.slane %v2680, %v2694
    %v2696 = vlaneseq
    %v2697 = vshrl.u32 %v2696, 7
    %v2698 = vsub.s32 2, %v2697
    %v2699 = vrot.slane %v2684, %v2698
    %v2700 = vmul.f32 %v958, %v2691
    %v2701 = vmul.f32 %v958, %v2695
    %v2702 = vmul.f32 %v958, %v2699
    %2706 = vrot.lane.b32.xlu0 %v2700, 111
    %v2707 = vpop.permute.xlu0 %2706
    %2708 = vrot.lane.b32.xlu0 %v2701, 111
    %v2709 = vpop.permute.xlu0 %2708
    %2710 = vrot.lane.b32.xlu0 %v2702, 111
    %v2711 = vpop.permute.xlu0 %2710
    %v2712 = vsel %vm900, %v2707, %v2709
    %v2713 = vsel %vm900, %v2709, %v2711
    %v2716 = vadd.f32 %v2671, %v2712
    %v2717 = vadd.f32 %v2672, %v2713
    %v2718 = vlaneseq
    %v2719 = vshrl.u32 %v2718, 7
    %v2720 = vsub.s32 3, %v2719
    %v2721 = vrot.slane %v2579, %v2720
    %v2722 = vlaneseq
    %v2723 = vshrl.u32 %v2722, 7
    %v2724 = vsub.s32 7, %v2723
    %v2725 = vrot.slane %v2579, %v2724
    %v2726 = vlaneseq
    %v2727 = vshrl.u32 %v2726, 7
    %v2728 = vsub.s32 3, %v2727
    %v2729 = vrot.slane %v2580, %v2728
    %v2733 = vlaneseq
    %v2734 = vshrl.u32 %v2733, 7
    %v2735 = vsub.s32 3, %v2734
    %v2736 = vrot.slane %v2721, %v2735
    %v2737 = vlaneseq
    %v2738 = vshrl.u32 %v2737, 7
    %v2739 = vsub.s32 3, %v2738
    %v2740 = vrot.slane %v2725, %v2739
    %v2741 = vlaneseq
    %v2742 = vshrl.u32 %v2741, 7
    %v2743 = vsub.s32 3, %v2742
    %v2744 = vrot.slane %v2729, %v2743
    %v2745 = vmul.f32 %v1007, %v2736
    %v2746 = vmul.f32 %v1007, %v2740
    %v2747 = vmul.f32 %v1007, %v2744
    %2751 = vrot.lane.b32.xlu0 %v2745, 111
    %v2752 = vpop.permute.xlu0 %2751
    %2753 = vrot.lane.b32.xlu0 %v2746, 111
    %v2754 = vpop.permute.xlu0 %2753
    %2755 = vrot.lane.b32.xlu0 %v2747, 111
    %v2756 = vpop.permute.xlu0 %2755
    %v2757 = vsel %vm900, %v2752, %v2754
    %v2758 = vsel %vm900, %v2754, %v2756
    %v2761 = vadd.f32 %v2716, %v2757
    %v2762 = vadd.f32 %v2717, %v2758
    %v2763 = vmul.f32 %v1935, %v1069
    %v2764 = vmul.f32 %v1936, %v1067
    %v2767 = vlaneseq
    %v2768 = vshrl.u32 %v2767, 7
    %v2769 = vsub.s32 0, %v2768
    %v2770 = vrot.slane %v2763, %v2769
    %v2771 = vlaneseq
    %v2772 = vshrl.u32 %v2771, 7
    %v2773 = vsub.s32 4, %v2772
    %v2774 = vrot.slane %v2763, %v2773
    %v2775 = vlaneseq
    %v2776 = vshrl.u32 %v2775, 7
    %v2777 = vsub.s32 0, %v2776
    %v2778 = vrot.slane %v2764, %v2777
    %v2782 = vlaneseq
    %v2783 = vshrl.u32 %v2782, 7
    %v2784 = vsub.s32 0, %v2783
    %v2785 = vrot.slane %v2770, %v2784
    %v2786 = vlaneseq
    %v2787 = vshrl.u32 %v2786, 7
    %v2788 = vsub.s32 0, %v2787
    %v2789 = vrot.slane %v2774, %v2788
    %v2790 = vlaneseq
    %v2791 = vshrl.u32 %v2790, 7
    %v2792 = vsub.s32 0, %v2791
    %v2793 = vrot.slane %v2778, %v2792
    %v2794 = vmul.f32 %v1076, %v2785
    %v2795 = vmul.f32 %v1076, %v2789
    %v2796 = vmul.f32 %v1076, %v2793
    %2800 = vrot.lane.b32.xlu0 %v2794, 110
    %v2801 = vpop.permute.xlu0 %2800
    %2802 = vrot.lane.b32.xlu0 %v2795, 110
    %v2803 = vpop.permute.xlu0 %2802
    %2804 = vrot.lane.b32.xlu0 %v2796, 110
    %v2805 = vpop.permute.xlu0 %2804
    %v2806 = vsel %vm1119, %v2801, %v2803
    %v2807 = vsel %vm1119, %v2803, %v2805
    %v2810 = vadd.f32 %v2761, %v2806
    %v2811 = vadd.f32 %v2762, %v2807
    %v2812 = vlaneseq
    %v2813 = vshrl.u32 %v2812, 7
    %v2814 = vsub.s32 1, %v2813
    %v2815 = vrot.slane %v2763, %v2814
    %v2816 = vlaneseq
    %v2817 = vshrl.u32 %v2816, 7
    %v2818 = vsub.s32 5, %v2817
    %v2819 = vrot.slane %v2763, %v2818
    %v2820 = vlaneseq
    %v2821 = vshrl.u32 %v2820, 7
    %v2822 = vsub.s32 1, %v2821
    %v2823 = vrot.slane %v2764, %v2822
    %v2827 = vlaneseq
    %v2828 = vshrl.u32 %v2827, 7
    %v2829 = vsub.s32 1, %v2828
    %v2830 = vrot.slane %v2815, %v2829
    %v2831 = vlaneseq
    %v2832 = vshrl.u32 %v2831, 7
    %v2833 = vsub.s32 1, %v2832
    %v2834 = vrot.slane %v2819, %v2833
    %v2835 = vlaneseq
    %v2836 = vshrl.u32 %v2835, 7
    %v2837 = vsub.s32 1, %v2836
    %v2838 = vrot.slane %v2823, %v2837
    %v2839 = vmul.f32 %v1128, %v2830
    %v2840 = vmul.f32 %v1128, %v2834
    %v2841 = vmul.f32 %v1128, %v2838
    %2845 = vrot.lane.b32.xlu0 %v2839, 110
    %v2846 = vpop.permute.xlu0 %2845
    %2847 = vrot.lane.b32.xlu0 %v2840, 110
    %v2848 = vpop.permute.xlu0 %2847
    %2849 = vrot.lane.b32.xlu0 %v2841, 110
    %v2850 = vpop.permute.xlu0 %2849
    %v2851 = vsel %vm1119, %v2846, %v2848
    %v2852 = vsel %vm1119, %v2848, %v2850
    %v2855 = vadd.f32 %v2810, %v2851
    %v2856 = vadd.f32 %v2811, %v2852
    %v2857 = vlaneseq
    %v2858 = vshrl.u32 %v2857, 7
    %v2859 = vsub.s32 2, %v2858
    %v2860 = vrot.slane %v2763, %v2859
    %v2861 = vlaneseq
    %v2862 = vshrl.u32 %v2861, 7
    %v2863 = vsub.s32 6, %v2862
    %v2864 = vrot.slane %v2763, %v2863
    %v2865 = vlaneseq
    %v2866 = vshrl.u32 %v2865, 7
    %v2867 = vsub.s32 2, %v2866
    %v2868 = vrot.slane %v2764, %v2867
    %v2872 = vlaneseq
    %v2873 = vshrl.u32 %v2872, 7
    %v2874 = vsub.s32 2, %v2873
    %v2875 = vrot.slane %v2860, %v2874
    %v2876 = vlaneseq
    %v2877 = vshrl.u32 %v2876, 7
    %v2878 = vsub.s32 2, %v2877
    %v2879 = vrot.slane %v2864, %v2878
    %v2880 = vlaneseq
    %v2881 = vshrl.u32 %v2880, 7
    %v2882 = vsub.s32 2, %v2881
    %v2883 = vrot.slane %v2868, %v2882
    %v2884 = vmul.f32 %v1177, %v2875
    %v2885 = vmul.f32 %v1177, %v2879
    %v2886 = vmul.f32 %v1177, %v2883
    %2890 = vrot.lane.b32.xlu0 %v2884, 110
    %v2891 = vpop.permute.xlu0 %2890
    %2892 = vrot.lane.b32.xlu0 %v2885, 110
    %v2893 = vpop.permute.xlu0 %2892
    %2894 = vrot.lane.b32.xlu0 %v2886, 110
    %v2895 = vpop.permute.xlu0 %2894
    %v2896 = vsel %vm1119, %v2891, %v2893
    %v2897 = vsel %vm1119, %v2893, %v2895
    %v2900 = vadd.f32 %v2855, %v2896
    %v2901 = vadd.f32 %v2856, %v2897
    %v2902 = vlaneseq
    %v2903 = vshrl.u32 %v2902, 7
    %v2904 = vsub.s32 3, %v2903
    %v2905 = vrot.slane %v2763, %v2904
    %v2906 = vlaneseq
    %v2907 = vshrl.u32 %v2906, 7
    %v2908 = vsub.s32 7, %v2907
    %v2909 = vrot.slane %v2763, %v2908
    %v2910 = vlaneseq
    %v2911 = vshrl.u32 %v2910, 7
    %v2912 = vsub.s32 3, %v2911
    %v2913 = vrot.slane %v2764, %v2912
    %v2917 = vlaneseq
    %v2918 = vshrl.u32 %v2917, 7
    %v2919 = vsub.s32 3, %v2918
    %v2920 = vrot.slane %v2905, %v2919
    %v2921 = vlaneseq
    %v2922 = vshrl.u32 %v2921, 7
    %v2923 = vsub.s32 3, %v2922
    %v2924 = vrot.slane %v2909, %v2923
    %v2925 = vlaneseq
    %v2926 = vshrl.u32 %v2925, 7
    %v2927 = vsub.s32 3, %v2926
    %v2928 = vrot.slane %v2913, %v2927
    %v2929 = vmul.f32 %v1226, %v2920
    %v2930 = vmul.f32 %v1226, %v2924
    %v2931 = vmul.f32 %v1226, %v2928
    %2935 = vrot.lane.b32.xlu0 %v2929, 110
    %v2936 = vpop.permute.xlu0 %2935
    %2937 = vrot.lane.b32.xlu0 %v2930, 110
    %v2938 = vpop.permute.xlu0 %2937
    %2939 = vrot.lane.b32.xlu0 %v2931, 110
    %v2940 = vpop.permute.xlu0 %2939
    %v2941 = vsel %vm1119, %v2936, %v2938
    %v2942 = vsel %vm1119, %v2938, %v2940
    %v2945 = vadd.f32 %v2900, %v2941
    %v2946 = vadd.f32 %v2901, %v2942
    %v2947 = vmul.f32 %v1935, %v1288
    %v2948 = vmul.f32 %v1936, %v1286
    %v2951 = vlaneseq
    %v2952 = vshrl.u32 %v2951, 7
    %v2953 = vsub.s32 0, %v2952
    %v2954 = vrot.slane %v2947, %v2953
    %v2955 = vlaneseq
    %v2956 = vshrl.u32 %v2955, 7
    %v2957 = vsub.s32 4, %v2956
    %v2958 = vrot.slane %v2947, %v2957
    %v2959 = vlaneseq
    %v2960 = vshrl.u32 %v2959, 7
    %v2961 = vsub.s32 0, %v2960
    %v2962 = vrot.slane %v2948, %v2961
    %v2966 = vlaneseq
    %v2967 = vshrl.u32 %v2966, 7
    %v2968 = vsub.s32 0, %v2967
    %v2969 = vrot.slane %v2954, %v2968
    %v2970 = vlaneseq
    %v2971 = vshrl.u32 %v2970, 7
    %v2972 = vsub.s32 0, %v2971
    %v2973 = vrot.slane %v2958, %v2972
    %v2974 = vlaneseq
    %v2975 = vshrl.u32 %v2974, 7
    %v2976 = vsub.s32 0, %v2975
    %v2977 = vrot.slane %v2962, %v2976
    %v2978 = vmul.f32 %v1295, %v2969
    %v2979 = vmul.f32 %v1295, %v2973
    %v2980 = vmul.f32 %v1295, %v2977
    %2984 = vrot.lane.b32.xlu0 %v2978, 96
    %v2985 = vpop.permute.xlu0 %2984
    %2986 = vrot.lane.b32.xlu0 %v2979, 96
    %v2987 = vpop.permute.xlu0 %2986
    %2988 = vrot.lane.b32.xlu0 %v2980, 96
    %v2989 = vpop.permute.xlu0 %2988
    %v2990 = vsel %vm1338, %v2985, %v2987
    %v2991 = vsel %vm1338, %v2987, %v2989
    %v2994 = vadd.f32 %v2945, %v2990
    %v2995 = vadd.f32 %v2946, %v2991
    %v2996 = vlaneseq
    %v2997 = vshrl.u32 %v2996, 7
    %v2998 = vsub.s32 1, %v2997
    %v2999 = vrot.slane %v2947, %v2998
    %v3000 = vlaneseq
    %v3001 = vshrl.u32 %v3000, 7
    %v3002 = vsub.s32 5, %v3001
    %v3003 = vrot.slane %v2947, %v3002
    %v3004 = vlaneseq
    %v3005 = vshrl.u32 %v3004, 7
    %v3006 = vsub.s32 1, %v3005
    %v3007 = vrot.slane %v2948, %v3006
    %v3011 = vlaneseq
    %v3012 = vshrl.u32 %v3011, 7
    %v3013 = vsub.s32 1, %v3012
    %v3014 = vrot.slane %v2999, %v3013
    %v3015 = vlaneseq
    %v3016 = vshrl.u32 %v3015, 7
    %v3017 = vsub.s32 1, %v3016
    %v3018 = vrot.slane %v3003, %v3017
    %v3019 = vlaneseq
    %v3020 = vshrl.u32 %v3019, 7
    %v3021 = vsub.s32 1, %v3020
    %v3022 = vrot.slane %v3007, %v3021
    %v3023 = vmul.f32 %v1347, %v3014
    %v3024 = vmul.f32 %v1347, %v3018
    %v3025 = vmul.f32 %v1347, %v3022
    %3029 = vrot.lane.b32.xlu0 %v3023, 96
    %v3030 = vpop.permute.xlu0 %3029
    %3031 = vrot.lane.b32.xlu0 %v3024, 96
    %v3032 = vpop.permute.xlu0 %3031
    %3033 = vrot.lane.b32.xlu0 %v3025, 96
    %v3034 = vpop.permute.xlu0 %3033
    %v3035 = vsel %vm1338, %v3030, %v3032
    %v3036 = vsel %vm1338, %v3032, %v3034
    %v3039 = vadd.f32 %v2994, %v3035
    %v3040 = vadd.f32 %v2995, %v3036
    %v3041 = vlaneseq
    %v3042 = vshrl.u32 %v3041, 7
    %v3043 = vsub.s32 2, %v3042
    %v3044 = vrot.slane %v2947, %v3043
    %v3045 = vlaneseq
    %v3046 = vshrl.u32 %v3045, 7
    %v3047 = vsub.s32 6, %v3046
    %v3048 = vrot.slane %v2947, %v3047
    %v3049 = vlaneseq
    %v3050 = vshrl.u32 %v3049, 7
    %v3051 = vsub.s32 2, %v3050
    %v3052 = vrot.slane %v2948, %v3051
    %v3056 = vlaneseq
    %v3057 = vshrl.u32 %v3056, 7
    %v3058 = vsub.s32 2, %v3057
    %v3059 = vrot.slane %v3044, %v3058
    %v3060 = vlaneseq
    %v3061 = vshrl.u32 %v3060, 7
    %v3062 = vsub.s32 2, %v3061
    %v3063 = vrot.slane %v3048, %v3062
    %v3064 = vlaneseq
    %v3065 = vshrl.u32 %v3064, 7
    %v3066 = vsub.s32 2, %v3065
    %v3067 = vrot.slane %v3052, %v3066
    %v3068 = vmul.f32 %v1396, %v3059
    %v3069 = vmul.f32 %v1396, %v3063
    %v3070 = vmul.f32 %v1396, %v3067
    %3074 = vrot.lane.b32.xlu0 %v3068, 96
    %v3075 = vpop.permute.xlu0 %3074
    %3076 = vrot.lane.b32.xlu0 %v3069, 96
    %v3077 = vpop.permute.xlu0 %3076
    %3078 = vrot.lane.b32.xlu0 %v3070, 96
    %v3079 = vpop.permute.xlu0 %3078
    %v3080 = vsel %vm1338, %v3075, %v3077
    %v3081 = vsel %vm1338, %v3077, %v3079
    %v3084 = vadd.f32 %v3039, %v3080
    %v3085 = vadd.f32 %v3040, %v3081
    %v3086 = vlaneseq
    %v3087 = vshrl.u32 %v3086, 7
    %v3088 = vsub.s32 3, %v3087
    %v3089 = vrot.slane %v2947, %v3088
    %v3090 = vlaneseq
    %v3091 = vshrl.u32 %v3090, 7
    %v3092 = vsub.s32 7, %v3091
    %v3093 = vrot.slane %v2947, %v3092
    %v3094 = vlaneseq
    %v3095 = vshrl.u32 %v3094, 7
    %v3096 = vsub.s32 3, %v3095
    %v3097 = vrot.slane %v2948, %v3096
    %v3101 = vlaneseq
    %v3102 = vshrl.u32 %v3101, 7
    %v3103 = vsub.s32 3, %v3102
    %v3104 = vrot.slane %v3089, %v3103
    %v3105 = vlaneseq
    %v3106 = vshrl.u32 %v3105, 7
    %v3107 = vsub.s32 3, %v3106
    %v3108 = vrot.slane %v3093, %v3107
    %v3109 = vlaneseq
    %v3110 = vshrl.u32 %v3109, 7
    %v3111 = vsub.s32 3, %v3110
    %v3112 = vrot.slane %v3097, %v3111
    %v3113 = vmul.f32 %v1445, %v3104
    %v3114 = vmul.f32 %v1445, %v3108
    %v3115 = vmul.f32 %v1445, %v3112
    %3119 = vrot.lane.b32.xlu0 %v3113, 96
    %v3120 = vpop.permute.xlu0 %3119
    %3121 = vrot.lane.b32.xlu0 %v3114, 96
    %v3122 = vpop.permute.xlu0 %3121
    %3123 = vrot.lane.b32.xlu0 %v3115, 96
    %v3124 = vpop.permute.xlu0 %3123
    %v3125 = vsel %vm1338, %v3120, %v3122
    %v3126 = vsel %vm1338, %v3122, %v3124
    %v3129 = vadd.f32 %v3084, %v3125
    %v3130 = vadd.f32 %v3085, %v3126
    %v3131 = vmul.f32 %v1935, %v1507
    %v3132 = vmul.f32 %v1936, %v1505
    %v3135 = vlaneseq
    %v3136 = vshrl.u32 %v3135, 7
    %v3137 = vsub.s32 0, %v3136
    %v3138 = vrot.slane %v3131, %v3137
    %v3139 = vlaneseq
    %v3140 = vshrl.u32 %v3139, 7
    %v3141 = vsub.s32 4, %v3140
    %v3142 = vrot.slane %v3131, %v3141
    %v3143 = vlaneseq
    %v3144 = vshrl.u32 %v3143, 7
    %v3145 = vsub.s32 0, %v3144
    %v3146 = vrot.slane %v3132, %v3145
    %v3150 = vlaneseq
    %v3151 = vshrl.u32 %v3150, 7
    %v3152 = vsub.s32 0, %v3151
    %v3153 = vrot.slane %v3138, %v3152
    %v3154 = vlaneseq
    %v3155 = vshrl.u32 %v3154, 7
    %v3156 = vsub.s32 0, %v3155
    %v3157 = vrot.slane %v3142, %v3156
    %v3158 = vlaneseq
    %v3159 = vshrl.u32 %v3158, 7
    %v3160 = vsub.s32 0, %v3159
    %v3161 = vrot.slane %v3146, %v3160
    %v3162 = vmul.f32 %v1514, %v3153
    %v3163 = vmul.f32 %v1514, %v3157
    %v3164 = vmul.f32 %v1514, %v3161
    %3168 = vrot.lane.b32.xlu0 %v3162, 95
    %v3169 = vpop.permute.xlu0 %3168
    %3170 = vrot.lane.b32.xlu0 %v3163, 95
    %v3171 = vpop.permute.xlu0 %3170
    %3172 = vrot.lane.b32.xlu0 %v3164, 95
    %v3173 = vpop.permute.xlu0 %3172
    %v3174 = vsel %vm1557, %v3169, %v3171
    %v3175 = vsel %vm1557, %v3171, %v3173
    %v3178 = vadd.f32 %v3129, %v3174
    %v3179 = vadd.f32 %v3130, %v3175
    %v3180 = vlaneseq
    %v3181 = vshrl.u32 %v3180, 7
    %v3182 = vsub.s32 1, %v3181
    %v3183 = vrot.slane %v3131, %v3182
    %v3184 = vlaneseq
    %v3185 = vshrl.u32 %v3184, 7
    %v3186 = vsub.s32 5, %v3185
    %v3187 = vrot.slane %v3131, %v3186
    %v3188 = vlaneseq
    %v3189 = vshrl.u32 %v3188, 7
    %v3190 = vsub.s32 1, %v3189
    %v3191 = vrot.slane %v3132, %v3190
    %v3195 = vlaneseq
    %v3196 = vshrl.u32 %v3195, 7
    %v3197 = vsub.s32 1, %v3196
    %v3198 = vrot.slane %v3183, %v3197
    %v3199 = vlaneseq
    %v3200 = vshrl.u32 %v3199, 7
    %v3201 = vsub.s32 1, %v3200
    %v3202 = vrot.slane %v3187, %v3201
    %v3203 = vlaneseq
    %v3204 = vshrl.u32 %v3203, 7
    %v3205 = vsub.s32 1, %v3204
    %v3206 = vrot.slane %v3191, %v3205
    %v3207 = vmul.f32 %v1566, %v3198
    %v3208 = vmul.f32 %v1566, %v3202
    %v3209 = vmul.f32 %v1566, %v3206
    %3213 = vrot.lane.b32.xlu0 %v3207, 95
    %v3214 = vpop.permute.xlu0 %3213
    %3215 = vrot.lane.b32.xlu0 %v3208, 95
    %v3216 = vpop.permute.xlu0 %3215
    %3217 = vrot.lane.b32.xlu0 %v3209, 95
    %v3218 = vpop.permute.xlu0 %3217
    %v3219 = vsel %vm1557, %v3214, %v3216
    %v3220 = vsel %vm1557, %v3216, %v3218
    %v3223 = vadd.f32 %v3178, %v3219
    %v3224 = vadd.f32 %v3179, %v3220
    %v3225 = vlaneseq
    %v3226 = vshrl.u32 %v3225, 7
    %v3227 = vsub.s32 2, %v3226
    %v3228 = vrot.slane %v3131, %v3227
    %v3229 = vlaneseq
    %v3230 = vshrl.u32 %v3229, 7
    %v3231 = vsub.s32 6, %v3230
    %v3232 = vrot.slane %v3131, %v3231
    %v3233 = vlaneseq
    %v3234 = vshrl.u32 %v3233, 7
    %v3235 = vsub.s32 2, %v3234
    %v3236 = vrot.slane %v3132, %v3235
    %v3240 = vlaneseq
    %v3241 = vshrl.u32 %v3240, 7
    %v3242 = vsub.s32 2, %v3241
    %v3243 = vrot.slane %v3228, %v3242
    %v3244 = vlaneseq
    %v3245 = vshrl.u32 %v3244, 7
    %v3246 = vsub.s32 2, %v3245
    %v3247 = vrot.slane %v3232, %v3246
    %v3248 = vlaneseq
    %v3249 = vshrl.u32 %v3248, 7
    %v3250 = vsub.s32 2, %v3249
    %v3251 = vrot.slane %v3236, %v3250
    %v3252 = vmul.f32 %v1615, %v3243
    %v3253 = vmul.f32 %v1615, %v3247
    %v3254 = vmul.f32 %v1615, %v3251
    %3258 = vrot.lane.b32.xlu0 %v3252, 95
    %v3259 = vpop.permute.xlu0 %3258
    %3260 = vrot.lane.b32.xlu0 %v3253, 95
    %v3261 = vpop.permute.xlu0 %3260
    %3262 = vrot.lane.b32.xlu0 %v3254, 95
    %v3263 = vpop.permute.xlu0 %3262
    %v3264 = vsel %vm1557, %v3259, %v3261
    %v3265 = vsel %vm1557, %v3261, %v3263
    %v3268 = vadd.f32 %v3223, %v3264
    %v3269 = vadd.f32 %v3224, %v3265
    %v3270 = vlaneseq
    %v3271 = vshrl.u32 %v3270, 7
    %v3272 = vsub.s32 3, %v3271
    %v3273 = vrot.slane %v3131, %v3272
    %v3274 = vlaneseq
    %v3275 = vshrl.u32 %v3274, 7
    %v3276 = vsub.s32 7, %v3275
    %v3277 = vrot.slane %v3131, %v3276
    %v3278 = vlaneseq
    %v3279 = vshrl.u32 %v3278, 7
    %v3280 = vsub.s32 3, %v3279
    %v3281 = vrot.slane %v3132, %v3280
    %v3285 = vlaneseq
    %v3286 = vshrl.u32 %v3285, 7
    %v3287 = vsub.s32 3, %v3286
    %v3288 = vrot.slane %v3273, %v3287
    %v3289 = vlaneseq
    %v3290 = vshrl.u32 %v3289, 7
    %v3291 = vsub.s32 3, %v3290
    %v3292 = vrot.slane %v3277, %v3291
    %v3293 = vlaneseq
    %v3294 = vshrl.u32 %v3293, 7
    %v3295 = vsub.s32 3, %v3294
    %v3296 = vrot.slane %v3281, %v3295
    %v3297 = vmul.f32 %v1664, %v3288
    %v3298 = vmul.f32 %v1664, %v3292
    %v3299 = vmul.f32 %v1664, %v3296
    %3303 = vrot.lane.b32.xlu0 %v3297, 95
    %v3304 = vpop.permute.xlu0 %3303
    %3305 = vrot.lane.b32.xlu0 %v3298, 95
    %v3306 = vpop.permute.xlu0 %3305
    %3307 = vrot.lane.b32.xlu0 %v3299, 95
    %v3308 = vpop.permute.xlu0 %3307
    %v3309 = vsel %vm1557, %v3304, %v3306
    %v3310 = vsel %vm1557, %v3306, %v3308
    %v3313 = vadd.f32 %v3268, %v3309
    %v3314 = vadd.f32 %v3269, %v3310
    %v3315 = vmul.f32 %v1935, %v1726
    %v3316 = vmul.f32 %v1936, %v1724
    %v3319 = vlaneseq
    %v3320 = vshrl.u32 %v3319, 7
    %v3321 = vsub.s32 0, %v3320
    %v3322 = vrot.slane %v3315, %v3321
    %v3323 = vlaneseq
    %v3324 = vshrl.u32 %v3323, 7
    %v3325 = vsub.s32 4, %v3324
    %v3326 = vrot.slane %v3315, %v3325
    %v3327 = vlaneseq
    %v3328 = vshrl.u32 %v3327, 7
    %v3329 = vsub.s32 0, %v3328
    %v3330 = vrot.slane %v3316, %v3329
    %v3334 = vlaneseq
    %v3335 = vshrl.u32 %v3334, 7
    %v3336 = vsub.s32 0, %v3335
    %v3337 = vrot.slane %v3322, %v3336
    %v3338 = vlaneseq
    %v3339 = vshrl.u32 %v3338, 7
    %v3340 = vsub.s32 0, %v3339
    %v3341 = vrot.slane %v3326, %v3340
    %v3342 = vlaneseq
    %v3343 = vshrl.u32 %v3342, 7
    %v3344 = vsub.s32 0, %v3343
    %v3345 = vrot.slane %v3330, %v3344
    %v3346 = vmul.f32 %v1733, %v3337
    %v3347 = vmul.f32 %v1733, %v3341
    %v3348 = vmul.f32 %v1733, %v3345
    %3352 = vrot.lane.b32.xlu0 %v3346, 94
    %v3353 = vpop.permute.xlu0 %3352
    %3354 = vrot.lane.b32.xlu0 %v3347, 94
    %v3355 = vpop.permute.xlu0 %3354
    %3356 = vrot.lane.b32.xlu0 %v3348, 94
    %v3357 = vpop.permute.xlu0 %3356
    %v3358 = vsel %vm1776, %v3353, %v3355
    %v3359 = vsel %vm1776, %v3355, %v3357
    %v3362 = vadd.f32 %v3313, %v3358
    %v3363 = vadd.f32 %v3314, %v3359
    %v3364 = vlaneseq
    %v3365 = vshrl.u32 %v3364, 7
    %v3366 = vsub.s32 1, %v3365
    %v3367 = vrot.slane %v3315, %v3366
    %v3368 = vlaneseq
    %v3369 = vshrl.u32 %v3368, 7
    %v3370 = vsub.s32 5, %v3369
    %v3371 = vrot.slane %v3315, %v3370
    %v3372 = vlaneseq
    %v3373 = vshrl.u32 %v3372, 7
    %v3374 = vsub.s32 1, %v3373
    %v3375 = vrot.slane %v3316, %v3374
    %v3379 = vlaneseq
    %v3380 = vshrl.u32 %v3379, 7
    %v3381 = vsub.s32 1, %v3380
    %v3382 = vrot.slane %v3367, %v3381
    %v3383 = vlaneseq
    %v3384 = vshrl.u32 %v3383, 7
    %v3385 = vsub.s32 1, %v3384
    %v3386 = vrot.slane %v3371, %v3385
    %v3387 = vlaneseq
    %v3388 = vshrl.u32 %v3387, 7
    %v3389 = vsub.s32 1, %v3388
    %v3390 = vrot.slane %v3375, %v3389
    %v3391 = vmul.f32 %v1785, %v3382
    %v3392 = vmul.f32 %v1785, %v3386
    %v3393 = vmul.f32 %v1785, %v3390
    %3397 = vrot.lane.b32.xlu0 %v3391, 94
    %v3398 = vpop.permute.xlu0 %3397
    %3399 = vrot.lane.b32.xlu0 %v3392, 94
    %v3400 = vpop.permute.xlu0 %3399
    %3401 = vrot.lane.b32.xlu0 %v3393, 94
    %v3402 = vpop.permute.xlu0 %3401
    %v3403 = vsel %vm1776, %v3398, %v3400
    %v3404 = vsel %vm1776, %v3400, %v3402
    %v3407 = vadd.f32 %v3362, %v3403
    %v3408 = vadd.f32 %v3363, %v3404
    %v3409 = vlaneseq
    %v3410 = vshrl.u32 %v3409, 7
    %v3411 = vsub.s32 2, %v3410
    %v3412 = vrot.slane %v3315, %v3411
    %v3413 = vlaneseq
    %v3414 = vshrl.u32 %v3413, 7
    %v3415 = vsub.s32 6, %v3414
    %v3416 = vrot.slane %v3315, %v3415
    %v3417 = vlaneseq
    %v3418 = vshrl.u32 %v3417, 7
    %v3419 = vsub.s32 2, %v3418
    %v3420 = vrot.slane %v3316, %v3419
    %v3424 = vlaneseq
    %v3425 = vshrl.u32 %v3424, 7
    %v3426 = vsub.s32 2, %v3425
    %v3427 = vrot.slane %v3412, %v3426
    %v3428 = vlaneseq
    %v3429 = vshrl.u32 %v3428, 7
    %v3430 = vsub.s32 2, %v3429
    %v3431 = vrot.slane %v3416, %v3430
    %v3432 = vlaneseq
    %v3433 = vshrl.u32 %v3432, 7
    %v3434 = vsub.s32 2, %v3433
    %v3435 = vrot.slane %v3420, %v3434
    %v3436 = vmul.f32 %v1834, %v3427
    %v3437 = vmul.f32 %v1834, %v3431
    %v3438 = vmul.f32 %v1834, %v3435
    %3442 = vrot.lane.b32.xlu0 %v3436, 94
    %v3443 = vpop.permute.xlu0 %3442
    %3444 = vrot.lane.b32.xlu0 %v3437, 94
    %v3445 = vpop.permute.xlu0 %3444
    %3446 = vrot.lane.b32.xlu0 %v3438, 94
    %v3447 = vpop.permute.xlu0 %3446
    %v3448 = vsel %vm1776, %v3443, %v3445
    %v3449 = vsel %vm1776, %v3445, %v3447
    %v3452 = vadd.f32 %v3407, %v3448
    %v3453 = vadd.f32 %v3408, %v3449
    %v3454 = vlaneseq
    %v3455 = vshrl.u32 %v3454, 7
    %v3456 = vsub.s32 3, %v3455
    %v3457 = vrot.slane %v3315, %v3456
    %v3458 = vlaneseq
    %v3459 = vshrl.u32 %v3458, 7
    %v3460 = vsub.s32 7, %v3459
    %v3461 = vrot.slane %v3315, %v3460
    %v3462 = vlaneseq
    %v3463 = vshrl.u32 %v3462, 7
    %v3464 = vsub.s32 3, %v3463
    %v3465 = vrot.slane %v3316, %v3464
    %v3469 = vlaneseq
    %v3470 = vshrl.u32 %v3469, 7
    %v3471 = vsub.s32 3, %v3470
    %v3472 = vrot.slane %v3457, %v3471
    %v3473 = vlaneseq
    %v3474 = vshrl.u32 %v3473, 7
    %v3475 = vsub.s32 3, %v3474
    %v3476 = vrot.slane %v3461, %v3475
    %v3477 = vlaneseq
    %v3478 = vshrl.u32 %v3477, 7
    %v3479 = vsub.s32 3, %v3478
    %v3480 = vrot.slane %v3465, %v3479
    %v3481 = vmul.f32 %v1883, %v3472
    %v3482 = vmul.f32 %v1883, %v3476
    %v3483 = vmul.f32 %v1883, %v3480
    %3487 = vrot.lane.b32.xlu0 %v3481, 94
    %v3488 = vpop.permute.xlu0 %3487
    %3489 = vrot.lane.b32.xlu0 %v3482, 94
    %v3490 = vpop.permute.xlu0 %3489
    %3491 = vrot.lane.b32.xlu0 %v3483, 94
    %v3492 = vpop.permute.xlu0 %3491
    %v3493 = vsel %vm1776, %v3488, %v3490
    %v3494 = vsel %vm1776, %v3490, %v3492
    %v3497 = vadd.f32 %v3452, %v3493
    %v3498 = vadd.f32 %v3453, %v3494
    %v3499 = vmax.f32 %v3497, 0.0
    %v3500 = vmax.f32 %v3498, 0.0
    %s3501 = scalar_lea.vmem [#allocation7], 16
    %3502 = vst [vmem:[%s3501] sm:$0xff] %v3499
    %3503 = vst [vmem:[%s3501 + $0x8] sm:$0xff] %v3500
    // Predicated region
    $region26: #{tpu_custom_call.1} parent=1 // pred_check
      _
    $region27: #{tpu_custom_call.1} parent=1 // pred_check_branch
      %3505 = sbr.rel (0) target = $region29
    $region28: #{tpu_custom_call.1} parent=1 // pred_region
      %s3507 = ssub.s32 512, 512
      %3508 = vsyncadd [#allocation4], %s3507
      %s3509 = sshll.u32 [#allocation7], 4
      %s3510 = int_to_ptr.vmem [resolvable:$true] %s3509
      %3515 = dma.vmem_to_hbm [thread:$0]  %s3510, 512, %s4, [#allocation4], 256, 256, 16
    $region29: #{tpu_custom_call.1} parent=1 // pred_fallthru
      _
    // Predicated region
    $region30: #{tpu_custom_call.1} parent=1 // pred_check
      _
    $region31: #{tpu_custom_call.1} parent=1 // pred_check_branch
      %3517 = sbr.rel (0) target = $region33
    $region32: #{tpu_custom_call.1} parent=1 // pred_region
      %3518 = dma.done [#allocation4], 512
    $region33: #{tpu_custom_call.1} parent=1 // pred_fallthru
      _
    %3519 = vsyncpa [#allocation3], 1
    %3520 = vsyncpa [#allocation6], 1
    %3521 = vsyncpa [#allocation4], 1

</llo_original>
